<compile_context>
chip_gen: v6e
topology: v6e:2x2x1
jax: 0.10.0
libtpu: 0.0.40
codegen_flags: <defaults>
</compile_context>

<pallas_src>
import functools
import math

import jax
import jax.numpy as jnp
from jax.experimental import pallas as pl
from jax.experimental.pallas import tpu as pltpu

# ----------------------------- config (consistent with the module) -----------
BATCH = 2
SEQ = 8            # args.max_seq_length
HIDDEN = 32        # args.hidden_size
N_HEADS = 2        # args.num_attention_heads
N_LAYERS = 2       # args.num_hidden_layers
ITEM_SIZE = 50     # args.item_size
INIT_RANGE = 0.02  # args.initializer_range
EPS = 1e-12
DH = HIDDEN // N_HEADS
INTER = 4 * HIDDEN

# ----------------------------- vec-slab row layout (static offsets) ----------
ITEM_ROW = 0                       # rows 0..ITEM_SIZE-1 : item embedding table
POS_ROW = 56                       # rows 56..63         : positional embeddings
EMB_G_ROW = 64                     # embedding LayerNorm gamma
EMB_B_ROW = 65                     # embedding LayerNorm beta
LAYER_ROW = 72                     # per-layer block starts (8-row aligned)
LAYER_STRIDE = 8
BO_ROW, AG_ROW, AB_ROW, B1_ROW, B2_ROW, FG_ROW, FB_ROW = 0, 1, 2, 3, 4, 5, 6
VEC_ROWS = LAYER_ROW + N_LAYERS * LAYER_STRIDE   # 88


# ----------------------------- in-kernel helpers ------------------------------
def _layernorm(x, gamma, beta):
    # matches SASRec LayerNorm: (x - mean) / sqrt(biased_var + 1e-12) * w + b
    u = jnp.mean(x, axis=-1, keepdims=True)
    s = jnp.mean((x - u) ** 2, axis=-1, keepdims=True)
    return (x - u) * jax.lax.rsqrt(s + EPS) * gamma + beta


def _erf(x):
    # Abramowitz & Stegun 7.1.26 polynomial (|err| <= 1.5e-7); uses only
    # exp/mul/add/div so it lowers cleanly on the VPU/EUP.
    a1, a2, a3, a4, a5 = 0.254829592, -0.284496736, 1.421413741, -1.453152027, 1.061405429
    pp = 0.3275911
    sign = jnp.where(x < 0.0, -1.0, 1.0)
    ax = jnp.abs(x)
    t = 1.0 / (1.0 + pp * ax)
    poly = ((((a5 * t + a4) * t + a3) * t + a2) * t + a1) * t
    return sign * (1.0 - poly * jnp.exp(-ax * ax))


def _gelu(x):
    # TODO(synk): exact torch.erf GELU approximated by the A&S polynomial above
    # (~1.5e-7 abs error) because erf has no guaranteed Mosaic lowering.
    return x * 0.5 * (1.0 + _erf(x * (1.0 / math.sqrt(2.0))))


# ----------------------------- fused forward kernel ---------------------------
def fused_forward_kernel(ids_ref, vec_ref, wqkv_ref, wo_ref, ffw_ref, o_ref,
                         *, n_heads, n_layers, seq, hidden):
    inter = 4 * hidden
    b = pl.program_id(0)
    base = b * seq

    # ---- item-embedding gather: scalar ids (SMEM) -> dynamic row loads (VMEM) ----
    rows = [vec_ref[pl.ds(ITEM_ROW + ids_ref[base + i], 1), 0:hidden] for i in range(seq)]
    x = jnp.concatenate(rows, axis=0)                                   # (S, H)
    x = x + vec_ref[POS_ROW:POS_ROW + seq, 0:hidden]                    # + pos emb
    # TODO(synk): nn.Dropout(hidden_dropout_prob) is identity in eval mode; omitted.
    h = _layernorm(x,
                   vec_ref[EMB_G_ROW:EMB_G_ROW + 1, 0:hidden],
                   vec_ref[EMB_B_ROW:EMB_B_ROW + 1, 0:hidden])          # (S, H)

    for l in range(n_layers):                       # static unroll, N_LAYERS = 2
        r = LAYER_ROW + l * LAYER_STRIDE

        # ---------------- self-attention (heads = batch dim of 3-D einsums) ----
        wqkv = wqkv_ref[l, :, 0:hidden, :]                  # (3*NH, H, DH)
        bqkv = wqkv_ref[l, :, hidden:hidden + 1, :]         # (3*NH, 1, DH)
        hb = jnp.broadcast_to(h[None], (3 * n_heads, seq, hidden))
        qkv = jnp.einsum("gsd,gde->gse", hb, wqkv,
                         preferred_element_type=jnp.float32) + bqkv     # (6, S, DH)
        q = qkv[0:n_heads]
        k = qkv[n_heads:2 * n_heads]
        v = qkv[2 * n_heads:3 * n_heads]

        # TODO(synk): TModel.forward passes no attention mask -> unmasked attention.
        s = jnp.einsum("hqd,hkd->hqk", q, k,
                       preferred_element_type=jnp.float32)   # 1/sqrt(dh) folded into Wq
        s = s - jnp.max(s, axis=-1, keepdims=True)
        p = jnp.exp(s)
        p = p * pl.reciprocal(jnp.sum(p, axis=-1, keepdims=True), approx=False)
        ctx = jnp.einsum("hqk,hkd->hqd", p, v,
                         preferred_element_type=jnp.float32)            # (NH, S, DH)

        attn_h = jnp.einsum("hqd,hdo->hqo", ctx, wo_ref[l],
                            preferred_element_type=jnp.float32)         # (NH, S, H)
        attn = attn_h[0]
        for hh in range(1, n_heads):
            attn = attn + attn_h[hh]
        attn = attn + vec_ref[r + BO_ROW:r + BO_ROW + 1, 0:hidden]
        h = _layernorm(attn + h,
                       vec_ref[r + AG_ROW:r + AG_ROW + 1, 0:hidden],
                       vec_ref[r + AB_ROW:r + AB_ROW + 1, 0:hidden])

        # ---------------- feed-forward ----------------
        w1 = ffw_ref[l, 0:hidden, 0:inter]                              # (H, 4H)
        w2 = ffw_ref[l, hidden:hidden + inter, 0:hidden]                # (4H, H)
        y = jnp.dot(h, w1, preferred_element_type=jnp.float32)
        y = y + vec_ref[r + B1_ROW:r + B1_ROW + 1, 0:inter]
        y = _gelu(y)
        y = jnp.dot(y, w2, preferred_element_type=jnp.float32)
        y = y + vec_ref[r + B2_ROW:r + B2_ROW + 1, 0:hidden]
        h = _layernorm(y + h,
                       vec_ref[r + FG_ROW:r + FG_ROW + 1, 0:hidden],
                       vec_ref[r + FB_ROW:r + FB_ROW + 1, 0:hidden])

    o_ref[...] = h[None]                                                # (1, S, H)


# ----------------------------- pallas_call wrapper ----------------------------
def tmodel_forward(packed, input_ids):
    vec, wqkv_h, wo_h, ffw = packed
    b, s = input_ids.shape
    ids = input_ids.reshape(b * s).astype(jnp.int32)

    kernel = functools.partial(fused_forward_kernel, n_heads=N_HEADS,
                               n_layers=N_LAYERS, seq=s, hidden=HIDDEN)

    grid_spec = pltpu.PrefetchScalarGridSpec(
        num_scalar_prefetch=1,                     # ids -> SMEM, no VMEM tile / DMA
        grid=(b,),                                 # one batch element per grid step
        in_specs=[
            pl.BlockSpec(vec.shape,    lambda i, ids_ref: (0, 0)),
            pl.BlockSpec(wqkv_h.shape, lambda i, ids_ref: (0, 0, 0, 0)),
            pl.BlockSpec(wo_h.shape,   lambda i, ids_ref: (0, 0, 0, 0)),
            pl.BlockSpec(ffw.shape,    lambda i, ids_ref: (0, 0, 0)),
        ],
        out_specs=pl.BlockSpec((1, s, HIDDEN), lambda i, ids_ref: (i, 0, 0)),
    )

    out = pl.pallas_call(
        kernel,
        out_shape=jax.ShapeDtypeStruct((b, s, HIDDEN), jnp.float32),
        grid_spec=grid_spec,
        compiler_params=pltpu.CompilerParams(
            dimension_semantics=("parallel",)),    # 2nd TensorCore on v7x
    )(ids, vec, wqkv_h, wo_h, ffw)
    return out


# ----------------------------- parameters -------------------------------------
def init_params(key):
    std = INIT_RANGE
    keys = jax.random.split(key, 2 + N_LAYERS * 6)
    ki = iter(keys)
    nrm = lambda k, shp: std * jax.random.normal(k, shp, jnp.float32)

    p = {
        "item_emb": nrm(next(ki), (ITEM_SIZE, HIDDEN)),
        "pos_emb": nrm(next(ki), (SEQ, HIDDEN)),
        "emb_ln_g": jnp.ones((HIDDEN,), jnp.float32),
        "emb_ln_b": jnp.zeros((HIDDEN,), jnp.float32),
    }
    wq, wk, wv, wo, w1, w2 = ([] for _ in range(6))
    for _ in range(N_LAYERS):
        wq.append(nrm(next(ki), (HIDDEN, HIDDEN)))
        wk.append(nrm(next(ki), (HIDDEN, HIDDEN)))
        wv.append(nrm(next(ki), (HIDDEN, HIDDEN)))
        wo.append(nrm(next(ki), (HIDDEN, HIDDEN)))
        w1.append(nrm(next(ki), (HIDDEN, INTER)))
        w2.append(nrm(next(ki), (INTER, HIDDEN)))
    zeros = lambda n: jnp.zeros((N_LAYERS, n), jnp.float32)
    ones = lambda n: jnp.ones((N_LAYERS, n), jnp.float32)
    p.update({
        "wq": jnp.stack(wq), "wk": jnp.stack(wk), "wv": jnp.stack(wv),
        "bq": zeros(HIDDEN), "bk": zeros(HIDDEN), "bv": zeros(HIDDEN),
        "wo": jnp.stack(wo), "bo": zeros(HIDDEN),
        "attn_ln_g": ones(HIDDEN), "attn_ln_b": zeros(HIDDEN),
        "w1": jnp.stack(w1), "b1": zeros(INTER),
        "w2": jnp.stack(w2), "b2": zeros(HIDDEN),
        "ffn_ln_g": ones(HIDDEN), "ffn_ln_b": zeros(HIDDEN),
    })
    return p


def pack_params(p):
    """Pack all parameters into 4 lane-padded VMEM slabs (one-time, host side)."""
    assert HIDDEN <= 128 and INTER <= 128
    scale = 1.0 / math.sqrt(DH)

    vec = jnp.zeros((VEC_ROWS, 128), jnp.float32)
    vec = vec.at[ITEM_ROW:ITEM_ROW + ITEM_SIZE, 0:HIDDEN].set(p["item_emb"])
    vec = vec.at[POS_ROW:POS_ROW + SEQ, 0:HIDDEN].set(p["pos_emb"])
    vec = vec.at[EMB_G_ROW, 0:HIDDEN].set(p["emb_ln_g"])
    vec = vec.at[EMB_B_ROW, 0:HIDDEN].set(p["emb_ln_b"])

    wqkv_layers, wo_layers, ffw_layers = [], [], []
    for l in range(N_LAYERS):
        r = LAYER_ROW + l * LAYER_STRIDE
        vec = vec.at[r + BO_ROW, 0:HIDDEN].set(p["bo"][l])
        vec = vec.at[r + AG_ROW, 0:HIDDEN].set(p["attn_ln_g"][l])
        vec = vec.at[r + AB_ROW, 0:HIDDEN].set(p["attn_ln_b"][l])
        vec = vec.at[r + B1_ROW, 0:INTER].set(p["b1"][l])
        vec = vec.at[r + B2_ROW, 0:HIDDEN].set(p["b2"][l])
        vec = vec.at[r + FG_ROW, 0:HIDDEN].set(p["ffn_ln_g"][l])
        vec = vec.at[r + FB_ROW, 0:HIDDEN].set(p["ffn_ln_b"][l])

        # heads-major QKV blocks; attention scale folded into the Q projection;
        # bias appended as the last contraction row of each (H+1, DH) block.
        groups = []
        for (w, bvec) in ((p["wq"][l] * scale, p["bq"][l] * scale),
                          (p["wk"][l], p["bk"][l]),
                          (p["wv"][l], p["bv"][l])):
            for h in range(N_HEADS):
                wg = w[:, h * DH:(h + 1) * DH]                    # (H, DH)
                bg = bvec[h * DH:(h + 1) * DH][None, :]           # (1, DH)
                groups.append(jnp.concatenate([wg, bg], axis=0))  # (H+1, DH)
        wqkv_layers.append(jnp.stack(groups, axis=0))             # (3*NH, H+1, DH)

        wo_layers.append(jnp.stack(
            [p["wo"][l][h * DH:(h + 1) * DH, :] for h in range(N_HEADS)], axis=0))

        ffw = jnp.zeros((HIDDEN + INTER, 128), jnp.float32)
        ffw = ffw.at[0:HIDDEN, 0:INTER].set(p["w1"][l])
        ffw = ffw.at[HIDDEN:HIDDEN + INTER, 0:HIDDEN].set(p["w2"][l])
        ffw_layers.append(ffw)

    return (vec,
            jnp.stack(wqkv_layers),   # (L, 3*NH, H+1, DH)
            jnp.stack(wo_layers),     # (L, NH, DH, H)
            jnp.stack(ffw_layers))    # (L, H+4H, 128)


# ----------------------------- main -------------------------------------------
if __name__ == "__main__":
    key = jax.random.PRNGKey(0)
    k_params, k_ids = jax.random.split(key)
    params = init_params(k_params)
    packed = pack_params(params)
    input_ids = jax.random.randint(k_ids, (BATCH, SEQ), 0, ITEM_SIZE, dtype=jnp.int32)

    out = tmodel_forward(packed, input_ids)
    out = jax.block_until_ready(out)
    assert out.shape == (BATCH, SEQ, HIDDEN)
    assert bool(jnp.all(jnp.isfinite(out)))
    print("KERNEL_OK")
</pallas_src>

<mosaic_0001>
module attributes {stable_mosaic.version = 11 : i64} {
  func.func @fused_forward_kernel(%arg0: i32, %arg1: memref<16xi32, #tpu.memory_space<smem>>, %arg2: memref<88x128xf32, #tpu.memory_space<vmem>>, %arg3: memref<2x6x33x16xf32, #tpu.memory_space<vmem>>, %arg4: memref<2x2x16x32xf32, #tpu.memory_space<vmem>>, %arg5: memref<2x160x128xf32, #tpu.memory_space<vmem>>, %arg6: memref<1x8x32xf32, #tpu.memory_space<vmem>>) attributes {dimension_semantics = [#tpu.dimension_semantics<parallel>], iteration_bounds = array<i64: 2>, scalar_prefetch = 1 : i64, scratch_operands = 0 : i64, tpu.core_type = #tpu.core_type<tc>, window_params = [{pipeline_mode = #tpu.pipeline_mode<synchronous>, transform_indices = @transform_0, window_bounds = array<i64: 88, 128>}, {pipeline_mode = #tpu.pipeline_mode<synchronous>, transform_indices = @transform_1, window_bounds = array<i64: 2, 6, 33, 16>}, {pipeline_mode = #tpu.pipeline_mode<synchronous>, transform_indices = @transform_2, window_bounds = array<i64: 2, 2, 16, 32>}, {pipeline_mode = #tpu.pipeline_mode<synchronous>, transform_indices = @transform_3, window_bounds = array<i64: 2, 160, 128>}, {transform_indices = @transform_4, window_bounds = array<i64: 1, 8, 32>}]} {
    %c8_i32 = arith.constant 8 : i32
    %0 = arith.muli %arg0, %c8_i32 : i32
    %c0_i32 = arith.constant 0 : i32
    %1 = arith.addi %0, %c0_i32 : i32
    %2 = arith.index_cast %1 : i32 to index
    %3 = memref.load %arg1[%2] : memref<16xi32, #tpu.memory_space<smem>>
    %c0_i32_0 = arith.constant 0 : i32
    %4 = arith.addi %c0_i32_0, %3 : i32
    %5 = arith.index_cast %4 : i32 to index
    %c0 = arith.constant 0 : index
    %6 = vector.load %arg2[%5, %c0] : memref<88x128xf32, #tpu.memory_space<vmem>>, vector<1x32xf32>
    %c1_i32 = arith.constant 1 : i32
    %7 = arith.addi %0, %c1_i32 : i32
    %8 = arith.index_cast %7 : i32 to index
    %9 = memref.load %arg1[%8] : memref<16xi32, #tpu.memory_space<smem>>
    %c0_i32_1 = arith.constant 0 : i32
    %10 = arith.addi %c0_i32_1, %9 : i32
    %11 = arith.index_cast %10 : i32 to index
    %c0_2 = arith.constant 0 : index
    %12 = vector.load %arg2[%11, %c0_2] : memref<88x128xf32, #tpu.memory_space<vmem>>, vector<1x32xf32>
    %c2_i32 = arith.constant 2 : i32
    %13 = arith.addi %0, %c2_i32 : i32
    %14 = arith.index_cast %13 : i32 to index
    %15 = memref.load %arg1[%14] : memref<16xi32, #tpu.memory_space<smem>>
    %c0_i32_3 = arith.constant 0 : i32
    %16 = arith.addi %c0_i32_3, %15 : i32
    %17 = arith.index_cast %16 : i32 to index
    %c0_4 = arith.constant 0 : index
    %18 = vector.load %arg2[%17, %c0_4] : memref<88x128xf32, #tpu.memory_space<vmem>>, vector<1x32xf32>
    %c3_i32 = arith.constant 3 : i32
    %19 = arith.addi %0, %c3_i32 : i32
    %20 = arith.index_cast %19 : i32 to index
    %21 = memref.load %arg1[%20] : memref<16xi32, #tpu.memory_space<smem>>
    %c0_i32_5 = arith.constant 0 : i32
    %22 = arith.addi %c0_i32_5, %21 : i32
    %23 = arith.index_cast %22 : i32 to index
    %c0_6 = arith.constant 0 : index
    %24 = vector.load %arg2[%23, %c0_6] : memref<88x128xf32, #tpu.memory_space<vmem>>, vector<1x32xf32>
    %c4_i32 = arith.constant 4 : i32
    %25 = arith.addi %0, %c4_i32 : i32
    %26 = arith.index_cast %25 : i32 to index
    %27 = memref.load %arg1[%26] : memref<16xi32, #tpu.memory_space<smem>>
    %c0_i32_7 = arith.constant 0 : i32
    %28 = arith.addi %c0_i32_7, %27 : i32
    %29 = arith.index_cast %28 : i32 to index
    %c0_8 = arith.constant 0 : index
    %30 = vector.load %arg2[%29, %c0_8] : memref<88x128xf32, #tpu.memory_space<vmem>>, vector<1x32xf32>
    %c5_i32 = arith.constant 5 : i32
    %31 = arith.addi %0, %c5_i32 : i32
    %32 = arith.index_cast %31 : i32 to index
    %33 = memref.load %arg1[%32] : memref<16xi32, #tpu.memory_space<smem>>
    %c0_i32_9 = arith.constant 0 : i32
    %34 = arith.addi %c0_i32_9, %33 : i32
    %35 = arith.index_cast %34 : i32 to index
    %c0_10 = arith.constant 0 : index
    %36 = vector.load %arg2[%35, %c0_10] : memref<88x128xf32, #tpu.memory_space<vmem>>, vector<1x32xf32>
    %c6_i32 = arith.constant 6 : i32
    %37 = arith.addi %0, %c6_i32 : i32
    %38 = arith.index_cast %37 : i32 to index
    %39 = memref.load %arg1[%38] : memref<16xi32, #tpu.memory_space<smem>>
    %c0_i32_11 = arith.constant 0 : i32
    %40 = arith.addi %c0_i32_11, %39 : i32
    %41 = arith.index_cast %40 : i32 to index
    %c0_12 = arith.constant 0 : index
    %42 = vector.load %arg2[%41, %c0_12] : memref<88x128xf32, #tpu.memory_space<vmem>>, vector<1x32xf32>
    %c7_i32 = arith.constant 7 : i32
    %43 = arith.addi %0, %c7_i32 : i32
    %44 = arith.index_cast %43 : i32 to index
    %45 = memref.load %arg1[%44] : memref<16xi32, #tpu.memory_space<smem>>
    %c0_i32_13 = arith.constant 0 : i32
    %46 = arith.addi %c0_i32_13, %45 : i32
    %47 = arith.index_cast %46 : i32 to index
    %c0_14 = arith.constant 0 : index
    %48 = vector.load %arg2[%47, %c0_14] : memref<88x128xf32, #tpu.memory_space<vmem>>, vector<1x32xf32>
    %49 = tpu.concatenate %6, %12, %18, %24, %30, %36, %42, %48 in 0 : vector<1x32xf32>, vector<1x32xf32>, vector<1x32xf32>, vector<1x32xf32>, vector<1x32xf32>, vector<1x32xf32>, vector<1x32xf32>, vector<1x32xf32> -> vector<8x32xf32>
    %c56 = arith.constant 56 : index
    %c0_15 = arith.constant 0 : index
    %50 = vector.load %arg2[%c56, %c0_15] : memref<88x128xf32, #tpu.memory_space<vmem>>, vector<8x32xf32>
    %51 = arith.addf %49, %50 : vector<8x32xf32>
    %c64 = arith.constant 64 : index
    %c0_16 = arith.constant 0 : index
    %52 = vector.load %arg2[%c64, %c0_16] : memref<88x128xf32, #tpu.memory_space<vmem>>, vector<1x32xf32>
    %c65 = arith.constant 65 : index
    %c0_17 = arith.constant 0 : index
    %53 = vector.load %arg2[%c65, %c0_17] : memref<88x128xf32, #tpu.memory_space<vmem>>, vector<1x32xf32>
    %cst = arith.constant dense<0.000000e+00> : vector<8xf32>
    %54 = vector.multi_reduction <add>, %51, %cst [1] : vector<8x32xf32> to vector<8xf32>
    %55 = vector.shape_cast %54 : vector<8xf32> to vector<8x1xf32>
    %cst_18 = arith.constant 3.200000e+01 : f32
    %56 = vector.broadcast %cst_18 : f32 to vector<8x1xf32>
    %57 = arith.divf %55, %56 : vector<8x1xf32>
    %58 = vector.broadcast %57 : vector<8x1xf32> to vector<8x32xf32>
    %59 = arith.subf %51, %58 : vector<8x32xf32>
    %60 = arith.mulf %59, %59 : vector<8x32xf32>
    %cst_19 = arith.constant dense<0.000000e+00> : vector<8xf32>
    %61 = vector.multi_reduction <add>, %60, %cst_19 [1] : vector<8x32xf32> to vector<8xf32>
    %62 = vector.shape_cast %61 : vector<8xf32> to vector<8x1xf32>
    %cst_20 = arith.constant 3.200000e+01 : f32
    %63 = vector.broadcast %cst_20 : f32 to vector<8x1xf32>
    %64 = arith.divf %62, %63 : vector<8x1xf32>
    %65 = vector.broadcast %57 : vector<8x1xf32> to vector<8x32xf32>
    %66 = arith.subf %51, %65 : vector<8x32xf32>
    %cst_21 = arith.constant 9.99999996E-13 : f32
    %67 = vector.broadcast %cst_21 : f32 to vector<8x1xf32>
    %68 = arith.addf %64, %67 : vector<8x1xf32>
    %69 = math.rsqrt %68 : vector<8x1xf32>
    %70 = vector.broadcast %69 : vector<8x1xf32> to vector<8x32xf32>
    %71 = arith.mulf %66, %70 : vector<8x32xf32>
    %72 = vector.broadcast %52 : vector<1x32xf32> to vector<8x32xf32>
    %73 = arith.mulf %71, %72 : vector<8x32xf32>
    %74 = vector.broadcast %53 : vector<1x32xf32> to vector<8x32xf32>
    %75 = arith.addf %73, %74 : vector<8x32xf32>
    %c0_22 = arith.constant 0 : index
    %c0_23 = arith.constant 0 : index
    %c0_24 = arith.constant 0 : index
    %c0_25 = arith.constant 0 : index
    %76 = vector.load %arg3[%c0_22, %c0_23, %c0_24, %c0_25] : memref<2x6x33x16xf32, #tpu.memory_space<vmem>>, vector<1x6x32x16xf32>
    %77 = vector.shape_cast %76 : vector<1x6x32x16xf32> to vector<6x32x16xf32>
    %c0_26 = arith.constant 0 : index
    %c0_27 = arith.constant 0 : index
    %c32 = arith.constant 32 : index
    %c0_28 = arith.constant 0 : index
    %78 = vector.load %arg3[%c0_26, %c0_27, %c32, %c0_28] : memref<2x6x33x16xf32, #tpu.memory_space<vmem>>, vector<1x6x1x16xf32>
    %79 = vector.shape_cast %78 : vector<1x6x1x16xf32> to vector<6x1x16xf32>
    %80 = vector.shape_cast %75 : vector<8x32xf32> to vector<1x8x32xf32>
    %81 = vector.shape_cast %80 : vector<1x8x32xf32> to vector<1x8x32xf32>
    %82 = vector.broadcast %81 : vector<1x8x32xf32> to vector<6x8x32xf32>
    "tpu.trace_start"() <{level = 10 : i32, message = "gsd,gde->gse"}> : () -> ()
    %cst_29 = arith.constant dense<0.000000e+00> : vector<6x8x16xf32>
    %83 = tpu.matmul %82, %77, %cst_29 {dimension_numbers = #tpu.dot_dimension_numbers<[2], [1], [1], [2], [0, 0, 0, 1, 1, 2], [0], [0]>} : vector<6x8x32xf32>, vector<6x32x16xf32>, vector<6x8x16xf32> -> vector<6x8x16xf32>
    "tpu.trace_stop"() : () -> ()
    %84 = vector.broadcast %79 : vector<6x1x16xf32> to vector<6x8x16xf32>
    %85 = arith.addf %83, %84 : vector<6x8x16xf32>
    %86 = vector.extract_strided_slice %85 {offsets = [0, 0, 0], sizes = [2, 8, 16], strides = [1, 1, 1]} : vector<6x8x16xf32> to vector<2x8x16xf32>
    %87 = vector.extract_strided_slice %85 {offsets = [2, 0, 0], sizes = [2, 8, 16], strides = [1, 1, 1]} : vector<6x8x16xf32> to vector<2x8x16xf32>
    %88 = vector.extract_strided_slice %85 {offsets = [4, 0, 0], sizes = [2, 8, 16], strides = [1, 1, 1]} : vector<6x8x16xf32> to vector<2x8x16xf32>
    "tpu.trace_start"() <{level = 10 : i32, message = "hqd,hkd->hqk"}> : () -> ()
    %cst_30 = arith.constant dense<0.000000e+00> : vector<2x8x8xf32>
    %89 = tpu.matmul %86, %87, %cst_30 {dimension_numbers = #tpu.dot_dimension_numbers<[2], [2], [1], [1], [0, 0, 0, 1, 1, 1], [0], [0]>} : vector<2x8x16xf32>, vector<2x8x16xf32>, vector<2x8x8xf32> -> vector<2x8x8xf32>
    "tpu.trace_stop"() : () -> ()
    %cst_31 = arith.constant dense<0xFF800000> : vector<2x8xf32>
    %90 = vector.multi_reduction <maximumf>, %89, %cst_31 [2] : vector<2x8x8xf32> to vector<2x8xf32>
    %91 = vector.shape_cast %90 : vector<2x8xf32> to vector<2x8x1xf32>
    %92 = vector.broadcast %91 : vector<2x8x1xf32> to vector<2x8x8xf32>
    %93 = arith.subf %89, %92 : vector<2x8x8xf32>
    %94 = math.exp %93 : vector<2x8x8xf32>
    %cst_32 = arith.constant dense<0.000000e+00> : vector<2x8xf32>
    %95 = vector.multi_reduction <add>, %94, %cst_32 [2] : vector<2x8x8xf32> to vector<2x8xf32>
    %96 = vector.shape_cast %95 : vector<2x8xf32> to vector<2x8x1xf32>
    %97 = tpu.reciprocal %96 : vector<2x8x1xf32> -> vector<2x8x1xf32>
    %98 = vector.broadcast %97 : vector<2x8x1xf32> to vector<2x8x8xf32>
    %99 = arith.mulf %94, %98 : vector<2x8x8xf32>
    "tpu.trace_start"() <{level = 10 : i32, message = "hqk,hkd->hqd"}> : () -> ()
    %cst_33 = arith.constant dense<0.000000e+00> : vector<2x8x16xf32>
    %100 = tpu.matmul %99, %88, %cst_33 {dimension_numbers = #tpu.dot_dimension_numbers<[2], [1], [1], [2], [0, 0, 0, 1, 1, 2], [0], [0]>} : vector<2x8x8xf32>, vector<2x8x16xf32>, vector<2x8x16xf32> -> vector<2x8x16xf32>
    "tpu.trace_stop"() : () -> ()
    %c0_34 = arith.constant 0 : index
    %c0_35 = arith.constant 0 : index
    %c0_36 = arith.constant 0 : index
    %c0_37 = arith.constant 0 : index
    %101 = vector.load %arg4[%c0_34, %c0_35, %c0_36, %c0_37] : memref<2x2x16x32xf32, #tpu.memory_space<vmem>>, vector<1x2x16x32xf32>
    %102 = vector.shape_cast %101 : vector<1x2x16x32xf32> to vector<2x16x32xf32>
    "tpu.trace_start"() <{level = 10 : i32, message = "hqd,hdo->hqo"}> : () -> ()
    %cst_38 = arith.constant dense<0.000000e+00> : vector<2x8x32xf32>
    %103 = tpu.matmul %100, %102, %cst_38 {dimension_numbers = #tpu.dot_dimension_numbers<[2], [1], [1], [2], [0, 0, 0, 1, 1, 2], [0], [0]>} : vector<2x8x16xf32>, vector<2x16x32xf32>, vector<2x8x32xf32> -> vector<2x8x32xf32>
    "tpu.trace_stop"() : () -> ()
    %104 = vector.extract_strided_slice %103 {offsets = [0, 0, 0], sizes = [1, 8, 32], strides = [1, 1, 1]} : vector<2x8x32xf32> to vector<1x8x32xf32>
    %105 = vector.shape_cast %104 : vector<1x8x32xf32> to vector<8x32xf32>
    %106 = vector.extract_strided_slice %103 {offsets = [1, 0, 0], sizes = [1, 8, 32], strides = [1, 1, 1]} : vector<2x8x32xf32> to vector<1x8x32xf32>
    %107 = vector.shape_cast %106 : vector<1x8x32xf32> to vector<8x32xf32>
    %108 = arith.addf %105, %107 : vector<8x32xf32>
    %c72 = arith.constant 72 : index
    %c0_39 = arith.constant 0 : index
    %109 = vector.load %arg2[%c72, %c0_39] : memref<88x128xf32, #tpu.memory_space<vmem>>, vector<1x32xf32>
    %110 = vector.broadcast %109 : vector<1x32xf32> to vector<8x32xf32>
    %111 = arith.addf %108, %110 : vector<8x32xf32>
    %112 = arith.addf %111, %75 : vector<8x32xf32>
    %c73 = arith.constant 73 : index
    %c0_40 = arith.constant 0 : index
    %113 = vector.load %arg2[%c73, %c0_40] : memref<88x128xf32, #tpu.memory_space<vmem>>, vector<1x32xf32>
    %c74 = arith.constant 74 : index
    %c0_41 = arith.constant 0 : index
    %114 = vector.load %arg2[%c74, %c0_41] : memref<88x128xf32, #tpu.memory_space<vmem>>, vector<1x32xf32>
    %cst_42 = arith.constant dense<0.000000e+00> : vector<8xf32>
    %115 = vector.multi_reduction <add>, %112, %cst_42 [1] : vector<8x32xf32> to vector<8xf32>
    %116 = vector.shape_cast %115 : vector<8xf32> to vector<8x1xf32>
    %cst_43 = arith.constant 3.200000e+01 : f32
    %117 = vector.broadcast %cst_43 : f32 to vector<8x1xf32>
    %118 = arith.divf %116, %117 : vector<8x1xf32>
    %119 = vector.broadcast %118 : vector<8x1xf32> to vector<8x32xf32>
    %120 = arith.subf %112, %119 : vector<8x32xf32>
    %121 = arith.mulf %120, %120 : vector<8x32xf32>
    %cst_44 = arith.constant dense<0.000000e+00> : vector<8xf32>
    %122 = vector.multi_reduction <add>, %121, %cst_44 [1] : vector<8x32xf32> to vector<8xf32>
    %123 = vector.shape_cast %122 : vector<8xf32> to vector<8x1xf32>
    %cst_45 = arith.constant 3.200000e+01 : f32
    %124 = vector.broadcast %cst_45 : f32 to vector<8x1xf32>
    %125 = arith.divf %123, %124 : vector<8x1xf32>
    %126 = vector.broadcast %118 : vector<8x1xf32> to vector<8x32xf32>
    %127 = arith.subf %112, %126 : vector<8x32xf32>
    %cst_46 = arith.constant 9.99999996E-13 : f32
    %128 = vector.broadcast %cst_46 : f32 to vector<8x1xf32>
    %129 = arith.addf %125, %128 : vector<8x1xf32>
    %130 = math.rsqrt %129 : vector<8x1xf32>
    %131 = vector.broadcast %130 : vector<8x1xf32> to vector<8x32xf32>
    %132 = arith.mulf %127, %131 : vector<8x32xf32>
    %133 = vector.broadcast %113 : vector<1x32xf32> to vector<8x32xf32>
    %134 = arith.mulf %132, %133 : vector<8x32xf32>
    %135 = vector.broadcast %114 : vector<1x32xf32> to vector<8x32xf32>
    %136 = arith.addf %134, %135 : vector<8x32xf32>
    %c0_47 = arith.constant 0 : index
    %c0_48 = arith.constant 0 : index
    %c0_49 = arith.constant 0 : index
    %137 = vector.load %arg5[%c0_47, %c0_48, %c0_49] : memref<2x160x128xf32, #tpu.memory_space<vmem>>, vector<1x32x128xf32>
    %138 = vector.shape_cast %137 : vector<1x32x128xf32> to vector<32x128xf32>
    %c0_50 = arith.constant 0 : index
    %c32_51 = arith.constant 32 : index
    %c0_52 = arith.constant 0 : index
    %139 = vector.load %arg5[%c0_50, %c32_51, %c0_52] : memref<2x160x128xf32, #tpu.memory_space<vmem>>, vector<1x128x32xf32>
    %140 = vector.shape_cast %139 : vector<1x128x32xf32> to vector<128x32xf32>
    %cst_53 = arith.constant dense<0.000000e+00> : vector<8x128xf32>
    %141 = tpu.matmul %136, %138, %cst_53 {dimension_numbers = #tpu.dot_dimension_numbers<[1], [0], [0], [1], [0, 0, 1, 1], [], []>} : vector<8x32xf32>, vector<32x128xf32>, vector<8x128xf32> -> vector<8x128xf32>
    %c75 = arith.constant 75 : index
    %c0_54 = arith.constant 0 : index
    %142 = vector.load %arg2[%c75, %c0_54] : memref<88x128xf32, #tpu.memory_space<vmem>>, vector<1x128xf32>
    %143 = vector.broadcast %142 : vector<1x128xf32> to vector<8x128xf32>
    %144 = arith.addf %141, %143 : vector<8x128xf32>
    %cst_55 = arith.constant 5.000000e-01 : f32
    %145 = vector.broadcast %cst_55 : f32 to vector<8x128xf32>
    %146 = arith.mulf %144, %145 : vector<8x128xf32>
    %cst_56 = arith.constant 0.707106769 : f32
    %147 = vector.broadcast %cst_56 : f32 to vector<8x128xf32>
    %148 = arith.mulf %144, %147 : vector<8x128xf32>
    %cst_57 = arith.constant 0.000000e+00 : f32
    %149 = vector.broadcast %cst_57 : f32 to vector<8x128xf32>
    %150 = arith.cmpf olt, %148, %149 : vector<8x128xf32>
    %cst_58 = arith.constant -1.000000e+00 : f32
    %cst_59 = arith.constant 1.000000e+00 : f32
    %151 = vector.broadcast %cst_58 : f32 to vector<8x128xf32>
    %152 = vector.broadcast %cst_59 : f32 to vector<8x128xf32>
    %153 = arith.select %150, %151, %152 : vector<8x128xi1>, vector<8x128xf32>
    %154 = math.absf %148 : vector<8x128xf32>
    %cst_60 = arith.constant 0.327591091 : f32
    %155 = vector.broadcast %cst_60 : f32 to vector<8x128xf32>
    %156 = arith.mulf %155, %154 : vector<8x128xf32>
    %cst_61 = arith.constant 1.000000e+00 : f32
    %157 = vector.broadcast %cst_61 : f32 to vector<8x128xf32>
    %158 = arith.addf %157, %156 : vector<8x128xf32>
    %cst_62 = arith.constant 1.000000e+00 : f32
    %159 = vector.broadcast %cst_62 : f32 to vector<8x128xf32>
    %160 = arith.divf %159, %158 : vector<8x128xf32>
    %cst_63 = arith.constant 1.06140542 : f32
    %161 = vector.broadcast %cst_63 : f32 to vector<8x128xf32>
    %162 = arith.mulf %161, %160 : vector<8x128xf32>
    %cst_64 = arith.constant -1.45315206 : f32
    %163 = vector.broadcast %cst_64 : f32 to vector<8x128xf32>
    %164 = arith.addf %162, %163 : vector<8x128xf32>
    %165 = arith.mulf %164, %160 : vector<8x128xf32>
    %cst_65 = arith.constant 1.42141378 : f32
    %166 = vector.broadcast %cst_65 : f32 to vector<8x128xf32>
    %167 = arith.addf %165, %166 : vector<8x128xf32>
    %168 = arith.mulf %167, %160 : vector<8x128xf32>
    %cst_66 = arith.constant -0.284496725 : f32
    %169 = vector.broadcast %cst_66 : f32 to vector<8x128xf32>
    %170 = arith.addf %168, %169 : vector<8x128xf32>
    %171 = arith.mulf %170, %160 : vector<8x128xf32>
    %cst_67 = arith.constant 0.254829586 : f32
    %172 = vector.broadcast %cst_67 : f32 to vector<8x128xf32>
    %173 = arith.addf %171, %172 : vector<8x128xf32>
    %174 = arith.mulf %173, %160 : vector<8x128xf32>
    %cst_68 = arith.constant 0.000000e+00 : f32
    %175 = vector.broadcast %cst_68 : f32 to vector<8x128xf32>
    %176 = arith.subf %175, %154 : vector<8x128xf32>
    %177 = arith.mulf %176, %154 : vector<8x128xf32>
    %178 = math.exp %177 : vector<8x128xf32>
    %179 = arith.mulf %174, %178 : vector<8x128xf32>
    %cst_69 = arith.constant 1.000000e+00 : f32
    %180 = vector.broadcast %cst_69 : f32 to vector<8x128xf32>
    %181 = arith.subf %180, %179 : vector<8x128xf32>
    %182 = arith.mulf %153, %181 : vector<8x128xf32>
    %cst_70 = arith.constant 1.000000e+00 : f32
    %183 = vector.broadcast %cst_70 : f32 to vector<8x128xf32>
    %184 = arith.addf %183, %182 : vector<8x128xf32>
    %185 = arith.mulf %146, %184 : vector<8x128xf32>
    %cst_71 = arith.constant dense<0.000000e+00> : vector<8x32xf32>
    %186 = tpu.matmul %185, %140, %cst_71 {dimension_numbers = #tpu.dot_dimension_numbers<[1], [0], [0], [1], [0, 0, 1, 1], [], []>} : vector<8x128xf32>, vector<128x32xf32>, vector<8x32xf32> -> vector<8x32xf32>
    %c76 = arith.constant 76 : index
    %c0_72 = arith.constant 0 : index
    %187 = vector.load %arg2[%c76, %c0_72] : memref<88x128xf32, #tpu.memory_space<vmem>>, vector<1x32xf32>
    %188 = vector.broadcast %187 : vector<1x32xf32> to vector<8x32xf32>
    %189 = arith.addf %186, %188 : vector<8x32xf32>
    %190 = arith.addf %189, %136 : vector<8x32xf32>
    %c77 = arith.constant 77 : index
    %c0_73 = arith.constant 0 : index
    %191 = vector.load %arg2[%c77, %c0_73] : memref<88x128xf32, #tpu.memory_space<vmem>>, vector<1x32xf32>
    %c78 = arith.constant 78 : index
    %c0_74 = arith.constant 0 : index
    %192 = vector.load %arg2[%c78, %c0_74] : memref<88x128xf32, #tpu.memory_space<vmem>>, vector<1x32xf32>
    %cst_75 = arith.constant dense<0.000000e+00> : vector<8xf32>
    %193 = vector.multi_reduction <add>, %190, %cst_75 [1] : vector<8x32xf32> to vector<8xf32>
    %194 = vector.shape_cast %193 : vector<8xf32> to vector<8x1xf32>
    %cst_76 = arith.constant 3.200000e+01 : f32
    %195 = vector.broadcast %cst_76 : f32 to vector<8x1xf32>
    %196 = arith.divf %194, %195 : vector<8x1xf32>
    %197 = vector.broadcast %196 : vector<8x1xf32> to vector<8x32xf32>
    %198 = arith.subf %190, %197 : vector<8x32xf32>
    %199 = arith.mulf %198, %198 : vector<8x32xf32>
    %cst_77 = arith.constant dense<0.000000e+00> : vector<8xf32>
    %200 = vector.multi_reduction <add>, %199, %cst_77 [1] : vector<8x32xf32> to vector<8xf32>
    %201 = vector.shape_cast %200 : vector<8xf32> to vector<8x1xf32>
    %cst_78 = arith.constant 3.200000e+01 : f32
    %202 = vector.broadcast %cst_78 : f32 to vector<8x1xf32>
    %203 = arith.divf %201, %202 : vector<8x1xf32>
    %204 = vector.broadcast %196 : vector<8x1xf32> to vector<8x32xf32>
    %205 = arith.subf %190, %204 : vector<8x32xf32>
    %cst_79 = arith.constant 9.99999996E-13 : f32
    %206 = vector.broadcast %cst_79 : f32 to vector<8x1xf32>
    %207 = arith.addf %203, %206 : vector<8x1xf32>
    %208 = math.rsqrt %207 : vector<8x1xf32>
    %209 = vector.broadcast %208 : vector<8x1xf32> to vector<8x32xf32>
    %210 = arith.mulf %205, %209 : vector<8x32xf32>
    %211 = vector.broadcast %191 : vector<1x32xf32> to vector<8x32xf32>
    %212 = arith.mulf %210, %211 : vector<8x32xf32>
    %213 = vector.broadcast %192 : vector<1x32xf32> to vector<8x32xf32>
    %214 = arith.addf %212, %213 : vector<8x32xf32>
    %c1 = arith.constant 1 : index
    %c0_80 = arith.constant 0 : index
    %c0_81 = arith.constant 0 : index
    %c0_82 = arith.constant 0 : index
    %215 = vector.load %arg3[%c1, %c0_80, %c0_81, %c0_82] : memref<2x6x33x16xf32, #tpu.memory_space<vmem>>, vector<1x6x32x16xf32>
    %216 = vector.shape_cast %215 : vector<1x6x32x16xf32> to vector<6x32x16xf32>
    %c1_83 = arith.constant 1 : index
    %c0_84 = arith.constant 0 : index
    %c32_85 = arith.constant 32 : index
    %c0_86 = arith.constant 0 : index
    %217 = vector.load %arg3[%c1_83, %c0_84, %c32_85, %c0_86] : memref<2x6x33x16xf32, #tpu.memory_space<vmem>>, vector<1x6x1x16xf32>
    %218 = vector.shape_cast %217 : vector<1x6x1x16xf32> to vector<6x1x16xf32>
    %219 = vector.shape_cast %214 : vector<8x32xf32> to vector<1x8x32xf32>
    %220 = vector.shape_cast %219 : vector<1x8x32xf32> to vector<1x8x32xf32>
    %221 = vector.broadcast %220 : vector<1x8x32xf32> to vector<6x8x32xf32>
    "tpu.trace_start"() <{level = 10 : i32, message = "gsd,gde->gse"}> : () -> ()
    %cst_87 = arith.constant dense<0.000000e+00> : vector<6x8x16xf32>
    %222 = tpu.matmul %221, %216, %cst_87 {dimension_numbers = #tpu.dot_dimension_numbers<[2], [1], [1], [2], [0, 0, 0, 1, 1, 2], [0], [0]>} : vector<6x8x32xf32>, vector<6x32x16xf32>, vector<6x8x16xf32> -> vector<6x8x16xf32>
    "tpu.trace_stop"() : () -> ()
    %223 = vector.broadcast %218 : vector<6x1x16xf32> to vector<6x8x16xf32>
    %224 = arith.addf %222, %223 : vector<6x8x16xf32>
    %225 = vector.extract_strided_slice %224 {offsets = [0, 0, 0], sizes = [2, 8, 16], strides = [1, 1, 1]} : vector<6x8x16xf32> to vector<2x8x16xf32>
    %226 = vector.extract_strided_slice %224 {offsets = [2, 0, 0], sizes = [2, 8, 16], strides = [1, 1, 1]} : vector<6x8x16xf32> to vector<2x8x16xf32>
    %227 = vector.extract_strided_slice %224 {offsets = [4, 0, 0], sizes = [2, 8, 16], strides = [1, 1, 1]} : vector<6x8x16xf32> to vector<2x8x16xf32>
    "tpu.trace_start"() <{level = 10 : i32, message = "hqd,hkd->hqk"}> : () -> ()
    %cst_88 = arith.constant dense<0.000000e+00> : vector<2x8x8xf32>
    %228 = tpu.matmul %225, %226, %cst_88 {dimension_numbers = #tpu.dot_dimension_numbers<[2], [2], [1], [1], [0, 0, 0, 1, 1, 1], [0], [0]>} : vector<2x8x16xf32>, vector<2x8x16xf32>, vector<2x8x8xf32> -> vector<2x8x8xf32>
    "tpu.trace_stop"() : () -> ()
    %cst_89 = arith.constant dense<0xFF800000> : vector<2x8xf32>
    %229 = vector.multi_reduction <maximumf>, %228, %cst_89 [2] : vector<2x8x8xf32> to vector<2x8xf32>
    %230 = vector.shape_cast %229 : vector<2x8xf32> to vector<2x8x1xf32>
    %231 = vector.broadcast %230 : vector<2x8x1xf32> to vector<2x8x8xf32>
    %232 = arith.subf %228, %231 : vector<2x8x8xf32>
    %233 = math.exp %232 : vector<2x8x8xf32>
    %cst_90 = arith.constant dense<0.000000e+00> : vector<2x8xf32>
    %234 = vector.multi_reduction <add>, %233, %cst_90 [2] : vector<2x8x8xf32> to vector<2x8xf32>
    %235 = vector.shape_cast %234 : vector<2x8xf32> to vector<2x8x1xf32>
    %236 = tpu.reciprocal %235 : vector<2x8x1xf32> -> vector<2x8x1xf32>
    %237 = vector.broadcast %236 : vector<2x8x1xf32> to vector<2x8x8xf32>
    %238 = arith.mulf %233, %237 : vector<2x8x8xf32>
    "tpu.trace_start"() <{level = 10 : i32, message = "hqk,hkd->hqd"}> : () -> ()
    %cst_91 = arith.constant dense<0.000000e+00> : vector<2x8x16xf32>
    %239 = tpu.matmul %238, %227, %cst_91 {dimension_numbers = #tpu.dot_dimension_numbers<[2], [1], [1], [2], [0, 0, 0, 1, 1, 2], [0], [0]>} : vector<2x8x8xf32>, vector<2x8x16xf32>, vector<2x8x16xf32> -> vector<2x8x16xf32>
    "tpu.trace_stop"() : () -> ()
    %c1_92 = arith.constant 1 : index
    %c0_93 = arith.constant 0 : index
    %c0_94 = arith.constant 0 : index
    %c0_95 = arith.constant 0 : index
    %240 = vector.load %arg4[%c1_92, %c0_93, %c0_94, %c0_95] : memref<2x2x16x32xf32, #tpu.memory_space<vmem>>, vector<1x2x16x32xf32>
    %241 = vector.shape_cast %240 : vector<1x2x16x32xf32> to vector<2x16x32xf32>
    "tpu.trace_start"() <{level = 10 : i32, message = "hqd,hdo->hqo"}> : () -> ()
    %cst_96 = arith.constant dense<0.000000e+00> : vector<2x8x32xf32>
    %242 = tpu.matmul %239, %241, %cst_96 {dimension_numbers = #tpu.dot_dimension_numbers<[2], [1], [1], [2], [0, 0, 0, 1, 1, 2], [0], [0]>} : vector<2x8x16xf32>, vector<2x16x32xf32>, vector<2x8x32xf32> -> vector<2x8x32xf32>
    "tpu.trace_stop"() : () -> ()
    %243 = vector.extract_strided_slice %242 {offsets = [0, 0, 0], sizes = [1, 8, 32], strides = [1, 1, 1]} : vector<2x8x32xf32> to vector<1x8x32xf32>
    %244 = vector.shape_cast %243 : vector<1x8x32xf32> to vector<8x32xf32>
    %245 = vector.extract_strided_slice %242 {offsets = [1, 0, 0], sizes = [1, 8, 32], strides = [1, 1, 1]} : vector<2x8x32xf32> to vector<1x8x32xf32>
    %246 = vector.shape_cast %245 : vector<1x8x32xf32> to vector<8x32xf32>
    %247 = arith.addf %244, %246 : vector<8x32xf32>
    %c80 = arith.constant 80 : index
    %c0_97 = arith.constant 0 : index
    %248 = vector.load %arg2[%c80, %c0_97] : memref<88x128xf32, #tpu.memory_space<vmem>>, vector<1x32xf32>
    %249 = vector.broadcast %248 : vector<1x32xf32> to vector<8x32xf32>
    %250 = arith.addf %247, %249 : vector<8x32xf32>
    %251 = arith.addf %250, %214 : vector<8x32xf32>
    %c81 = arith.constant 81 : index
    %c0_98 = arith.constant 0 : index
    %252 = vector.load %arg2[%c81, %c0_98] : memref<88x128xf32, #tpu.memory_space<vmem>>, vector<1x32xf32>
    %c82 = arith.constant 82 : index
    %c0_99 = arith.constant 0 : index
    %253 = vector.load %arg2[%c82, %c0_99] : memref<88x128xf32, #tpu.memory_space<vmem>>, vector<1x32xf32>
    %cst_100 = arith.constant dense<0.000000e+00> : vector<8xf32>
    %254 = vector.multi_reduction <add>, %251, %cst_100 [1] : vector<8x32xf32> to vector<8xf32>
    %255 = vector.shape_cast %254 : vector<8xf32> to vector<8x1xf32>
    %cst_101 = arith.constant 3.200000e+01 : f32
    %256 = vector.broadcast %cst_101 : f32 to vector<8x1xf32>
    %257 = arith.divf %255, %256 : vector<8x1xf32>
    %258 = vector.broadcast %257 : vector<8x1xf32> to vector<8x32xf32>
    %259 = arith.subf %251, %258 : vector<8x32xf32>
    %260 = arith.mulf %259, %259 : vector<8x32xf32>
    %cst_102 = arith.constant dense<0.000000e+00> : vector<8xf32>
    %261 = vector.multi_reduction <add>, %260, %cst_102 [1] : vector<8x32xf32> to vector<8xf32>
    %262 = vector.shape_cast %261 : vector<8xf32> to vector<8x1xf32>
    %cst_103 = arith.constant 3.200000e+01 : f32
    %263 = vector.broadcast %cst_103 : f32 to vector<8x1xf32>
    %264 = arith.divf %262, %263 : vector<8x1xf32>
    %265 = vector.broadcast %257 : vector<8x1xf32> to vector<8x32xf32>
    %266 = arith.subf %251, %265 : vector<8x32xf32>
    %cst_104 = arith.constant 9.99999996E-13 : f32
    %267 = vector.broadcast %cst_104 : f32 to vector<8x1xf32>
    %268 = arith.addf %264, %267 : vector<8x1xf32>
    %269 = math.rsqrt %268 : vector<8x1xf32>
    %270 = vector.broadcast %269 : vector<8x1xf32> to vector<8x32xf32>
    %271 = arith.mulf %266, %270 : vector<8x32xf32>
    %272 = vector.broadcast %252 : vector<1x32xf32> to vector<8x32xf32>
    %273 = arith.mulf %271, %272 : vector<8x32xf32>
    %274 = vector.broadcast %253 : vector<1x32xf32> to vector<8x32xf32>
    %275 = arith.addf %273, %274 : vector<8x32xf32>
    %c1_105 = arith.constant 1 : index
    %c0_106 = arith.constant 0 : index
    %c0_107 = arith.constant 0 : index
    %276 = vector.load %arg5[%c1_105, %c0_106, %c0_107] : memref<2x160x128xf32, #tpu.memory_space<vmem>>, vector<1x32x128xf32>
    %277 = vector.shape_cast %276 : vector<1x32x128xf32> to vector<32x128xf32>
    %c1_108 = arith.constant 1 : index
    %c32_109 = arith.constant 32 : index
    %c0_110 = arith.constant 0 : index
    %278 = vector.load %arg5[%c1_108, %c32_109, %c0_110] : memref<2x160x128xf32, #tpu.memory_space<vmem>>, vector<1x128x32xf32>
    %279 = vector.shape_cast %278 : vector<1x128x32xf32> to vector<128x32xf32>
    %cst_111 = arith.constant dense<0.000000e+00> : vector<8x128xf32>
    %280 = tpu.matmul %275, %277, %cst_111 {dimension_numbers = #tpu.dot_dimension_numbers<[1], [0], [0], [1], [0, 0, 1, 1], [], []>} : vector<8x32xf32>, vector<32x128xf32>, vector<8x128xf32> -> vector<8x128xf32>
    %c83 = arith.constant 83 : index
    %c0_112 = arith.constant 0 : index
    %281 = vector.load %arg2[%c83, %c0_112] : memref<88x128xf32, #tpu.memory_space<vmem>>, vector<1x128xf32>
    %282 = vector.broadcast %281 : vector<1x128xf32> to vector<8x128xf32>
    %283 = arith.addf %280, %282 : vector<8x128xf32>
    %cst_113 = arith.constant 5.000000e-01 : f32
    %284 = vector.broadcast %cst_113 : f32 to vector<8x128xf32>
    %285 = arith.mulf %283, %284 : vector<8x128xf32>
    %cst_114 = arith.constant 0.707106769 : f32
    %286 = vector.broadcast %cst_114 : f32 to vector<8x128xf32>
    %287 = arith.mulf %283, %286 : vector<8x128xf32>
    %cst_115 = arith.constant 0.000000e+00 : f32
    %288 = vector.broadcast %cst_115 : f32 to vector<8x128xf32>
    %289 = arith.cmpf olt, %287, %288 : vector<8x128xf32>
    %cst_116 = arith.constant -1.000000e+00 : f32
    %cst_117 = arith.constant 1.000000e+00 : f32
    %290 = vector.broadcast %cst_116 : f32 to vector<8x128xf32>
    %291 = vector.broadcast %cst_117 : f32 to vector<8x128xf32>
    %292 = arith.select %289, %290, %291 : vector<8x128xi1>, vector<8x128xf32>
    %293 = math.absf %287 : vector<8x128xf32>
    %cst_118 = arith.constant 0.327591091 : f32
    %294 = vector.broadcast %cst_118 : f32 to vector<8x128xf32>
    %295 = arith.mulf %294, %293 : vector<8x128xf32>
    %cst_119 = arith.constant 1.000000e+00 : f32
    %296 = vector.broadcast %cst_119 : f32 to vector<8x128xf32>
    %297 = arith.addf %296, %295 : vector<8x128xf32>
    %cst_120 = arith.constant 1.000000e+00 : f32
    %298 = vector.broadcast %cst_120 : f32 to vector<8x128xf32>
    %299 = arith.divf %298, %297 : vector<8x128xf32>
    %cst_121 = arith.constant 1.06140542 : f32
    %300 = vector.broadcast %cst_121 : f32 to vector<8x128xf32>
    %301 = arith.mulf %300, %299 : vector<8x128xf32>
    %cst_122 = arith.constant -1.45315206 : f32
    %302 = vector.broadcast %cst_122 : f32 to vector<8x128xf32>
    %303 = arith.addf %301, %302 : vector<8x128xf32>
    %304 = arith.mulf %303, %299 : vector<8x128xf32>
    %cst_123 = arith.constant 1.42141378 : f32
    %305 = vector.broadcast %cst_123 : f32 to vector<8x128xf32>
    %306 = arith.addf %304, %305 : vector<8x128xf32>
    %307 = arith.mulf %306, %299 : vector<8x128xf32>
    %cst_124 = arith.constant -0.284496725 : f32
    %308 = vector.broadcast %cst_124 : f32 to vector<8x128xf32>
    %309 = arith.addf %307, %308 : vector<8x128xf32>
    %310 = arith.mulf %309, %299 : vector<8x128xf32>
    %cst_125 = arith.constant 0.254829586 : f32
    %311 = vector.broadcast %cst_125 : f32 to vector<8x128xf32>
    %312 = arith.addf %310, %311 : vector<8x128xf32>
    %313 = arith.mulf %312, %299 : vector<8x128xf32>
    %cst_126 = arith.constant 0.000000e+00 : f32
    %314 = vector.broadcast %cst_126 : f32 to vector<8x128xf32>
    %315 = arith.subf %314, %293 : vector<8x128xf32>
    %316 = arith.mulf %315, %293 : vector<8x128xf32>
    %317 = math.exp %316 : vector<8x128xf32>
    %318 = arith.mulf %313, %317 : vector<8x128xf32>
    %cst_127 = arith.constant 1.000000e+00 : f32
    %319 = vector.broadcast %cst_127 : f32 to vector<8x128xf32>
    %320 = arith.subf %319, %318 : vector<8x128xf32>
    %321 = arith.mulf %292, %320 : vector<8x128xf32>
    %cst_128 = arith.constant 1.000000e+00 : f32
    %322 = vector.broadcast %cst_128 : f32 to vector<8x128xf32>
    %323 = arith.addf %322, %321 : vector<8x128xf32>
    %324 = arith.mulf %285, %323 : vector<8x128xf32>
    %cst_129 = arith.constant dense<0.000000e+00> : vector<8x32xf32>
    %325 = tpu.matmul %324, %279, %cst_129 {dimension_numbers = #tpu.dot_dimension_numbers<[1], [0], [0], [1], [0, 0, 1, 1], [], []>} : vector<8x128xf32>, vector<128x32xf32>, vector<8x32xf32> -> vector<8x32xf32>
    %c84 = arith.constant 84 : index
    %c0_130 = arith.constant 0 : index
    %326 = vector.load %arg2[%c84, %c0_130] : memref<88x128xf32, #tpu.memory_space<vmem>>, vector<1x32xf32>
    %327 = vector.broadcast %326 : vector<1x32xf32> to vector<8x32xf32>
    %328 = arith.addf %325, %327 : vector<8x32xf32>
    %329 = arith.addf %328, %275 : vector<8x32xf32>
    %c85 = arith.constant 85 : index
    %c0_131 = arith.constant 0 : index
    %330 = vector.load %arg2[%c85, %c0_131] : memref<88x128xf32, #tpu.memory_space<vmem>>, vector<1x32xf32>
    %c86 = arith.constant 86 : index
    %c0_132 = arith.constant 0 : index
    %331 = vector.load %arg2[%c86, %c0_132] : memref<88x128xf32, #tpu.memory_space<vmem>>, vector<1x32xf32>
    %cst_133 = arith.constant dense<0.000000e+00> : vector<8xf32>
    %332 = vector.multi_reduction <add>, %329, %cst_133 [1] : vector<8x32xf32> to vector<8xf32>
    %333 = vector.shape_cast %332 : vector<8xf32> to vector<8x1xf32>
    %cst_134 = arith.constant 3.200000e+01 : f32
    %334 = vector.broadcast %cst_134 : f32 to vector<8x1xf32>
    %335 = arith.divf %333, %334 : vector<8x1xf32>
    %336 = vector.broadcast %335 : vector<8x1xf32> to vector<8x32xf32>
    %337 = arith.subf %329, %336 : vector<8x32xf32>
    %338 = arith.mulf %337, %337 : vector<8x32xf32>
    %cst_135 = arith.constant dense<0.000000e+00> : vector<8xf32>
    %339 = vector.multi_reduction <add>, %338, %cst_135 [1] : vector<8x32xf32> to vector<8xf32>
    %340 = vector.shape_cast %339 : vector<8xf32> to vector<8x1xf32>
    %cst_136 = arith.constant 3.200000e+01 : f32
    %341 = vector.broadcast %cst_136 : f32 to vector<8x1xf32>
    %342 = arith.divf %340, %341 : vector<8x1xf32>
    %343 = vector.broadcast %335 : vector<8x1xf32> to vector<8x32xf32>
    %344 = arith.subf %329, %343 : vector<8x32xf32>
    %cst_137 = arith.constant 9.99999996E-13 : f32
    %345 = vector.broadcast %cst_137 : f32 to vector<8x1xf32>
    %346 = arith.addf %342, %345 : vector<8x1xf32>
    %347 = math.rsqrt %346 : vector<8x1xf32>
    %348 = vector.broadcast %347 : vector<8x1xf32> to vector<8x32xf32>
    %349 = arith.mulf %344, %348 : vector<8x32xf32>
    %350 = vector.broadcast %330 : vector<1x32xf32> to vector<8x32xf32>
    %351 = arith.mulf %349, %350 : vector<8x32xf32>
    %352 = vector.broadcast %331 : vector<1x32xf32> to vector<8x32xf32>
    %353 = arith.addf %351, %352 : vector<8x32xf32>
    %354 = vector.shape_cast %353 : vector<8x32xf32> to vector<1x8x32xf32>
    %c0_138 = arith.constant 0 : index
    %c0_139 = arith.constant 0 : index
    %c0_140 = arith.constant 0 : index
    %355 = vector.load %arg6[%c0_138, %c0_139, %c0_140] : memref<1x8x32xf32, #tpu.memory_space<vmem>>, vector<1x8x32xf32>
    tpu.vector_store %arg6[%c0_138, %c0_139, %c0_140], %354 {strides = array<i32>} : memref<1x8x32xf32, #tpu.memory_space<vmem>>, vector<1x8x32xf32>,
    return
  }
  func.func @transform_0(%arg0: i32, %arg1: memref<16xi32, #tpu.memory_space<smem>>) -> (i32, i32) {
    %c0_i32 = arith.constant 0 : i32
    %c0_i32_0 = arith.constant 0 : i32
    %c0_i32_1 = arith.constant 0 : i32
    return %c0_i32, %c0_i32_0 : i32, i32
  }
  func.func @transform_1(%arg0: i32, %arg1: memref<16xi32, #tpu.memory_space<smem>>) -> (i32, i32, i32, i32) {
    %c0_i32 = arith.constant 0 : i32
    %c0_i32_0 = arith.constant 0 : i32
    %c0_i32_1 = arith.constant 0 : i32
    %c0_i32_2 = arith.constant 0 : i32
    %c0_i32_3 = arith.constant 0 : i32
    return %c0_i32, %c0_i32_0, %c0_i32_1, %c0_i32_2 : i32, i32, i32, i32
  }
  func.func @transform_2(%arg0: i32, %arg1: memref<16xi32, #tpu.memory_space<smem>>) -> (i32, i32, i32, i32) {
    %c0_i32 = arith.constant 0 : i32
    %c0_i32_0 = arith.constant 0 : i32
    %c0_i32_1 = arith.constant 0 : i32
    %c0_i32_2 = arith.constant 0 : i32
    %c0_i32_3 = arith.constant 0 : i32
    return %c0_i32, %c0_i32_0, %c0_i32_1, %c0_i32_2 : i32, i32, i32, i32
  }
  func.func @transform_3(%arg0: i32, %arg1: memref<16xi32, #tpu.memory_space<smem>>) -> (i32, i32, i32) {
    %c0_i32 = arith.constant 0 : i32
    %c0_i32_0 = arith.constant 0 : i32
    %c0_i32_1 = arith.constant 0 : i32
    %c0_i32_2 = arith.constant 0 : i32
    return %c0_i32, %c0_i32_0, %c0_i32_1 : i32, i32, i32
  }
  func.func @transform_4(%arg0: i32, %arg1: memref<16xi32, #tpu.memory_space<smem>>) -> (i32, i32, i32) {
    %c0_i32 = arith.constant 0 : i32
    %c0_i32_0 = arith.constant 0 : i32
    %c0_i32_1 = arith.constant 0 : i32
    return %arg0, %c0_i32, %c0_i32_0 : i32, i32, i32
  }
}

</mosaic_0001>

<llo_original>
// kernel: tpu_custom_call.1
$region0: #{tpu_custom_call.1}
  #allocation0 [shape = 'u32[]', space=smem, size = 0x4, offset = 0x4, fixed_abs, tag = 'smem constant byte address 0x4 - core index']
  #allocation1 [shape = 'u32[144,128]{1,0:T(1,128)}', space=vmem, size = 0x12000, scoped, tag = 'internal scratch']
  #allocation2 [shape = 's32[1]{0}', space=sflag, size = 0x4, scoped, tag = 'scoped memory for tpu_custom_call.1']
  #allocation3 [shape = 'u8[512]{0}', space=smem, size = 0x200, scoped, tag = 'prefetched SMEM operand 0']
  %s0 = inlined_call_operand.vmem [shape: s32[16], index: 0, kind: input, shape index: {}]
  %s1 = inlined_call_operand.vmem [shape: f32[88,128], index: 1, kind: input, shape index: {}]
  %s2 = inlined_call_operand.vmem [shape: f32[2,6,33,16], index: 2, kind: input, shape index: {}]
  %s3 = inlined_call_operand.vmem [shape: f32[2,2,16,32], index: 3, kind: input, shape index: {}]
  %s4 = inlined_call_operand.vmem [shape: f32[2,160,128], index: 4, kind: input, shape index: {}]
  %s5 = inlined_call_operand.hbm [shape: f32[2,8,32], index: 5, kind: output, shape index: {}]
  %s6 = sld [smem:[#allocation0]]
  $region49: #{tpu_custom_call.1} parent=0
    _
  %s8 = ssub.s32 1, %s6
  %s9 = scalar_select 0, %s8, %s6
  %s10 = sshll.u32 %s0, 4
  %s11 = int_to_ptr.vmem [resolvable:$true] %s10
  %13 = dma.vmem_to_smem %s11, 16, [#allocation3], [#allocation2]
  %14 = dma.done [#allocation2], 16
  %15 = sfence
  $region1: #{tpu_custom_call.1} parent=0
    #allocation4 [shape = 'u8[8192]{0}', space=vmem, size = 0x2000, scoped, tag = 'output window, operand 0']
    #allocation5 [shape = 's32[2]{0}', space=sflag, size = 0x8, scoped, tag = 'scoped memory for tpu_custom_call.1']
    %16 = vsyncpa [#allocation5], 0
    %s17 = scalar_lea.sflag [#allocation5], 1
    %18 = vsyncpa %s17, 0
    loop: start=0, step=1, limit=4
    $region2: #{tpu_custom_call.1} parent=1 // loop_pre_header
      _
    $region3: #{tpu_custom_call.1} parent=1 // loop_header
      %s20 = sphi 0, %s24
      %p21 = scmp.ge.s32.totalorder %s20, 4
      %s28 = sphi 0, %s28
      %s30 = sphi 0, %s28
      %s31 = sphi 0, %s30
      %s45 = sphi 0, %s31
      %s49 = sphi 0, %s49
      %s51 = sphi 0, %s49
      %s52 = sphi 0, %s51
      %s66 = sphi 0, %s52
      %s70 = sphi 0, %s70
      %s72 = sphi 0, %s70
      %s73 = sphi 0, %s72
      %s87 = sphi 0, %s73
      %s91 = sphi 0, %s91
      %s93 = sphi 0, %s91
      %s94 = sphi 0, %s93
      %s108 = sphi 0, %s94
      %s114 = sphi 0, %s116
      %s117 = sphi 0, %s114
      %s118 = sphi 0, %s117
      %s134 = sphi 0, %s118
    $region4: #{tpu_custom_call.1} parent=1 // loop_header_branch
      %23 = sbr.rel (%p21) target = $region8
    $region5: #{tpu_custom_call.1} parent=1 // loop_body
      %s25 = ssub.s32 %s20, 1
      %s26 = ssub.s32 %s20, 2
      %s27 = sadd.s32 %s20, 1
      %s29 = sadd.s32 %s28, 1
      %p32 = scmp.eq.s32.totalorder %s20, 1
      %p33 = scmp.ne.s32.totalorder %s28, %s30
      %p34 = scmp.eq.s32.totalorder %s20, 0
      %p35 = por %p33, %p34
      %p36 = scmp.ne.s32.totalorder %s28, %s30
      %p37 = scmp.eq.s32.totalorder %s25, 1
      %p38 = por %p36, %p37
      %p39 = scmp.ne.s32.totalorder %s30, %s31
      %p40 = scmp.eq.s32.totalorder %s25, 0
      %p41 = por %p39, %p40
      %p42 = scmp.ne.s32.totalorder %s30, %s31
      %p43 = scmp.eq.s32.totalorder %s26, 1
      %p44 = por %p42, %p43
      %p46 = scmp.ne.s32.totalorder %s31, %s45
      %p47 = scmp.eq.s32.totalorder %s26, 0
      %p48 = por %p46, %p47
      %s50 = sadd.s32 %s49, 1
      %p53 = scmp.eq.s32.totalorder %s20, 1
      %p54 = scmp.ne.s32.totalorder %s49, %s51
      %p55 = scmp.eq.s32.totalorder %s20, 0
      %p56 = por %p54, %p55
      %p57 = scmp.ne.s32.totalorder %s49, %s51
      %p58 = scmp.eq.s32.totalorder %s25, 1
      %p59 = por %p57, %p58
      %p60 = scmp.ne.s32.totalorder %s51, %s52
      %p61 = scmp.eq.s32.totalorder %s25, 0
      %p62 = por %p60, %p61
      %p63 = scmp.ne.s32.totalorder %s51, %s52
      %p64 = scmp.eq.s32.totalorder %s26, 1
      %p65 = por %p63, %p64
      %p67 = scmp.ne.s32.totalorder %s52, %s66
      %p68 = scmp.eq.s32.totalorder %s26, 0
      %p69 = por %p67, %p68
      %s71 = sadd.s32 %s70, 1
      %p74 = scmp.eq.s32.totalorder %s20, 1
      %p75 = scmp.ne.s32.totalorder %s70, %s72
      %p76 = scmp.eq.s32.totalorder %s20, 0
      %p77 = por %p75, %p76
      %p78 = scmp.ne.s32.totalorder %s70, %s72
      %p79 = scmp.eq.s32.totalorder %s25, 1
      %p80 = por %p78, %p79
      %p81 = scmp.ne.s32.totalorder %s72, %s73
      %p82 = scmp.eq.s32.totalorder %s25, 0
      %p83 = por %p81, %p82
      %p84 = scmp.ne.s32.totalorder %s72, %s73
      %p85 = scmp.eq.s32.totalorder %s26, 1
      %p86 = por %p84, %p85
      %p88 = scmp.ne.s32.totalorder %s73, %s87
      %p89 = scmp.eq.s32.totalorder %s26, 0
      %p90 = por %p88, %p89
      %s92 = sadd.s32 %s91, 1
      %p95 = scmp.eq.s32.totalorder %s20, 1
      %p96 = scmp.ne.s32.totalorder %s91, %s93
      %p97 = scmp.eq.s32.totalorder %s20, 0
      %p98 = por %p96, %p97
      %p99 = scmp.ne.s32.totalorder %s91, %s93
      %p100 = scmp.eq.s32.totalorder %s25, 1
      %p101 = por %p99, %p100
      %p102 = scmp.ne.s32.totalorder %s93, %s94
      %p103 = scmp.eq.s32.totalorder %s25, 0
      %p104 = por %p102, %p103
      %p105 = scmp.ne.s32.totalorder %s93, %s94
      %p106 = scmp.eq.s32.totalorder %s26, 1
      %p107 = por %p105, %p106
      %p109 = scmp.ne.s32.totalorder %s94, %s108
      %p110 = scmp.eq.s32.totalorder %s26, 0
      %p111 = por %p109, %p110
      %s112 = ssub.s32 %s20, %s27
      %p113 = scmp.eq.s32.totalorder %s112, 0
      %s115 = sadd.s32 %s114, 1
      %s116 = scalar_select %p113, %s114, %s115
      %p119 = pneg %p113
      %p120 = scmp.eq.s32.totalorder %s20, 1
      %p121 = por %p119, %p120
      %p122 = scmp.ne.s32.totalorder %s114, %s117
      %p123 = scmp.eq.s32.totalorder %s20, 0
      %p124 = por %p122, %p123
      %p125 = scmp.ne.s32.totalorder %s114, %s117
      %p126 = scmp.eq.s32.totalorder %s25, 1
      %p127 = por %p125, %p126
      %p128 = scmp.ne.s32.totalorder %s117, %s118
      %p129 = scmp.eq.s32.totalorder %s25, 0
      %p130 = por %p128, %p129
      %p131 = scmp.ne.s32.totalorder %s117, %s118
      %p132 = scmp.eq.s32.totalorder %s26, 1
      %p133 = por %p131, %p132
      %p135 = scmp.ne.s32.totalorder %s118, %s134
      %p136 = scmp.eq.s32.totalorder %s26, 0
      %p137 = por %p135, %p136
      %p138 = scmp.le.s32.totalorder 1, %s20
      %p139 = scmp.lt.s32.totalorder %s20, 3
      %p140 = pnand %p138, %p139
      %p141 = pneg %p140
      // Predicated region
      $region9: #{tpu_custom_call.1} parent=5 // pred_check
        _
      $region10: #{tpu_custom_call.1} parent=5 // pred_check_branch
        %143 = sbr.rel (%p140) target = $region12
      $region11: #{tpu_custom_call.1} parent=5 // pred_region
        %s144 = ssub.s32 %s20, 1
        // Predicated region
        $region13: #{tpu_custom_call.1} parent=11 // pred_check
          %p145 = pneg %p41
        $region14: #{tpu_custom_call.1} parent=11 // pred_check_branch
          %147 = sbr.rel (%p145) target = $region16
        $region15: #{tpu_custom_call.1} parent=11 // pred_region
          _
        $region16: #{tpu_custom_call.1} parent=11 // pred_fallthru
          _
        // Predicated region
        $region17: #{tpu_custom_call.1} parent=11 // pred_check
          %p148 = pneg %p62
        $region18: #{tpu_custom_call.1} parent=11 // pred_check_branch
          %150 = sbr.rel (%p148) target = $region20
        $region19: #{tpu_custom_call.1} parent=11 // pred_region
          _
        $region20: #{tpu_custom_call.1} parent=11 // pred_fallthru
          _
        // Predicated region
        $region21: #{tpu_custom_call.1} parent=11 // pred_check
          %p151 = pneg %p83
        $region22: #{tpu_custom_call.1} parent=11 // pred_check_branch
          %153 = sbr.rel (%p151) target = $region24
        $region23: #{tpu_custom_call.1} parent=11 // pred_region
          _
        $region24: #{tpu_custom_call.1} parent=11 // pred_fallthru
          _
        // Predicated region
        $region25: #{tpu_custom_call.1} parent=11 // pred_check
          %p154 = pneg %p104
        $region26: #{tpu_custom_call.1} parent=11 // pred_check_branch
          %156 = sbr.rel (%p154) target = $region28
        $region27: #{tpu_custom_call.1} parent=11 // pred_region
          _
        $region28: #{tpu_custom_call.1} parent=11 // pred_fallthru
          _
      $region12: #{tpu_custom_call.1} parent=5 // pred_fallthru
        _
      %p157 = scmp.lt.s32.totalorder %s20, 2
      // Predicated region
      $region29: #{tpu_custom_call.1} parent=5 // pred_check
        %p158 = pneg %p157
      $region30: #{tpu_custom_call.1} parent=5 // pred_check_branch
        %160 = sbr.rel (%p158) target = $region32
      $region31: #{tpu_custom_call.1} parent=5 // pred_region
        _
      $region32: #{tpu_custom_call.1} parent=5 // pred_fallthru
        _
      %p161 = scmp.le.s32.totalorder 1, %s20
      %p162 = scmp.lt.s32.totalorder %s20, 3
      %p163 = pnand %p161, %p162
      %p164 = pneg %p163
      // Predicated region
      $region33: #{tpu_custom_call.1} parent=5 // pred_check
        _
      $region34: #{tpu_custom_call.1} parent=5 // pred_check_branch
        %166 = sbr.rel (%p163) target = $region36
      $region35: #{tpu_custom_call.1} parent=5 // pred_region
        %s167 = ssub.s32 %s20, 1
        %p168 = pneg %p41
        %p169 = pneg %p38
        %p170 = pneg %p62
        %p171 = pneg %p59
        %p172 = pneg %p83
        %p173 = pneg %p80
        %p174 = pneg %p104
        %p175 = pneg %p101
        %p176 = pneg %p130
        %p177 = pneg %p127
        %s178 = sand.u32 %s117, 1
        %s179 = scalar_lea.sflag [#allocation5], %s178
        %s180 = sand.u32 %s117, 1
        %s181 = smul.addr %s180, 8
        %s182 = scalar_lea.vmem [#allocation4], %s181
        %s183 = smul.u32 %s25, 8
        %s184 = sld [smem:[#allocation3 + %s183]]
        %s185 = scalar_lea.vmem %s1, %s184
        %v186 = vld [vmem:[%s185] sm:$0x1]
        %s187 = sadd.s32 %s183, 1
        %s188 = sld [smem:[#allocation3 + %s187]]
        %s189 = scalar_lea.vmem %s1, %s188
        %v190 = vld [vmem:[%s189] sm:$0x1]
        %s191 = sadd.s32 %s183, 2
        %s192 = sld [smem:[#allocation3 + %s191]]
        %s193 = scalar_lea.vmem %s1, %s192
        %v194 = vld [vmem:[%s193] sm:$0x1]
        %s195 = sadd.s32 %s183, 3
        %s196 = sld [smem:[#allocation3 + %s195]]
        %s197 = scalar_lea.vmem %s1, %s196
        %v198 = vld [vmem:[%s197] sm:$0x1]
        %s199 = sadd.s32 %s183, 4
        %s200 = sld [smem:[#allocation3 + %s199]]
        %s201 = scalar_lea.vmem %s1, %s200
        %v202 = vld [vmem:[%s201] sm:$0x1]
        %s203 = sadd.s32 %s183, 5
        %s204 = sld [smem:[#allocation3 + %s203]]
        %s205 = scalar_lea.vmem %s1, %s204
        %v206 = vld [vmem:[%s205] sm:$0x1]
        %s207 = sadd.s32 %s183, 6
        %s208 = sld [smem:[#allocation3 + %s207]]
        %s209 = scalar_lea.vmem %s1, %s208
        %v210 = vld [vmem:[%s209] sm:$0x1]
        %s211 = sadd.s32 %s183, 7
        %s212 = sld [smem:[#allocation3 + %s211]]
        %s213 = scalar_lea.vmem %s1, %s212
        %v214 = vld [vmem:[%s213] sm:$0x1]
        %v216 = vrot.slane %v190, 7
        %v219 = vrot.slane %v194, 6
        %v222 = vrot.slane %v198, 5
        %v225 = vrot.slane %v202, 4
        %v228 = vrot.slane %v206, 3
        %v231 = vrot.slane %v210, 2
        %v234 = vrot.slane %v214, 1
        %vm236 = vcmask 1040384
        %v237 = vsel %vm236, %v186, %v216
        %vm238 = vcmask 1041408
        %v239 = vsel %vm238, %v237, %v219
        %vm240 = vcmask 1042432
        %v241 = vsel %vm240, %v239, %v222
        %vm242 = vcmask 1043456
        %v243 = vsel %vm242, %v241, %v225
        %vm244 = vcmask 1044480
        %v245 = vsel %vm244, %v243, %v228
        %vm246 = vcmask 1045504
        %v247 = vsel %vm246, %v245, %v231
        %vm248 = vcmask 1046528
        %v249 = vsel %vm248, %v247, %v234
        %v250 = vld [vmem:[%s1 + $0x38] sm:$0xff]
        %v251 = vadd.f32 %v249, %v250
        %v252 = vld [vmem:[%s1 + $0x40] sm:$0x1]
        %v253 = vld [vmem:[%s1 + $0x41] sm:$0x1]
        %vm254 = vcmask 261120
        %v255 = vsel %vm254, %v251, 0.0
        %256 = vadd.xlane.f32.xlu0 %v255
        %v257 = vpop.xlane.xlu0 %256
        %v258 = vrcp.pop 32.0
        %v259 = vmul.f32 %v257, %v258
        %v260 = vsub.f32 %v251, %v259
        %v261 = vmul.f32 %v260, %v260
        %v262 = vsel %vm254, %v261, 0.0
        %263 = vadd.xlane.f32.xlu0 %v262
        %v264 = vpop.xlane.xlu0 %263
        %v265 = vmul.f32 %v264, %v258
        %v266 = vadd.f32 %v265, 1e-12
        %v267 = vrsqrt.pop %v266
        %v268 = vmul.f32 %v260, %v267
        %v269 = vlaneseq
        %v270 = vshrl.u32 %v269, 7
        %v271 = vsub.s32 0, %v270
        %v272 = vrot.slane %v252, %v271
        %v273 = vmul.f32 %v268, %v272
        %v274 = vlaneseq
        %v275 = vshrl.u32 %v274, 7
        %v276 = vsub.s32 0, %v275
        %v277 = vrot.slane %v253, %v276
        %v278 = vadd.f32 %v273, %v277
        %v279 = vld [vmem:[%s2] sm:$0xff]
        %v280 = vld [vmem:[%s2 + $0x8] sm:$0xff]
        %v281 = vld [vmem:[%s2 + $0x10] sm:$0xff]
        %v282 = vld [vmem:[%s2 + $0x18] sm:$0xff]
        %v283 = vld [vmem:[%s2 + $0x28] sm:$0xff]
        %v284 = vld [vmem:[%s2 + $0x30] sm:$0xff]
        %v285 = vld [vmem:[%s2 + $0x38] sm:$0xff]
        %v286 = vld [vmem:[%s2 + $0x40] sm:$0xff]
        %v287 = vld [vmem:[%s2 + $0x50] sm:$0xff]
        %v288 = vld [vmem:[%s2 + $0x58] sm:$0xff]
        %v289 = vld [vmem:[%s2 + $0x60] sm:$0xff]
        %v290 = vld [vmem:[%s2 + $0x68] sm:$0xff]
        %v291 = vld [vmem:[%s2 + $0x78] sm:$0xff]
        %v292 = vld [vmem:[%s2 + $0x80] sm:$0xff]
        %v293 = vld [vmem:[%s2 + $0x88] sm:$0xff]
        %v294 = vld [vmem:[%s2 + $0x90] sm:$0xff]
        %v295 = vld [vmem:[%s2 + $0xa0] sm:$0xff]
        %v296 = vld [vmem:[%s2 + $0xa8] sm:$0xff]
        %v297 = vld [vmem:[%s2 + $0xb0] sm:$0xff]
        %v298 = vld [vmem:[%s2 + $0xb8] sm:$0xff]
        %v299 = vld [vmem:[%s2 + $0xc8] sm:$0xff]
        %v300 = vld [vmem:[%s2 + $0xd0] sm:$0xff]
        %v301 = vld [vmem:[%s2 + $0xd8] sm:$0xff]
        %v302 = vld [vmem:[%s2 + $0xe0] sm:$0xff]
        %v303 = vld [vmem:[%s2 + $0x20] sm:$0x1]
        %v304 = vld [vmem:[%s2 + $0x48] sm:$0x1]
        %v305 = vld [vmem:[%s2 + $0x70] sm:$0x1]
        %v306 = vld [vmem:[%s2 + $0x98] sm:$0x1]
        %v307 = vld [vmem:[%s2 + $0xc0] sm:$0x1]
        %v308 = vld [vmem:[%s2 + $0xe8] sm:$0x1]
        %v309 = vlaneseq
        %v310 = vshrl.u32 %v309, 7
        %v311 = vsub.s32 0, %v310
        %v312 = vrot.slane %v303, %v311
        %v313 = vlaneseq
        %v314 = vshrl.u32 %v313, 7
        %v315 = vsub.s32 0, %v314
        %v316 = vrot.slane %v304, %v315
        %v317 = vlaneseq
        %v318 = vshrl.u32 %v317, 7
        %v319 = vsub.s32 0, %v318
        %v320 = vrot.slane %v305, %v319
        %v321 = vlaneseq
        %v322 = vshrl.u32 %v321, 7
        %v323 = vsub.s32 0, %v322
        %v324 = vrot.slane %v306, %v323
        %v325 = vlaneseq
        %v326 = vshrl.u32 %v325, 7
        %v327 = vsub.s32 0, %v326
        %v328 = vrot.slane %v307, %v327
        %v329 = vlaneseq
        %v330 = vshrl.u32 %v329, 7
        %v331 = vsub.s32 0, %v330
        %v332 = vrot.slane %v308, %v331
        %v334 = vsel %vm254, %v278, 0
        %336 = vmatprep.subr.mxu0 0.0
        %337 = vmatpush1.msra.mxu0 0.0
        %338 = vmatprep.subr.mxu0 0.0
        %339 = vmatpush1.msra.mxu0 0.0
        %340 = vmatprep.subr.mxu0 0.0
        %341 = vmatpush1.msra.mxu0 0.0
        %342 = vmatprep.subr.mxu0 0.0
        %343 = vmatpush1.msra.mxu0 0.0
        %344 = vmatprep.subr.mxu0 0.0
        %345 = vmatpush1.msra.mxu0 0.0
        %346 = vmatprep.subr.mxu0 0.0
        %347 = vmatpush1.msra.mxu0 0.0
        %348 = vmatprep.subr.mxu0 0.0
        %349 = vmatpush1.msra.mxu0 0.0
        %350 = vmatprep.subr.mxu0 0.0
        %351 = vmatpush1.msra.mxu0 0.0
        %352 = vmatprep.subr.mxu0 0.0
        %353 = vmatpush1.msra.mxu0 0.0
        %354 = vmatprep.subr.mxu0 0.0
        %355 = vmatpush1.msra.mxu0 0.0
        %356 = vmatprep.subr.mxu0 0.0
        %357 = vmatpush1.msra.mxu0 0.0
        %358 = vmatprep.subr.mxu0 0.0
        %359 = vmatpush1.msra.mxu0 0.0
        %360 = vmatprep.subr.mxu0 0.0
        %361 = vmatpush1.msra.mxu0 %v282
        %362 = vmatprep.subr.mxu0 0.0
        %363 = vmatpush1.msra.mxu0 %v281
        %364 = vmatprep.subr.mxu0 0.0
        %365 = vmatpush1.msra.mxu0 %v280
        %366 = vmatprep.subr.mxu0 0.0
        %367 = vmatpush1.msra.mxu0 %v279
        %368 = vmatprep.subr.mxu0 0.0
        %369 = vmatpush2.msra.mxu0 0.0
        %370 = vmatprep.subr.mxu0 0.0
        %371 = vmatpush2.msra.mxu0 0.0
        %372 = vmatprep.subr.mxu0 0.0
        %373 = vmatpush2.msra.mxu0 0.0
        %374 = vmatprep.subr.mxu0 0.0
        %375 = vmatpush2.msra.mxu0 0.0
        %376 = vmatprep.subr.mxu0 0.0
        %377 = vmatpush2.msra.mxu0 0.0
        %378 = vmatprep.subr.mxu0 0.0
        %379 = vmatpush2.msra.mxu0 0.0
        %380 = vmatprep.subr.mxu0 0.0
        %381 = vmatpush2.msra.mxu0 0.0
        %382 = vmatprep.subr.mxu0 0.0
        %383 = vmatpush2.msra.mxu0 0.0
        %384 = vmatprep.subr.mxu0 0.0
        %385 = vmatpush2.msra.mxu0 0.0
        %386 = vmatprep.subr.mxu0 0.0
        %387 = vmatpush2.msra.mxu0 0.0
        %388 = vmatprep.subr.mxu0 0.0
        %389 = vmatpush2.msra.mxu0 0.0
        %390 = vmatprep.subr.mxu0 0.0
        %391 = vmatpush2.msra.mxu0 0.0
        %392 = vmatprep.subr.mxu0 0.0
        %393 = vmatpush2.msra.mxu0 0.0
        %394 = vmatprep.subr.mxu0 0.0
        %395 = vmatpush2.msra.mxu0 0.0
        %396 = vmatprep.subr.mxu0 0.0
        %397 = vmatpush2.msra.mxu0 0.0
        %398 = vmatprep.subr.mxu0 0.0
        %399 = vmatpush2.msra.mxu0 0.0
        %400 = vmatprep.mubr.f32.mxu0 0.0
        %401 = vmatmul.mubr.f32.gmra.mxu0 %v334
        %v402 = vpop.f32.mrf.mxu0
        %v403 = vadd.f32 %v312, %v402
        %v404 = vpop.f32.mrf.mxu0
        %405 = vdwg.mxu0
        %406 = vmatprep.subr.mxu0 0.0
        %407 = vmatpush1.msra.mxu0 0.0
        %408 = vmatprep.subr.mxu0 0.0
        %409 = vmatpush1.msra.mxu0 0.0
        %410 = vmatprep.subr.mxu0 0.0
        %411 = vmatpush1.msra.mxu0 0.0
        %412 = vmatprep.subr.mxu0 0.0
        %413 = vmatpush1.msra.mxu0 0.0
        %414 = vmatprep.subr.mxu0 0.0
        %415 = vmatpush1.msra.mxu0 0.0
        %416 = vmatprep.subr.mxu0 0.0
        %417 = vmatpush1.msra.mxu0 0.0
        %418 = vmatprep.subr.mxu0 0.0
        %419 = vmatpush1.msra.mxu0 0.0
        %420 = vmatprep.subr.mxu0 0.0
        %421 = vmatpush1.msra.mxu0 0.0
        %422 = vmatprep.subr.mxu0 0.0
        %423 = vmatpush1.msra.mxu0 0.0
        %424 = vmatprep.subr.mxu0 0.0
        %425 = vmatpush1.msra.mxu0 0.0
        %426 = vmatprep.subr.mxu0 0.0
        %427 = vmatpush1.msra.mxu0 0.0
        %428 = vmatprep.subr.mxu0 0.0
        %429 = vmatpush1.msra.mxu0 0.0
        %430 = vmatprep.subr.mxu0 0.0
        %431 = vmatpush1.msra.mxu0 %v286
        %432 = vmatprep.subr.mxu0 0.0
        %433 = vmatpush1.msra.mxu0 %v285
        %434 = vmatprep.subr.mxu0 0.0
        %435 = vmatpush1.msra.mxu0 %v284
        %436 = vmatprep.subr.mxu0 0.0
        %437 = vmatpush1.msra.mxu0 %v283
        %438 = vmatprep.subr.mxu0 0.0
        %439 = vmatpush2.msra.mxu0 0.0
        %440 = vmatprep.subr.mxu0 0.0
        %441 = vmatpush2.msra.mxu0 0.0
        %442 = vmatprep.subr.mxu0 0.0
        %443 = vmatpush2.msra.mxu0 0.0
        %444 = vmatprep.subr.mxu0 0.0
        %445 = vmatpush2.msra.mxu0 0.0
        %446 = vmatprep.subr.mxu0 0.0
        %447 = vmatpush2.msra.mxu0 0.0
        %448 = vmatprep.subr.mxu0 0.0
        %449 = vmatpush2.msra.mxu0 0.0
        %450 = vmatprep.subr.mxu0 0.0
        %451 = vmatpush2.msra.mxu0 0.0
        %452 = vmatprep.subr.mxu0 0.0
        %453 = vmatpush2.msra.mxu0 0.0
        %454 = vmatprep.subr.mxu0 0.0
        %455 = vmatpush2.msra.mxu0 0.0
        %456 = vmatprep.subr.mxu0 0.0
        %457 = vmatpush2.msra.mxu0 0.0
        %458 = vmatprep.subr.mxu0 0.0
        %459 = vmatpush2.msra.mxu0 0.0
        %460 = vmatprep.subr.mxu0 0.0
        %461 = vmatpush2.msra.mxu0 0.0
        %462 = vmatprep.subr.mxu0 0.0
        %463 = vmatpush2.msra.mxu0 0.0
        %464 = vmatprep.subr.mxu0 0.0
        %465 = vmatpush2.msra.mxu0 0.0
        %466 = vmatprep.subr.mxu0 0.0
        %467 = vmatpush2.msra.mxu0 0.0
        %468 = vmatprep.subr.mxu0 0.0
        %469 = vmatpush2.msra.mxu0 0.0
        %470 = vmatprep.mubr.f32.mxu0 0.0
        %471 = vmatmul.mubr.f32.gmra.mxu0 %v334
        %v472 = vpop.f32.mrf.mxu0
        %v473 = vadd.f32 %v316, %v472
        %v474 = vpop.f32.mrf.mxu0
        %475 = vdwg.mxu0
        %476 = vmatprep.subr.mxu0 0.0
        %477 = vmatpush1.msra.mxu0 0.0
        %478 = vmatprep.subr.mxu0 0.0
        %479 = vmatpush1.msra.mxu0 0.0
        %480 = vmatprep.subr.mxu0 0.0
        %481 = vmatpush1.msra.mxu0 0.0
        %482 = vmatprep.subr.mxu0 0.0
        %483 = vmatpush1.msra.mxu0 0.0
        %484 = vmatprep.subr.mxu0 0.0
        %485 = vmatpush1.msra.mxu0 0.0
        %486 = vmatprep.subr.mxu0 0.0
        %487 = vmatpush1.msra.mxu0 0.0
        %488 = vmatprep.subr.mxu0 0.0
        %489 = vmatpush1.msra.mxu0 0.0
        %490 = vmatprep.subr.mxu0 0.0
        %491 = vmatpush1.msra.mxu0 0.0
        %492 = vmatprep.subr.mxu0 0.0
        %493 = vmatpush1.msra.mxu0 0.0
        %494 = vmatprep.subr.mxu0 0.0
        %495 = vmatpush1.msra.mxu0 0.0
        %496 = vmatprep.subr.mxu0 0.0
        %497 = vmatpush1.msra.mxu0 0.0
        %498 = vmatprep.subr.mxu0 0.0
        %499 = vmatpush1.msra.mxu0 0.0
        %500 = vmatprep.subr.mxu0 0.0
        %501 = vmatpush1.msra.mxu0 %v290
        %502 = vmatprep.subr.mxu0 0.0
        %503 = vmatpush1.msra.mxu0 %v289
        %504 = vmatprep.subr.mxu0 0.0
        %505 = vmatpush1.msra.mxu0 %v288
        %506 = vmatprep.subr.mxu0 0.0
        %507 = vmatpush1.msra.mxu0 %v287
        %508 = vmatprep.subr.mxu0 0.0
        %509 = vmatpush2.msra.mxu0 0.0
        %510 = vmatprep.subr.mxu0 0.0
        %511 = vmatpush2.msra.mxu0 0.0
        %512 = vmatprep.subr.mxu0 0.0
        %513 = vmatpush2.msra.mxu0 0.0
        %514 = vmatprep.subr.mxu0 0.0
        %515 = vmatpush2.msra.mxu0 0.0
        %516 = vmatprep.subr.mxu0 0.0
        %517 = vmatpush2.msra.mxu0 0.0
        %518 = vmatprep.subr.mxu0 0.0
        %519 = vmatpush2.msra.mxu0 0.0
        %520 = vmatprep.subr.mxu0 0.0
        %521 = vmatpush2.msra.mxu0 0.0
        %522 = vmatprep.subr.mxu0 0.0
        %523 = vmatpush2.msra.mxu0 0.0
        %524 = vmatprep.subr.mxu0 0.0
        %525 = vmatpush2.msra.mxu0 0.0
        %526 = vmatprep.subr.mxu0 0.0
        %527 = vmatpush2.msra.mxu0 0.0
        %528 = vmatprep.subr.mxu0 0.0
        %529 = vmatpush2.msra.mxu0 0.0
        %530 = vmatprep.subr.mxu0 0.0
        %531 = vmatpush2.msra.mxu0 0.0
        %532 = vmatprep.subr.mxu0 0.0
        %533 = vmatpush2.msra.mxu0 0.0
        %534 = vmatprep.subr.mxu0 0.0
        %535 = vmatpush2.msra.mxu0 0.0
        %536 = vmatprep.subr.mxu0 0.0
        %537 = vmatpush2.msra.mxu0 0.0
        %538 = vmatprep.subr.mxu0 0.0
        %539 = vmatpush2.msra.mxu0 0.0
        %540 = vmatprep.mubr.f32.mxu0 0.0
        %541 = vmatmul.mubr.f32.gmra.mxu0 %v334
        %v542 = vpop.f32.mrf.mxu0
        %v543 = vadd.f32 %v320, %v542
        %v544 = vpop.f32.mrf.mxu0
        %545 = vdwg.mxu0
        %546 = vmatprep.subr.mxu0 0.0
        %547 = vmatpush1.msra.mxu0 0.0
        %548 = vmatprep.subr.mxu0 0.0
        %549 = vmatpush1.msra.mxu0 0.0
        %550 = vmatprep.subr.mxu0 0.0
        %551 = vmatpush1.msra.mxu0 0.0
        %552 = vmatprep.subr.mxu0 0.0
        %553 = vmatpush1.msra.mxu0 0.0
        %554 = vmatprep.subr.mxu0 0.0
        %555 = vmatpush1.msra.mxu0 0.0
        %556 = vmatprep.subr.mxu0 0.0
        %557 = vmatpush1.msra.mxu0 0.0
        %558 = vmatprep.subr.mxu0 0.0
        %559 = vmatpush1.msra.mxu0 0.0
        %560 = vmatprep.subr.mxu0 0.0
        %561 = vmatpush1.msra.mxu0 0.0
        %562 = vmatprep.subr.mxu0 0.0
        %563 = vmatpush1.msra.mxu0 0.0
        %564 = vmatprep.subr.mxu0 0.0
        %565 = vmatpush1.msra.mxu0 0.0
        %566 = vmatprep.subr.mxu0 0.0
        %567 = vmatpush1.msra.mxu0 0.0
        %568 = vmatprep.subr.mxu0 0.0
        %569 = vmatpush1.msra.mxu0 0.0
        %570 = vmatprep.subr.mxu0 0.0
        %571 = vmatpush1.msra.mxu0 %v294
        %572 = vmatprep.subr.mxu0 0.0
        %573 = vmatpush1.msra.mxu0 %v293
        %574 = vmatprep.subr.mxu0 0.0
        %575 = vmatpush1.msra.mxu0 %v292
        %576 = vmatprep.subr.mxu0 0.0
        %577 = vmatpush1.msra.mxu0 %v291
        %578 = vmatprep.subr.mxu0 0.0
        %579 = vmatpush2.msra.mxu0 0.0
        %580 = vmatprep.subr.mxu0 0.0
        %581 = vmatpush2.msra.mxu0 0.0
        %582 = vmatprep.subr.mxu0 0.0
        %583 = vmatpush2.msra.mxu0 0.0
        %584 = vmatprep.subr.mxu0 0.0
        %585 = vmatpush2.msra.mxu0 0.0
        %586 = vmatprep.subr.mxu0 0.0
        %587 = vmatpush2.msra.mxu0 0.0
        %588 = vmatprep.subr.mxu0 0.0
        %589 = vmatpush2.msra.mxu0 0.0
        %590 = vmatprep.subr.mxu0 0.0
        %591 = vmatpush2.msra.mxu0 0.0
        %592 = vmatprep.subr.mxu0 0.0
        %593 = vmatpush2.msra.mxu0 0.0
        %594 = vmatprep.subr.mxu0 0.0
        %595 = vmatpush2.msra.mxu0 0.0
        %596 = vmatprep.subr.mxu0 0.0
        %597 = vmatpush2.msra.mxu0 0.0
        %598 = vmatprep.subr.mxu0 0.0
        %599 = vmatpush2.msra.mxu0 0.0
        %600 = vmatprep.subr.mxu0 0.0
        %601 = vmatpush2.msra.mxu0 0.0
        %602 = vmatprep.subr.mxu0 0.0
        %603 = vmatpush2.msra.mxu0 0.0
        %604 = vmatprep.subr.mxu0 0.0
        %605 = vmatpush2.msra.mxu0 0.0
        %606 = vmatprep.subr.mxu0 0.0
        %607 = vmatpush2.msra.mxu0 0.0
        %608 = vmatprep.subr.mxu0 0.0
        %609 = vmatpush2.msra.mxu0 0.0
        %610 = vmatprep.mubr.f32.mxu0 0.0
        %611 = vmatmul.mubr.f32.gmra.mxu0 %v334
        %v612 = vpop.f32.mrf.mxu0
        %v613 = vadd.f32 %v324, %v612
        %v614 = vpop.f32.mrf.mxu0
        %615 = vdwg.mxu0
        %616 = vmatprep.subr.mxu0 0.0
        %617 = vmatpush1.msra.mxu0 0.0
        %618 = vmatprep.subr.mxu0 0.0
        %619 = vmatpush1.msra.mxu0 0.0
        %620 = vmatprep.subr.mxu0 0.0
        %621 = vmatpush1.msra.mxu0 0.0
        %622 = vmatprep.subr.mxu0 0.0
        %623 = vmatpush1.msra.mxu0 0.0
        %624 = vmatprep.subr.mxu0 0.0
        %625 = vmatpush1.msra.mxu0 0.0
        %626 = vmatprep.subr.mxu0 0.0
        %627 = vmatpush1.msra.mxu0 0.0
        %628 = vmatprep.subr.mxu0 0.0
        %629 = vmatpush1.msra.mxu0 0.0
        %630 = vmatprep.subr.mxu0 0.0
        %631 = vmatpush1.msra.mxu0 0.0
        %632 = vmatprep.subr.mxu0 0.0
        %633 = vmatpush1.msra.mxu0 0.0
        %634 = vmatprep.subr.mxu0 0.0
        %635 = vmatpush1.msra.mxu0 0.0
        %636 = vmatprep.subr.mxu0 0.0
        %637 = vmatpush1.msra.mxu0 0.0
        %638 = vmatprep.subr.mxu0 0.0
        %639 = vmatpush1.msra.mxu0 0.0
        %640 = vmatprep.subr.mxu0 0.0
        %641 = vmatpush1.msra.mxu0 %v298
        %642 = vmatprep.subr.mxu0 0.0
        %643 = vmatpush1.msra.mxu0 %v297
        %644 = vmatprep.subr.mxu0 0.0
        %645 = vmatpush1.msra.mxu0 %v296
        %646 = vmatprep.subr.mxu0 0.0
        %647 = vmatpush1.msra.mxu0 %v295
        %648 = vmatprep.subr.mxu0 0.0
        %649 = vmatpush2.msra.mxu0 0.0
        %650 = vmatprep.subr.mxu0 0.0
        %651 = vmatpush2.msra.mxu0 0.0
        %652 = vmatprep.subr.mxu0 0.0
        %653 = vmatpush2.msra.mxu0 0.0
        %654 = vmatprep.subr.mxu0 0.0
        %655 = vmatpush2.msra.mxu0 0.0
        %656 = vmatprep.subr.mxu0 0.0
        %657 = vmatpush2.msra.mxu0 0.0
        %658 = vmatprep.subr.mxu0 0.0
        %659 = vmatpush2.msra.mxu0 0.0
        %660 = vmatprep.subr.mxu0 0.0
        %661 = vmatpush2.msra.mxu0 0.0
        %662 = vmatprep.subr.mxu0 0.0
        %663 = vmatpush2.msra.mxu0 0.0
        %664 = vmatprep.subr.mxu0 0.0
        %665 = vmatpush2.msra.mxu0 0.0
        %666 = vmatprep.subr.mxu0 0.0
        %667 = vmatpush2.msra.mxu0 0.0
        %668 = vmatprep.subr.mxu0 0.0
        %669 = vmatpush2.msra.mxu0 0.0
        %670 = vmatprep.subr.mxu0 0.0
        %671 = vmatpush2.msra.mxu0 0.0
        %672 = vmatprep.subr.mxu0 0.0
        %673 = vmatpush2.msra.mxu0 0.0
        %674 = vmatprep.subr.mxu0 0.0
        %675 = vmatpush2.msra.mxu0 0.0
        %676 = vmatprep.subr.mxu0 0.0
        %677 = vmatpush2.msra.mxu0 0.0
        %678 = vmatprep.subr.mxu0 0.0
        %679 = vmatpush2.msra.mxu0 0.0
        %680 = vmatprep.mubr.f32.mxu0 0.0
        %681 = vmatmul.mubr.f32.gmra.mxu0 %v334
        %v682 = vpop.f32.mrf.mxu0
        %v683 = vadd.f32 %v328, %v682
        %v684 = vpop.f32.mrf.mxu0
        %685 = vdwg.mxu0
        %686 = vmatprep.subr.mxu0 0.0
        %687 = vmatpush1.msra.mxu0 0.0
        %688 = vmatprep.subr.mxu0 0.0
        %689 = vmatpush1.msra.mxu0 0.0
        %690 = vmatprep.subr.mxu0 0.0
        %691 = vmatpush1.msra.mxu0 0.0
        %692 = vmatprep.subr.mxu0 0.0
        %693 = vmatpush1.msra.mxu0 0.0
        %694 = vmatprep.subr.mxu0 0.0
        %695 = vmatpush1.msra.mxu0 0.0
        %696 = vmatprep.subr.mxu0 0.0
        %697 = vmatpush1.msra.mxu0 0.0
        %698 = vmatprep.subr.mxu0 0.0
        %699 = vmatpush1.msra.mxu0 0.0
        %700 = vmatprep.subr.mxu0 0.0
        %701 = vmatpush1.msra.mxu0 0.0
        %702 = vmatprep.subr.mxu0 0.0
        %703 = vmatpush1.msra.mxu0 0.0
        %704 = vmatprep.subr.mxu0 0.0
        %705 = vmatpush1.msra.mxu0 0.0
        %706 = vmatprep.subr.mxu0 0.0
        %707 = vmatpush1.msra.mxu0 0.0
        %708 = vmatprep.subr.mxu0 0.0
        %709 = vmatpush1.msra.mxu0 0.0
        %710 = vmatprep.subr.mxu0 0.0
        %711 = vmatpush1.msra.mxu0 %v302
        %712 = vmatprep.subr.mxu0 0.0
        %713 = vmatpush1.msra.mxu0 %v301
        %714 = vmatprep.subr.mxu0 0.0
        %715 = vmatpush1.msra.mxu0 %v300
        %716 = vmatprep.subr.mxu0 0.0
        %717 = vmatpush1.msra.mxu0 %v299
        %718 = vmatprep.subr.mxu0 0.0
        %719 = vmatpush2.msra.mxu0 0.0
        %720 = vmatprep.subr.mxu0 0.0
        %721 = vmatpush2.msra.mxu0 0.0
        %722 = vmatprep.subr.mxu0 0.0
        %723 = vmatpush2.msra.mxu0 0.0
        %724 = vmatprep.subr.mxu0 0.0
        %725 = vmatpush2.msra.mxu0 0.0
        %726 = vmatprep.subr.mxu0 0.0
        %727 = vmatpush2.msra.mxu0 0.0
        %728 = vmatprep.subr.mxu0 0.0
        %729 = vmatpush2.msra.mxu0 0.0
        %730 = vmatprep.subr.mxu0 0.0
        %731 = vmatpush2.msra.mxu0 0.0
        %732 = vmatprep.subr.mxu0 0.0
        %733 = vmatpush2.msra.mxu0 0.0
        %734 = vmatprep.subr.mxu0 0.0
        %735 = vmatpush2.msra.mxu0 0.0
        %736 = vmatprep.subr.mxu0 0.0
        %737 = vmatpush2.msra.mxu0 0.0
        %738 = vmatprep.subr.mxu0 0.0
        %739 = vmatpush2.msra.mxu0 0.0
        %740 = vmatprep.subr.mxu0 0.0
        %741 = vmatpush2.msra.mxu0 0.0
        %742 = vmatprep.subr.mxu0 0.0
        %743 = vmatpush2.msra.mxu0 0.0
        %744 = vmatprep.subr.mxu0 0.0
        %745 = vmatpush2.msra.mxu0 0.0
        %746 = vmatprep.subr.mxu0 0.0
        %747 = vmatpush2.msra.mxu0 0.0
        %748 = vmatprep.subr.mxu0 0.0
        %749 = vmatpush2.msra.mxu0 0.0
        %750 = vmatprep.mubr.f32.mxu0 0.0
        %751 = vmatmul.mubr.f32.gmra.mxu0 %v334
        %v752 = vpop.f32.mrf.mxu0
        %v753 = vadd.f32 %v332, %v752
        %v754 = vpop.f32.mrf.mxu0
        %755 = vdwg.mxu0
        %vm756 = vcmask 130048
        %v758 = vsel %vm756, %v403, 0
        %v761 = vsel %vm756, %v543, 0
        %763 = vmatprep.subr.mxu0 0.0
        %764 = vmatpush1.xpose.msra.mxu0 0.0
        %765 = vmatprep.subr.mxu0 0.0
        %766 = vmatpush1.xpose.msra.mxu0 0.0
        %767 = vmatprep.subr.mxu0 0.0
        %768 = vmatpush1.xpose.msra.mxu0 0.0
        %769 = vmatprep.subr.mxu0 0.0
        %770 = vmatpush1.xpose.msra.mxu0 0.0
        %771 = vmatprep.subr.mxu0 0.0
        %772 = vmatpush1.xpose.msra.mxu0 0.0
        %773 = vmatprep.subr.mxu0 0.0
        %774 = vmatpush1.xpose.msra.mxu0 0.0
        %775 = vmatprep.subr.mxu0 0.0
        %776 = vmatpush1.xpose.msra.mxu0 0.0
        %777 = vmatprep.subr.mxu0 0.0
        %778 = vmatpush1.xpose.msra.mxu0 0.0
        %779 = vmatprep.subr.mxu0 0.0
        %780 = vmatpush1.xpose.msra.mxu0 0.0
        %781 = vmatprep.subr.mxu0 0.0
        %782 = vmatpush1.xpose.msra.mxu0 0.0
        %783 = vmatprep.subr.mxu0 0.0
        %784 = vmatpush1.xpose.msra.mxu0 0.0
        %785 = vmatprep.subr.mxu0 0.0
        %786 = vmatpush1.xpose.msra.mxu0 0.0
        %787 = vmatprep.subr.mxu0 0.0
        %788 = vmatpush1.xpose.msra.mxu0 0.0
        %789 = vmatprep.subr.mxu0 0.0
        %790 = vmatpush1.xpose.msra.mxu0 0.0
        %791 = vmatprep.subr.mxu0 0.0
        %792 = vmatpush1.xpose.msra.mxu0 0.0
        %793 = vmatprep.subr.mxu0 0.0
        %794 = vmatpush1.xpose.msra.mxu0 %v761
        %795 = vmatprep.subr.mxu0 0.0
        %796 = vmatpush2.xpose.msra.mxu0 0.0
        %797 = vmatprep.subr.mxu0 0.0
        %798 = vmatpush2.xpose.msra.mxu0 0.0
        %799 = vmatprep.subr.mxu0 0.0
        %800 = vmatpush2.xpose.msra.mxu0 0.0
        %801 = vmatprep.subr.mxu0 0.0
        %802 = vmatpush2.xpose.msra.mxu0 0.0
        %803 = vmatprep.subr.mxu0 0.0
        %804 = vmatpush2.xpose.msra.mxu0 0.0
        %805 = vmatprep.subr.mxu0 0.0
        %806 = vmatpush2.xpose.msra.mxu0 0.0
        %807 = vmatprep.subr.mxu0 0.0
        %808 = vmatpush2.xpose.msra.mxu0 0.0
        %809 = vmatprep.subr.mxu0 0.0
        %810 = vmatpush2.xpose.msra.mxu0 0.0
        %811 = vmatprep.subr.mxu0 0.0
        %812 = vmatpush2.xpose.msra.mxu0 0.0
        %813 = vmatprep.subr.mxu0 0.0
        %814 = vmatpush2.xpose.msra.mxu0 0.0
        %815 = vmatprep.subr.mxu0 0.0
        %816 = vmatpush2.xpose.msra.mxu0 0.0
        %817 = vmatprep.subr.mxu0 0.0
        %818 = vmatpush2.xpose.msra.mxu0 0.0
        %819 = vmatprep.subr.mxu0 0.0
        %820 = vmatpush2.xpose.msra.mxu0 0.0
        %821 = vmatprep.subr.mxu0 0.0
        %822 = vmatpush2.xpose.msra.mxu0 0.0
        %823 = vmatprep.subr.mxu0 0.0
        %824 = vmatpush2.xpose.msra.mxu0 0.0
        %825 = vmatprep.subr.mxu0 0.0
        %826 = vmatpush2.xpose.msra.mxu0 0.0
        %827 = vmatprep.mubr.f32.mxu0 0.0
        %828 = vmatmul.mubr.f32.gmra.mxu0 %v758
        %v829 = vpop.f32.mrf.mxu0
        %v830 = vadd.f32 0.0, %v829
        %v831 = vpop.f32.mrf.mxu0
        %832 = vdwg.mxu0
        %v834 = vsel %vm756, %v473, 0
        %v837 = vsel %vm756, %v613, 0
        %839 = vmatprep.subr.mxu0 0.0
        %840 = vmatpush1.xpose.msra.mxu0 0.0
        %841 = vmatprep.subr.mxu0 0.0
        %842 = vmatpush1.xpose.msra.mxu0 0.0
        %843 = vmatprep.subr.mxu0 0.0
        %844 = vmatpush1.xpose.msra.mxu0 0.0
        %845 = vmatprep.subr.mxu0 0.0
        %846 = vmatpush1.xpose.msra.mxu0 0.0
        %847 = vmatprep.subr.mxu0 0.0
        %848 = vmatpush1.xpose.msra.mxu0 0.0
        %849 = vmatprep.subr.mxu0 0.0
        %850 = vmatpush1.xpose.msra.mxu0 0.0
        %851 = vmatprep.subr.mxu0 0.0
        %852 = vmatpush1.xpose.msra.mxu0 0.0
        %853 = vmatprep.subr.mxu0 0.0
        %854 = vmatpush1.xpose.msra.mxu0 0.0
        %855 = vmatprep.subr.mxu0 0.0
        %856 = vmatpush1.xpose.msra.mxu0 0.0
        %857 = vmatprep.subr.mxu0 0.0
        %858 = vmatpush1.xpose.msra.mxu0 0.0
        %859 = vmatprep.subr.mxu0 0.0
        %860 = vmatpush1.xpose.msra.mxu0 0.0
        %861 = vmatprep.subr.mxu0 0.0
        %862 = vmatpush1.xpose.msra.mxu0 0.0
        %863 = vmatprep.subr.mxu0 0.0
        %864 = vmatpush1.xpose.msra.mxu0 0.0
        %865 = vmatprep.subr.mxu0 0.0
        %866 = vmatpush1.xpose.msra.mxu0 0.0
        %867 = vmatprep.subr.mxu0 0.0
        %868 = vmatpush1.xpose.msra.mxu0 0.0
        %869 = vmatprep.subr.mxu0 0.0
        %870 = vmatpush1.xpose.msra.mxu0 %v837
        %871 = vmatprep.subr.mxu0 0.0
        %872 = vmatpush2.xpose.msra.mxu0 0.0
        %873 = vmatprep.subr.mxu0 0.0
        %874 = vmatpush2.xpose.msra.mxu0 0.0
        %875 = vmatprep.subr.mxu0 0.0
        %876 = vmatpush2.xpose.msra.mxu0 0.0
        %877 = vmatprep.subr.mxu0 0.0
        %878 = vmatpush2.xpose.msra.mxu0 0.0
        %879 = vmatprep.subr.mxu0 0.0
        %880 = vmatpush2.xpose.msra.mxu0 0.0
        %881 = vmatprep.subr.mxu0 0.0
        %882 = vmatpush2.xpose.msra.mxu0 0.0
        %883 = vmatprep.subr.mxu0 0.0
        %884 = vmatpush2.xpose.msra.mxu0 0.0
        %885 = vmatprep.subr.mxu0 0.0
        %886 = vmatpush2.xpose.msra.mxu0 0.0
        %887 = vmatprep.subr.mxu0 0.0
        %888 = vmatpush2.xpose.msra.mxu0 0.0
        %889 = vmatprep.subr.mxu0 0.0
        %890 = vmatpush2.xpose.msra.mxu0 0.0
        %891 = vmatprep.subr.mxu0 0.0
        %892 = vmatpush2.xpose.msra.mxu0 0.0
        %893 = vmatprep.subr.mxu0 0.0
        %894 = vmatpush2.xpose.msra.mxu0 0.0
        %895 = vmatprep.subr.mxu0 0.0
        %896 = vmatpush2.xpose.msra.mxu0 0.0
        %897 = vmatprep.subr.mxu0 0.0
        %898 = vmatpush2.xpose.msra.mxu0 0.0
        %899 = vmatprep.subr.mxu0 0.0
        %900 = vmatpush2.xpose.msra.mxu0 0.0
        %901 = vmatprep.subr.mxu0 0.0
        %902 = vmatpush2.xpose.msra.mxu0 0.0
        %903 = vmatprep.mubr.f32.mxu0 0.0
        %904 = vmatmul.mubr.f32.gmra.mxu0 %v834
        %v905 = vpop.f32.mrf.mxu0
        %v906 = vadd.f32 0.0, %v905
        %v907 = vpop.f32.mrf.mxu0
        %908 = vdwg.mxu0
        %vm909 = vcmask 64512
        %v910 = vsel %vm909, %v830, -inf
        %911 = vmax.xlane.f32.xlu0 %v910
        %v912 = vpop.xlane.xlu0 %911
        %v913 = vsel %vm909, %v906, -inf
        %914 = vmax.xlane.f32.xlu0 %v913
        %v915 = vpop.xlane.xlu0 %914
        %v916 = vsub.f32 %v830, %v912
        %v917 = vsub.f32 %v906, %v915
        %v918 = vmul.f32 %v916, 1.442695
        %v919 = vpow.pop %v918
        %v920 = vmul.f32 %v917, 1.442695
        %v921 = vpow.pop %v920
        %v922 = vsel %vm909, %v919, 0.0
        %923 = vadd.xlane.f32.xlu0 %v922
        %v924 = vpop.xlane.xlu0 %923
        %v925 = vsel %vm909, %v921, 0.0
        %926 = vadd.xlane.f32.xlu0 %v925
        %v927 = vpop.xlane.xlu0 %926
        %v928 = vrcp.pop %v924
        %v929 = vrcp.pop %v927
        %v930 = vmul.f32 %v919, %v928
        %v931 = vmul.f32 %v921, %v929
        %v933 = vsel %vm909, %v930, 0
        %935 = vmatprep.subr.mxu0 0.0
        %936 = vmatpush1.msra.mxu0 0.0
        %937 = vmatprep.subr.mxu0 0.0
        %938 = vmatpush1.msra.mxu0 0.0
        %939 = vmatprep.subr.mxu0 0.0
        %940 = vmatpush1.msra.mxu0 0.0
        %941 = vmatprep.subr.mxu0 0.0
        %942 = vmatpush1.msra.mxu0 0.0
        %943 = vmatprep.subr.mxu0 0.0
        %944 = vmatpush1.msra.mxu0 0.0
        %945 = vmatprep.subr.mxu0 0.0
        %946 = vmatpush1.msra.mxu0 0.0
        %947 = vmatprep.subr.mxu0 0.0
        %948 = vmatpush1.msra.mxu0 0.0
        %949 = vmatprep.subr.mxu0 0.0
        %950 = vmatpush1.msra.mxu0 0.0
        %951 = vmatprep.subr.mxu0 0.0
        %952 = vmatpush1.msra.mxu0 0.0
        %953 = vmatprep.subr.mxu0 0.0
        %954 = vmatpush1.msra.mxu0 0.0
        %955 = vmatprep.subr.mxu0 0.0
        %956 = vmatpush1.msra.mxu0 0.0
        %957 = vmatprep.subr.mxu0 0.0
        %958 = vmatpush1.msra.mxu0 0.0
        %959 = vmatprep.subr.mxu0 0.0
        %960 = vmatpush1.msra.mxu0 0.0
        %961 = vmatprep.subr.mxu0 0.0
        %962 = vmatpush1.msra.mxu0 0.0
        %963 = vmatprep.subr.mxu0 0.0
        %964 = vmatpush1.msra.mxu0 0.0
        %965 = vmatprep.subr.mxu0 0.0
        %966 = vmatpush1.msra.mxu0 %v683
        %967 = vmatprep.subr.mxu0 0.0
        %968 = vmatpush2.msra.mxu0 0.0
        %969 = vmatprep.subr.mxu0 0.0
        %970 = vmatpush2.msra.mxu0 0.0
        %971 = vmatprep.subr.mxu0 0.0
        %972 = vmatpush2.msra.mxu0 0.0
        %973 = vmatprep.subr.mxu0 0.0
        %974 = vmatpush2.msra.mxu0 0.0
        %975 = vmatprep.subr.mxu0 0.0
        %976 = vmatpush2.msra.mxu0 0.0
        %977 = vmatprep.subr.mxu0 0.0
        %978 = vmatpush2.msra.mxu0 0.0
        %979 = vmatprep.subr.mxu0 0.0
        %980 = vmatpush2.msra.mxu0 0.0
        %981 = vmatprep.subr.mxu0 0.0
        %982 = vmatpush2.msra.mxu0 0.0
        %983 = vmatprep.subr.mxu0 0.0
        %984 = vmatpush2.msra.mxu0 0.0
        %985 = vmatprep.subr.mxu0 0.0
        %986 = vmatpush2.msra.mxu0 0.0
        %987 = vmatprep.subr.mxu0 0.0
        %988 = vmatpush2.msra.mxu0 0.0
        %989 = vmatprep.subr.mxu0 0.0
        %990 = vmatpush2.msra.mxu0 0.0
        %991 = vmatprep.subr.mxu0 0.0
        %992 = vmatpush2.msra.mxu0 0.0
        %993 = vmatprep.subr.mxu0 0.0
        %994 = vmatpush2.msra.mxu0 0.0
        %995 = vmatprep.subr.mxu0 0.0
        %996 = vmatpush2.msra.mxu0 0.0
        %997 = vmatprep.subr.mxu0 0.0
        %998 = vmatpush2.msra.mxu0 0.0
        %999 = vmatprep.mubr.f32.mxu0 0.0
        %1000 = vmatmul.mubr.f32.gmra.mxu0 %v933
        %v1001 = vpop.f32.mrf.mxu0
        %v1002 = vadd.f32 0.0, %v1001
        %v1003 = vpop.f32.mrf.mxu0
        %1004 = vdwg.mxu0
        %v1006 = vsel %vm909, %v931, 0
        %1008 = vmatprep.subr.mxu0 0.0
        %1009 = vmatpush1.msra.mxu0 0.0
        %1010 = vmatprep.subr.mxu0 0.0
        %1011 = vmatpush1.msra.mxu0 0.0
        %1012 = vmatprep.subr.mxu0 0.0
        %1013 = vmatpush1.msra.mxu0 0.0
        %1014 = vmatprep.subr.mxu0 0.0
        %1015 = vmatpush1.msra.mxu0 0.0
        %1016 = vmatprep.subr.mxu0 0.0
        %1017 = vmatpush1.msra.mxu0 0.0
        %1018 = vmatprep.subr.mxu0 0.0
        %1019 = vmatpush1.msra.mxu0 0.0
        %1020 = vmatprep.subr.mxu0 0.0
        %1021 = vmatpush1.msra.mxu0 0.0
        %1022 = vmatprep.subr.mxu0 0.0
        %1023 = vmatpush1.msra.mxu0 0.0
        %1024 = vmatprep.subr.mxu0 0.0
        %1025 = vmatpush1.msra.mxu0 0.0
        %1026 = vmatprep.subr.mxu0 0.0
        %1027 = vmatpush1.msra.mxu0 0.0
        %1028 = vmatprep.subr.mxu0 0.0
        %1029 = vmatpush1.msra.mxu0 0.0
        %1030 = vmatprep.subr.mxu0 0.0
        %1031 = vmatpush1.msra.mxu0 0.0
        %1032 = vmatprep.subr.mxu0 0.0
        %1033 = vmatpush1.msra.mxu0 0.0
        %1034 = vmatprep.subr.mxu0 0.0
        %1035 = vmatpush1.msra.mxu0 0.0
        %1036 = vmatprep.subr.mxu0 0.0
        %1037 = vmatpush1.msra.mxu0 0.0
        %1038 = vmatprep.subr.mxu0 0.0
        %1039 = vmatpush1.msra.mxu0 %v753
        %1040 = vmatprep.subr.mxu0 0.0
        %1041 = vmatpush2.msra.mxu0 0.0
        %1042 = vmatprep.subr.mxu0 0.0
        %1043 = vmatpush2.msra.mxu0 0.0
        %1044 = vmatprep.subr.mxu0 0.0
        %1045 = vmatpush2.msra.mxu0 0.0
        %1046 = vmatprep.subr.mxu0 0.0
        %1047 = vmatpush2.msra.mxu0 0.0
        %1048 = vmatprep.subr.mxu0 0.0
        %1049 = vmatpush2.msra.mxu0 0.0
        %1050 = vmatprep.subr.mxu0 0.0
        %1051 = vmatpush2.msra.mxu0 0.0
        %1052 = vmatprep.subr.mxu0 0.0
        %1053 = vmatpush2.msra.mxu0 0.0
        %1054 = vmatprep.subr.mxu0 0.0
        %1055 = vmatpush2.msra.mxu0 0.0
        %1056 = vmatprep.subr.mxu0 0.0
        %1057 = vmatpush2.msra.mxu0 0.0
        %1058 = vmatprep.subr.mxu0 0.0
        %1059 = vmatpush2.msra.mxu0 0.0
        %1060 = vmatprep.subr.mxu0 0.0
        %1061 = vmatpush2.msra.mxu0 0.0
        %1062 = vmatprep.subr.mxu0 0.0
        %1063 = vmatpush2.msra.mxu0 0.0
        %1064 = vmatprep.subr.mxu0 0.0
        %1065 = vmatpush2.msra.mxu0 0.0
        %1066 = vmatprep.subr.mxu0 0.0
        %1067 = vmatpush2.msra.mxu0 0.0
        %1068 = vmatprep.subr.mxu0 0.0
        %1069 = vmatpush2.msra.mxu0 0.0
        %1070 = vmatprep.subr.mxu0 0.0
        %1071 = vmatpush2.msra.mxu0 0.0
        %1072 = vmatprep.mubr.f32.mxu0 0.0
        %1073 = vmatmul.mubr.f32.gmra.mxu0 %v1006
        %v1074 = vpop.f32.mrf.mxu0
        %v1075 = vadd.f32 0.0, %v1074
        %v1076 = vpop.f32.mrf.mxu0
        %1077 = vdwg.mxu0
        %v1078 = vld [vmem:[%s3] sm:$0xff]
        %v1079 = vld [vmem:[%s3 + $0x8] sm:$0xff]
        %v1080 = vld [vmem:[%s3 + $0x10] sm:$0xff]
        %v1081 = vld [vmem:[%s3 + $0x18] sm:$0xff]
        %v1083 = vsel %vm756, %v1002, 0
        %1085 = vmatprep.subr.mxu0 0.0
        %1086 = vmatpush1.msra.mxu0 0.0
        %1087 = vmatprep.subr.mxu0 0.0
        %1088 = vmatpush1.msra.mxu0 0.0
        %1089 = vmatprep.subr.mxu0 0.0
        %1090 = vmatpush1.msra.mxu0 0.0
        %1091 = vmatprep.subr.mxu0 0.0
        %1092 = vmatpush1.msra.mxu0 0.0
        %1093 = vmatprep.subr.mxu0 0.0
        %1094 = vmatpush1.msra.mxu0 0.0
        %1095 = vmatprep.subr.mxu0 0.0
        %1096 = vmatpush1.msra.mxu0 0.0
        %1097 = vmatprep.subr.mxu0 0.0
        %1098 = vmatpush1.msra.mxu0 0.0
        %1099 = vmatprep.subr.mxu0 0.0
        %1100 = vmatpush1.msra.mxu0 0.0
        %1101 = vmatprep.subr.mxu0 0.0
        %1102 = vmatpush1.msra.mxu0 0.0
        %1103 = vmatprep.subr.mxu0 0.0
        %1104 = vmatpush1.msra.mxu0 0.0
        %1105 = vmatprep.subr.mxu0 0.0
        %1106 = vmatpush1.msra.mxu0 0.0
        %1107 = vmatprep.subr.mxu0 0.0
        %1108 = vmatpush1.msra.mxu0 0.0
        %1109 = vmatprep.subr.mxu0 0.0
        %1110 = vmatpush1.msra.mxu0 0.0
        %1111 = vmatprep.subr.mxu0 0.0
        %1112 = vmatpush1.msra.mxu0 0.0
        %1113 = vmatprep.subr.mxu0 0.0
        %1114 = vmatpush1.msra.mxu0 %v1079
        %1115 = vmatprep.subr.mxu0 0.0
        %1116 = vmatpush1.msra.mxu0 %v1078
        %1117 = vmatprep.subr.mxu0 0.0
        %1118 = vmatpush2.msra.mxu0 0.0
        %1119 = vmatprep.subr.mxu0 0.0
        %1120 = vmatpush2.msra.mxu0 0.0
        %1121 = vmatprep.subr.mxu0 0.0
        %1122 = vmatpush2.msra.mxu0 0.0
        %1123 = vmatprep.subr.mxu0 0.0
        %1124 = vmatpush2.msra.mxu0 0.0
        %1125 = vmatprep.subr.mxu0 0.0
        %1126 = vmatpush2.msra.mxu0 0.0
        %1127 = vmatprep.subr.mxu0 0.0
        %1128 = vmatpush2.msra.mxu0 0.0
        %1129 = vmatprep.subr.mxu0 0.0
        %1130 = vmatpush2.msra.mxu0 0.0
        %1131 = vmatprep.subr.mxu0 0.0
        %1132 = vmatpush2.msra.mxu0 0.0
        %1133 = vmatprep.subr.mxu0 0.0
        %1134 = vmatpush2.msra.mxu0 0.0
        %1135 = vmatprep.subr.mxu0 0.0
        %1136 = vmatpush2.msra.mxu0 0.0
        %1137 = vmatprep.subr.mxu0 0.0
        %1138 = vmatpush2.msra.mxu0 0.0
        %1139 = vmatprep.subr.mxu0 0.0
        %1140 = vmatpush2.msra.mxu0 0.0
        %1141 = vmatprep.subr.mxu0 0.0
        %1142 = vmatpush2.msra.mxu0 0.0
        %1143 = vmatprep.subr.mxu0 0.0
        %1144 = vmatpush2.msra.mxu0 0.0
        %1145 = vmatprep.subr.mxu0 0.0
        %1146 = vmatpush2.msra.mxu0 0.0
        %1147 = vmatprep.subr.mxu0 0.0
        %1148 = vmatpush2.msra.mxu0 0.0
        %1149 = vmatprep.mubr.f32.mxu0 0.0
        %1150 = vmatmul.mubr.f32.gmra.mxu0 %v1083
        %v1151 = vpop.f32.mrf.mxu0
        %v1152 = vadd.f32 0.0, %v1151
        %v1153 = vpop.f32.mrf.mxu0
        %1154 = vdwg.mxu0
        %v1156 = vsel %vm756, %v1075, 0
        %1158 = vmatprep.subr.mxu0 0.0
        %1159 = vmatpush1.msra.mxu0 0.0
        %1160 = vmatprep.subr.mxu0 0.0
        %1161 = vmatpush1.msra.mxu0 0.0
        %1162 = vmatprep.subr.mxu0 0.0
        %1163 = vmatpush1.msra.mxu0 0.0
        %1164 = vmatprep.subr.mxu0 0.0
        %1165 = vmatpush1.msra.mxu0 0.0
        %1166 = vmatprep.subr.mxu0 0.0
        %1167 = vmatpush1.msra.mxu0 0.0
        %1168 = vmatprep.subr.mxu0 0.0
        %1169 = vmatpush1.msra.mxu0 0.0
        %1170 = vmatprep.subr.mxu0 0.0
        %1171 = vmatpush1.msra.mxu0 0.0
        %1172 = vmatprep.subr.mxu0 0.0
        %1173 = vmatpush1.msra.mxu0 0.0
        %1174 = vmatprep.subr.mxu0 0.0
        %1175 = vmatpush1.msra.mxu0 0.0
        %1176 = vmatprep.subr.mxu0 0.0
        %1177 = vmatpush1.msra.mxu0 0.0
        %1178 = vmatprep.subr.mxu0 0.0
        %1179 = vmatpush1.msra.mxu0 0.0
        %1180 = vmatprep.subr.mxu0 0.0
        %1181 = vmatpush1.msra.mxu0 0.0
        %1182 = vmatprep.subr.mxu0 0.0
        %1183 = vmatpush1.msra.mxu0 0.0
        %1184 = vmatprep.subr.mxu0 0.0
        %1185 = vmatpush1.msra.mxu0 0.0
        %1186 = vmatprep.subr.mxu0 0.0
        %1187 = vmatpush1.msra.mxu0 %v1081
        %1188 = vmatprep.subr.mxu0 0.0
        %1189 = vmatpush1.msra.mxu0 %v1080
        %1190 = vmatprep.subr.mxu0 0.0
        %1191 = vmatpush2.msra.mxu0 0.0
        %1192 = vmatprep.subr.mxu0 0.0
        %1193 = vmatpush2.msra.mxu0 0.0
        %1194 = vmatprep.subr.mxu0 0.0
        %1195 = vmatpush2.msra.mxu0 0.0
        %1196 = vmatprep.subr.mxu0 0.0
        %1197 = vmatpush2.msra.mxu0 0.0
        %1198 = vmatprep.subr.mxu0 0.0
        %1199 = vmatpush2.msra.mxu0 0.0
        %1200 = vmatprep.subr.mxu0 0.0
        %1201 = vmatpush2.msra.mxu0 0.0
        %1202 = vmatprep.subr.mxu0 0.0
        %1203 = vmatpush2.msra.mxu0 0.0
        %1204 = vmatprep.subr.mxu0 0.0
        %1205 = vmatpush2.msra.mxu0 0.0
        %1206 = vmatprep.subr.mxu0 0.0
        %1207 = vmatpush2.msra.mxu0 0.0
        %1208 = vmatprep.subr.mxu0 0.0
        %1209 = vmatpush2.msra.mxu0 0.0
        %1210 = vmatprep.subr.mxu0 0.0
        %1211 = vmatpush2.msra.mxu0 0.0
        %1212 = vmatprep.subr.mxu0 0.0
        %1213 = vmatpush2.msra.mxu0 0.0
        %1214 = vmatprep.subr.mxu0 0.0
        %1215 = vmatpush2.msra.mxu0 0.0
        %1216 = vmatprep.subr.mxu0 0.0
        %1217 = vmatpush2.msra.mxu0 0.0
        %1218 = vmatprep.subr.mxu0 0.0
        %1219 = vmatpush2.msra.mxu0 0.0
        %1220 = vmatprep.subr.mxu0 0.0
        %1221 = vmatpush2.msra.mxu0 0.0
        %1222 = vmatprep.mubr.f32.mxu0 0.0
        %1223 = vmatmul.mubr.f32.gmra.mxu0 %v1156
        %v1224 = vpop.f32.mrf.mxu0
        %v1225 = vadd.f32 0.0, %v1224
        %v1226 = vpop.f32.mrf.mxu0
        %1227 = vdwg.mxu0
        %v1228 = vadd.f32 %v1152, %v1225
        %v1229 = vld [vmem:[%s1 + $0x48] sm:$0x1]
        %v1230 = vlaneseq
        %v1231 = vshrl.u32 %v1230, 7
        %v1232 = vsub.s32 0, %v1231
        %v1233 = vrot.slane %v1229, %v1232
        %v1234 = vadd.f32 %v1228, %v1233
        %v1235 = vadd.f32 %v1234, %v278
        %v1236 = vld [vmem:[%s1 + $0x49] sm:$0x1]
        %v1237 = vld [vmem:[%s1 + $0x4a] sm:$0x1]
        %v1238 = vsel %vm254, %v1235, 0.0
        %1239 = vadd.xlane.f32.xlu0 %v1238
        %v1240 = vpop.xlane.xlu0 %1239
        %v1241 = vmul.f32 %v1240, %v258
        %v1242 = vsub.f32 %v1235, %v1241
        %v1243 = vmul.f32 %v1242, %v1242
        %v1244 = vsel %vm254, %v1243, 0.0
        %1245 = vadd.xlane.f32.xlu0 %v1244
        %v1246 = vpop.xlane.xlu0 %1245
        %v1247 = vmul.f32 %v1246, %v258
        %v1248 = vadd.f32 %v1247, 1e-12
        %v1249 = vrsqrt.pop %v1248
        %v1250 = vmul.f32 %v1242, %v1249
        %v1251 = vlaneseq
        %v1252 = vshrl.u32 %v1251, 7
        %v1253 = vsub.s32 0, %v1252
        %v1254 = vrot.slane %v1236, %v1253
        %v1255 = vmul.f32 %v1250, %v1254
        %v1256 = vlaneseq
        %v1257 = vshrl.u32 %v1256, 7
        %v1258 = vsub.s32 0, %v1257
        %v1259 = vrot.slane %v1237, %v1258
        %v1260 = vadd.f32 %v1255, %v1259
        %v1261 = vld [vmem:[%s4] sm:$0xff]
        %v1262 = vld [vmem:[%s4 + $0x8] sm:$0xff]
        %v1263 = vld [vmem:[%s4 + $0x10] sm:$0xff]
        %v1264 = vld [vmem:[%s4 + $0x18] sm:$0xff]
        %v1265 = vld [vmem:[%s4 + $0x20] sm:$0xff]
        %v1266 = vld [vmem:[%s4 + $0x28] sm:$0xff]
        %v1267 = vld [vmem:[%s4 + $0x30] sm:$0xff]
        %v1268 = vld [vmem:[%s4 + $0x38] sm:$0xff]
        %v1269 = vld [vmem:[%s4 + $0x40] sm:$0xff]
        %v1270 = vld [vmem:[%s4 + $0x48] sm:$0xff]
        %v1271 = vld [vmem:[%s4 + $0x50] sm:$0xff]
        %v1272 = vld [vmem:[%s4 + $0x58] sm:$0xff]
        %v1273 = vld [vmem:[%s4 + $0x60] sm:$0xff]
        %v1274 = vld [vmem:[%s4 + $0x68] sm:$0xff]
        %v1275 = vld [vmem:[%s4 + $0x70] sm:$0xff]
        %v1276 = vld [vmem:[%s4 + $0x78] sm:$0xff]
        %v1277 = vld [vmem:[%s4 + $0x80] sm:$0xff]
        %v1278 = vld [vmem:[%s4 + $0x88] sm:$0xff]
        %v1279 = vld [vmem:[%s4 + $0x90] sm:$0xff]
        %v1280 = vld [vmem:[%s4 + $0x98] sm:$0xff]
        %v1281 = vld [vmem:[%s1 + $0x4b] sm:$0x1]
        %v1282 = vlaneseq
        %v1283 = vshrl.u32 %v1282, 7
        %v1284 = vsub.s32 0, %v1283
        %v1285 = vrot.slane %v1281, %v1284
        %v1287 = vsel %vm254, %v1260, 0
        %1289 = vmatprep.subr.mxu0 0.0
        %1290 = vmatpush1.msra.mxu0 0.0
        %1291 = vmatprep.subr.mxu0 0.0
        %1292 = vmatpush1.msra.mxu0 0.0
        %1293 = vmatprep.subr.mxu0 0.0
        %1294 = vmatpush1.msra.mxu0 0.0
        %1295 = vmatprep.subr.mxu0 0.0
        %1296 = vmatpush1.msra.mxu0 0.0
        %1297 = vmatprep.subr.mxu0 0.0
        %1298 = vmatpush1.msra.mxu0 0.0
        %1299 = vmatprep.subr.mxu0 0.0
        %1300 = vmatpush1.msra.mxu0 0.0
        %1301 = vmatprep.subr.mxu0 0.0
        %1302 = vmatpush1.msra.mxu0 0.0
        %1303 = vmatprep.subr.mxu0 0.0
        %1304 = vmatpush1.msra.mxu0 0.0
        %1305 = vmatprep.subr.mxu0 0.0
        %1306 = vmatpush1.msra.mxu0 0.0
        %1307 = vmatprep.subr.mxu0 0.0
        %1308 = vmatpush1.msra.mxu0 0.0
        %1309 = vmatprep.subr.mxu0 0.0
        %1310 = vmatpush1.msra.mxu0 0.0
        %1311 = vmatprep.subr.mxu0 0.0
        %1312 = vmatpush1.msra.mxu0 0.0
        %1313 = vmatprep.subr.mxu0 0.0
        %1314 = vmatpush1.msra.mxu0 %v1264
        %1315 = vmatprep.subr.mxu0 0.0
        %1316 = vmatpush1.msra.mxu0 %v1263
        %1317 = vmatprep.subr.mxu0 0.0
        %1318 = vmatpush1.msra.mxu0 %v1262
        %1319 = vmatprep.subr.mxu0 0.0
        %1320 = vmatpush1.msra.mxu0 %v1261
        %1321 = vmatprep.subr.mxu0 0.0
        %1322 = vmatpush2.msra.mxu0 0.0
        %1323 = vmatprep.subr.mxu0 0.0
        %1324 = vmatpush2.msra.mxu0 0.0
        %1325 = vmatprep.subr.mxu0 0.0
        %1326 = vmatpush2.msra.mxu0 0.0
        %1327 = vmatprep.subr.mxu0 0.0
        %1328 = vmatpush2.msra.mxu0 0.0
        %1329 = vmatprep.subr.mxu0 0.0
        %1330 = vmatpush2.msra.mxu0 0.0
        %1331 = vmatprep.subr.mxu0 0.0
        %1332 = vmatpush2.msra.mxu0 0.0
        %1333 = vmatprep.subr.mxu0 0.0
        %1334 = vmatpush2.msra.mxu0 0.0
        %1335 = vmatprep.subr.mxu0 0.0
        %1336 = vmatpush2.msra.mxu0 0.0
        %1337 = vmatprep.subr.mxu0 0.0
        %1338 = vmatpush2.msra.mxu0 0.0
        %1339 = vmatprep.subr.mxu0 0.0
        %1340 = vmatpush2.msra.mxu0 0.0
        %1341 = vmatprep.subr.mxu0 0.0
        %1342 = vmatpush2.msra.mxu0 0.0
        %1343 = vmatprep.subr.mxu0 0.0
        %1344 = vmatpush2.msra.mxu0 0.0
        %1345 = vmatprep.subr.mxu0 0.0
        %1346 = vmatpush2.msra.mxu0 0.0
        %1347 = vmatprep.subr.mxu0 0.0
        %1348 = vmatpush2.msra.mxu0 0.0
        %1349 = vmatprep.subr.mxu0 0.0
        %1350 = vmatpush2.msra.mxu0 0.0
        %1351 = vmatprep.subr.mxu0 0.0
        %1352 = vmatpush2.msra.mxu0 0.0
        %1353 = vmatprep.mubr.f32.mxu0 0.0
        %1354 = vmatmul.mubr.f32.gmra.mxu0 %v1287
        %v1355 = vpop.f32.mrf.mxu0
        %v1356 = vadd.f32 %v1285, %v1355
        %v1357 = vpop.f32.mrf.mxu0
        %1358 = vdwg.mxu0
        %v1359 = vmul.f32 %v1356, 0.5
        %v1360 = vmul.f32 %v1356, 0.70710677
        %vm1361 = vcmp.lt.f32.partialorder %v1360, 0.0
        %v1362 = vsel %vm1361, -1.0, 1.0
        %v1363 = vand.u32 2147483647, %v1360
        %v1364 = vmul.f32 %v1363, 0.3275911
        %v1365 = vadd.f32 %v1364, 1.0
        %v1366 = vrcp.pop %v1365
        %v1367 = vmul.f32 1.0, %v1366
        %v1368 = vmul.f32 %v1367, 1.0614054
        %v1369 = vadd.f32 %v1368, -1.4531521
        %v1370 = vmul.f32 %v1369, %v1367
        %v1371 = vadd.f32 %v1370, 1.4214138
        %v1372 = vmul.f32 %v1371, %v1367
        %v1373 = vadd.f32 %v1372, -0.28449672
        %v1374 = vmul.f32 %v1373, %v1367
        %v1375 = vadd.f32 %v1374, 0.2548296
        %v1376 = vmul.f32 %v1375, %v1367
        %v1377 = vsub.f32 0.0, %v1363
        %v1378 = vmul.f32 %v1377, %v1363
        %v1379 = vmul.f32 %v1378, 1.442695
        %v1380 = vpow.pop %v1379
        %v1381 = vmul.f32 %v1376, %v1380
        %v1382 = vsub.f32 1.0, %v1381
        %v1383 = vmul.f32 %v1362, %v1382
        %v1384 = vadd.f32 %v1383, 1.0
        %v1385 = vmul.f32 %v1359, %v1384
        %v1386 = vld [vmem:[%s1 + $0x4c] sm:$0x1]
        %v1387 = vlaneseq
        %v1388 = vshrl.u32 %v1387, 7
        %v1389 = vsub.s32 0, %v1388
        %v1390 = vrot.slane %v1386, %v1389
        %1391 = vmatprep.subr.mxu0 0.0
        %1392 = vmatpush1.msra.mxu0 %v1280
        %1393 = vmatprep.subr.mxu0 0.0
        %1394 = vmatpush1.msra.mxu0 %v1279
        %1395 = vmatprep.subr.mxu0 0.0
        %1396 = vmatpush1.msra.mxu0 %v1278
        %1397 = vmatprep.subr.mxu0 0.0
        %1398 = vmatpush1.msra.mxu0 %v1277
        %1399 = vmatprep.subr.mxu0 0.0
        %1400 = vmatpush1.msra.mxu0 %v1276
        %1401 = vmatprep.subr.mxu0 0.0
        %1402 = vmatpush1.msra.mxu0 %v1275
        %1403 = vmatprep.subr.mxu0 0.0
        %1404 = vmatpush1.msra.mxu0 %v1274
        %1405 = vmatprep.subr.mxu0 0.0
        %1406 = vmatpush1.msra.mxu0 %v1273
        %1407 = vmatprep.subr.mxu0 0.0
        %1408 = vmatpush1.msra.mxu0 %v1272
        %1409 = vmatprep.subr.mxu0 0.0
        %1410 = vmatpush1.msra.mxu0 %v1271
        %1411 = vmatprep.subr.mxu0 0.0
        %1412 = vmatpush1.msra.mxu0 %v1270
        %1413 = vmatprep.subr.mxu0 0.0
        %1414 = vmatpush1.msra.mxu0 %v1269
        %1415 = vmatprep.subr.mxu0 0.0
        %1416 = vmatpush1.msra.mxu0 %v1268
        %1417 = vmatprep.subr.mxu0 0.0
        %1418 = vmatpush1.msra.mxu0 %v1267
        %1419 = vmatprep.subr.mxu0 0.0
        %1420 = vmatpush1.msra.mxu0 %v1266
        %1421 = vmatprep.subr.mxu0 0.0
        %1422 = vmatpush1.msra.mxu0 %v1265
        %1423 = vmatprep.subr.mxu0 0.0
        %1424 = vmatpush2.msra.mxu0 0.0
        %1425 = vmatprep.subr.mxu0 0.0
        %1426 = vmatpush2.msra.mxu0 0.0
        %1427 = vmatprep.subr.mxu0 0.0
        %1428 = vmatpush2.msra.mxu0 0.0
        %1429 = vmatprep.subr.mxu0 0.0
        %1430 = vmatpush2.msra.mxu0 0.0
        %1431 = vmatprep.subr.mxu0 0.0
        %1432 = vmatpush2.msra.mxu0 0.0
        %1433 = vmatprep.subr.mxu0 0.0
        %1434 = vmatpush2.msra.mxu0 0.0
        %1435 = vmatprep.subr.mxu0 0.0
        %1436 = vmatpush2.msra.mxu0 0.0
        %1437 = vmatprep.subr.mxu0 0.0
        %1438 = vmatpush2.msra.mxu0 0.0
        %1439 = vmatprep.subr.mxu0 0.0
        %1440 = vmatpush2.msra.mxu0 0.0
        %1441 = vmatprep.subr.mxu0 0.0
        %1442 = vmatpush2.msra.mxu0 0.0
        %1443 = vmatprep.subr.mxu0 0.0
        %1444 = vmatpush2.msra.mxu0 0.0
        %1445 = vmatprep.subr.mxu0 0.0
        %1446 = vmatpush2.msra.mxu0 0.0
        %1447 = vmatprep.subr.mxu0 0.0
        %1448 = vmatpush2.msra.mxu0 0.0
        %1449 = vmatprep.subr.mxu0 0.0
        %1450 = vmatpush2.msra.mxu0 0.0
        %1451 = vmatprep.subr.mxu0 0.0
        %1452 = vmatpush2.msra.mxu0 0.0
        %1453 = vmatprep.subr.mxu0 0.0
        %1454 = vmatpush2.msra.mxu0 0.0
        %1455 = vmatprep.mubr.f32.mxu0 0.0
        %1456 = vmatmul.mubr.f32.gmra.mxu0 %v1385
        %v1457 = vpop.f32.mrf.mxu0
        %v1458 = vadd.f32 %v1390, %v1457
        %v1459 = vpop.f32.mrf.mxu0
        %1460 = vdwg.mxu0
        %v1461 = vadd.f32 %v1458, %v1260
        %v1462 = vld [vmem:[%s1 + $0x4d] sm:$0x1]
        %v1463 = vld [vmem:[%s1 + $0x4e] sm:$0x1]
        %v1464 = vsel %vm254, %v1461, 0.0
        %1465 = vadd.xlane.f32.xlu0 %v1464
        %v1466 = vpop.xlane.xlu0 %1465
        %v1467 = vmul.f32 %v1466, %v258
        %v1468 = vsub.f32 %v1461, %v1467
        %v1469 = vmul.f32 %v1468, %v1468
        %v1470 = vsel %vm254, %v1469, 0.0
        %1471 = vadd.xlane.f32.xlu0 %v1470
        %v1472 = vpop.xlane.xlu0 %1471
        %v1473 = vmul.f32 %v1472, %v258
        %v1474 = vadd.f32 %v1473, 1e-12
        %v1475 = vrsqrt.pop %v1474
        %v1476 = vmul.f32 %v1468, %v1475
        %v1477 = vlaneseq
        %v1478 = vshrl.u32 %v1477, 7
        %v1479 = vsub.s32 0, %v1478
        %v1480 = vrot.slane %v1462, %v1479
        %v1481 = vmul.f32 %v1476, %v1480
        %v1482 = vlaneseq
        %v1483 = vshrl.u32 %v1482, 7
        %v1484 = vsub.s32 0, %v1483
        %v1485 = vrot.slane %v1463, %v1484
        %v1486 = vadd.f32 %v1481, %v1485
        %s1487 = scalar_lea.vmem %s2, 240
        %v1488 = vld [vmem:[%s1487] sm:$0xff]
        %v1489 = vld [vmem:[%s1487 + $0x8] sm:$0xff]
        %v1490 = vld [vmem:[%s1487 + $0x10] sm:$0xff]
        %v1491 = vld [vmem:[%s1487 + $0x18] sm:$0xff]
        %v1492 = vld [vmem:[%s1487 + $0x28] sm:$0xff]
        %v1493 = vld [vmem:[%s1487 + $0x30] sm:$0xff]
        %v1494 = vld [vmem:[%s1487 + $0x38] sm:$0xff]
        %v1495 = vld [vmem:[%s1487 + $0x40] sm:$0xff]
        %v1496 = vld [vmem:[%s1487 + $0x50] sm:$0xff]
        %v1497 = vld [vmem:[%s1487 + $0x58] sm:$0xff]
        %v1498 = vld [vmem:[%s1487 + $0x60] sm:$0xff]
        %v1499 = vld [vmem:[%s1487 + $0x68] sm:$0xff]
        %v1500 = vld [vmem:[%s1487 + $0x78] sm:$0xff]
        %v1501 = vld [vmem:[%s1487 + $0x80] sm:$0xff]
        %v1502 = vld [vmem:[%s1487 + $0x88] sm:$0xff]
        %v1503 = vld [vmem:[%s1487 + $0x90] sm:$0xff]
        %v1504 = vld [vmem:[%s1487 + $0xa0] sm:$0xff]
        %v1505 = vld [vmem:[%s1487 + $0xa8] sm:$0xff]
        %v1506 = vld [vmem:[%s1487 + $0xb0] sm:$0xff]
        %v1507 = vld [vmem:[%s1487 + $0xb8] sm:$0xff]
        %v1508 = vld [vmem:[%s1487 + $0xc8] sm:$0xff]
        %v1509 = vld [vmem:[%s1487 + $0xd0] sm:$0xff]
        %v1510 = vld [vmem:[%s1487 + $0xd8] sm:$0xff]
        %v1511 = vld [vmem:[%s1487 + $0xe0] sm:$0xff]
        %v1512 = vld [vmem:[%s1487 + $0x20] sm:$0x1]
        %v1513 = vld [vmem:[%s1487 + $0x48] sm:$0x1]
        %v1514 = vld [vmem:[%s1487 + $0x70] sm:$0x1]
        %v1515 = vld [vmem:[%s1487 + $0x98] sm:$0x1]
        %v1516 = vld [vmem:[%s1487 + $0xc0] sm:$0x1]
        %v1517 = vld [vmem:[%s1487 + $0xe8] sm:$0x1]
        %v1518 = vlaneseq
        %v1519 = vshrl.u32 %v1518, 7
        %v1520 = vsub.s32 0, %v1519
        %v1521 = vrot.slane %v1512, %v1520
        %v1522 = vlaneseq
        %v1523 = vshrl.u32 %v1522, 7
        %v1524 = vsub.s32 0, %v1523
        %v1525 = vrot.slane %v1513, %v1524
        %v1526 = vlaneseq
        %v1527 = vshrl.u32 %v1526, 7
        %v1528 = vsub.s32 0, %v1527
        %v1529 = vrot.slane %v1514, %v1528
        %v1530 = vlaneseq
        %v1531 = vshrl.u32 %v1530, 7
        %v1532 = vsub.s32 0, %v1531
        %v1533 = vrot.slane %v1515, %v1532
        %v1534 = vlaneseq
        %v1535 = vshrl.u32 %v1534, 7
        %v1536 = vsub.s32 0, %v1535
        %v1537 = vrot.slane %v1516, %v1536
        %v1538 = vlaneseq
        %v1539 = vshrl.u32 %v1538, 7
        %v1540 = vsub.s32 0, %v1539
        %v1541 = vrot.slane %v1517, %v1540
        %v1543 = vsel %vm254, %v1486, 0
        %1545 = vmatprep.subr.mxu0 0.0
        %1546 = vmatpush1.msra.mxu0 0.0
        %1547 = vmatprep.subr.mxu0 0.0
        %1548 = vmatpush1.msra.mxu0 0.0
        %1549 = vmatprep.subr.mxu0 0.0
        %1550 = vmatpush1.msra.mxu0 0.0
        %1551 = vmatprep.subr.mxu0 0.0
        %1552 = vmatpush1.msra.mxu0 0.0
        %1553 = vmatprep.subr.mxu0 0.0
        %1554 = vmatpush1.msra.mxu0 0.0
        %1555 = vmatprep.subr.mxu0 0.0
        %1556 = vmatpush1.msra.mxu0 0.0
        %1557 = vmatprep.subr.mxu0 0.0
        %1558 = vmatpush1.msra.mxu0 0.0
        %1559 = vmatprep.subr.mxu0 0.0
        %1560 = vmatpush1.msra.mxu0 0.0
        %1561 = vmatprep.subr.mxu0 0.0
        %1562 = vmatpush1.msra.mxu0 0.0
        %1563 = vmatprep.subr.mxu0 0.0
        %1564 = vmatpush1.msra.mxu0 0.0
        %1565 = vmatprep.subr.mxu0 0.0
        %1566 = vmatpush1.msra.mxu0 0.0
        %1567 = vmatprep.subr.mxu0 0.0
        %1568 = vmatpush1.msra.mxu0 0.0
        %1569 = vmatprep.subr.mxu0 0.0
        %1570 = vmatpush1.msra.mxu0 %v1491
        %1571 = vmatprep.subr.mxu0 0.0
        %1572 = vmatpush1.msra.mxu0 %v1490
        %1573 = vmatprep.subr.mxu0 0.0
        %1574 = vmatpush1.msra.mxu0 %v1489
        %1575 = vmatprep.subr.mxu0 0.0
        %1576 = vmatpush1.msra.mxu0 %v1488
        %1577 = vmatprep.subr.mxu0 0.0
        %1578 = vmatpush2.msra.mxu0 0.0
        %1579 = vmatprep.subr.mxu0 0.0
        %1580 = vmatpush2.msra.mxu0 0.0
        %1581 = vmatprep.subr.mxu0 0.0
        %1582 = vmatpush2.msra.mxu0 0.0
        %1583 = vmatprep.subr.mxu0 0.0
        %1584 = vmatpush2.msra.mxu0 0.0
        %1585 = vmatprep.subr.mxu0 0.0
        %1586 = vmatpush2.msra.mxu0 0.0
        %1587 = vmatprep.subr.mxu0 0.0
        %1588 = vmatpush2.msra.mxu0 0.0
        %1589 = vmatprep.subr.mxu0 0.0
        %1590 = vmatpush2.msra.mxu0 0.0
        %1591 = vmatprep.subr.mxu0 0.0
        %1592 = vmatpush2.msra.mxu0 0.0
        %1593 = vmatprep.subr.mxu0 0.0
        %1594 = vmatpush2.msra.mxu0 0.0
        %1595 = vmatprep.subr.mxu0 0.0
        %1596 = vmatpush2.msra.mxu0 0.0
        %1597 = vmatprep.subr.mxu0 0.0
        %1598 = vmatpush2.msra.mxu0 0.0
        %1599 = vmatprep.subr.mxu0 0.0
        %1600 = vmatpush2.msra.mxu0 0.0
        %1601 = vmatprep.subr.mxu0 0.0
        %1602 = vmatpush2.msra.mxu0 0.0
        %1603 = vmatprep.subr.mxu0 0.0
        %1604 = vmatpush2.msra.mxu0 0.0
        %1605 = vmatprep.subr.mxu0 0.0
        %1606 = vmatpush2.msra.mxu0 0.0
        %1607 = vmatprep.subr.mxu0 0.0
        %1608 = vmatpush2.msra.mxu0 0.0
        %1609 = vmatprep.mubr.f32.mxu0 0.0
        %1610 = vmatmul.mubr.f32.gmra.mxu0 %v1543
        %v1611 = vpop.f32.mrf.mxu0
        %v1612 = vadd.f32 %v1521, %v1611
        %v1613 = vpop.f32.mrf.mxu0
        %1614 = vdwg.mxu0
        %1615 = vmatprep.subr.mxu0 0.0
        %1616 = vmatpush1.msra.mxu0 0.0
        %1617 = vmatprep.subr.mxu0 0.0
        %1618 = vmatpush1.msra.mxu0 0.0
        %1619 = vmatprep.subr.mxu0 0.0
        %1620 = vmatpush1.msra.mxu0 0.0
        %1621 = vmatprep.subr.mxu0 0.0
        %1622 = vmatpush1.msra.mxu0 0.0
        %1623 = vmatprep.subr.mxu0 0.0
        %1624 = vmatpush1.msra.mxu0 0.0
        %1625 = vmatprep.subr.mxu0 0.0
        %1626 = vmatpush1.msra.mxu0 0.0
        %1627 = vmatprep.subr.mxu0 0.0
        %1628 = vmatpush1.msra.mxu0 0.0
        %1629 = vmatprep.subr.mxu0 0.0
        %1630 = vmatpush1.msra.mxu0 0.0
        %1631 = vmatprep.subr.mxu0 0.0
        %1632 = vmatpush1.msra.mxu0 0.0
        %1633 = vmatprep.subr.mxu0 0.0
        %1634 = vmatpush1.msra.mxu0 0.0
        %1635 = vmatprep.subr.mxu0 0.0
        %1636 = vmatpush1.msra.mxu0 0.0
        %1637 = vmatprep.subr.mxu0 0.0
        %1638 = vmatpush1.msra.mxu0 0.0
        %1639 = vmatprep.subr.mxu0 0.0
        %1640 = vmatpush1.msra.mxu0 %v1495
        %1641 = vmatprep.subr.mxu0 0.0
        %1642 = vmatpush1.msra.mxu0 %v1494
        %1643 = vmatprep.subr.mxu0 0.0
        %1644 = vmatpush1.msra.mxu0 %v1493
        %1645 = vmatprep.subr.mxu0 0.0
        %1646 = vmatpush1.msra.mxu0 %v1492
        %1647 = vmatprep.subr.mxu0 0.0
        %1648 = vmatpush2.msra.mxu0 0.0
        %1649 = vmatprep.subr.mxu0 0.0
        %1650 = vmatpush2.msra.mxu0 0.0
        %1651 = vmatprep.subr.mxu0 0.0
        %1652 = vmatpush2.msra.mxu0 0.0
        %1653 = vmatprep.subr.mxu0 0.0
        %1654 = vmatpush2.msra.mxu0 0.0
        %1655 = vmatprep.subr.mxu0 0.0
        %1656 = vmatpush2.msra.mxu0 0.0
        %1657 = vmatprep.subr.mxu0 0.0
        %1658 = vmatpush2.msra.mxu0 0.0
        %1659 = vmatprep.subr.mxu0 0.0
        %1660 = vmatpush2.msra.mxu0 0.0
        %1661 = vmatprep.subr.mxu0 0.0
        %1662 = vmatpush2.msra.mxu0 0.0
        %1663 = vmatprep.subr.mxu0 0.0
        %1664 = vmatpush2.msra.mxu0 0.0
        %1665 = vmatprep.subr.mxu0 0.0
        %1666 = vmatpush2.msra.mxu0 0.0
        %1667 = vmatprep.subr.mxu0 0.0
        %1668 = vmatpush2.msra.mxu0 0.0
        %1669 = vmatprep.subr.mxu0 0.0
        %1670 = vmatpush2.msra.mxu0 0.0
        %1671 = vmatprep.subr.mxu0 0.0
        %1672 = vmatpush2.msra.mxu0 0.0
        %1673 = vmatprep.subr.mxu0 0.0
        %1674 = vmatpush2.msra.mxu0 0.0
        %1675 = vmatprep.subr.mxu0 0.0
        %1676 = vmatpush2.msra.mxu0 0.0
        %1677 = vmatprep.subr.mxu0 0.0
        %1678 = vmatpush2.msra.mxu0 0.0
        %1679 = vmatprep.mubr.f32.mxu0 0.0
        %1680 = vmatmul.mubr.f32.gmra.mxu0 %v1543
        %v1681 = vpop.f32.mrf.mxu0
        %v1682 = vadd.f32 %v1525, %v1681
        %v1683 = vpop.f32.mrf.mxu0
        %1684 = vdwg.mxu0
        %1685 = vmatprep.subr.mxu0 0.0
        %1686 = vmatpush1.msra.mxu0 0.0
        %1687 = vmatprep.subr.mxu0 0.0
        %1688 = vmatpush1.msra.mxu0 0.0
        %1689 = vmatprep.subr.mxu0 0.0
        %1690 = vmatpush1.msra.mxu0 0.0
        %1691 = vmatprep.subr.mxu0 0.0
        %1692 = vmatpush1.msra.mxu0 0.0
        %1693 = vmatprep.subr.mxu0 0.0
        %1694 = vmatpush1.msra.mxu0 0.0
        %1695 = vmatprep.subr.mxu0 0.0
        %1696 = vmatpush1.msra.mxu0 0.0
        %1697 = vmatprep.subr.mxu0 0.0
        %1698 = vmatpush1.msra.mxu0 0.0
        %1699 = vmatprep.subr.mxu0 0.0
        %1700 = vmatpush1.msra.mxu0 0.0
        %1701 = vmatprep.subr.mxu0 0.0
        %1702 = vmatpush1.msra.mxu0 0.0
        %1703 = vmatprep.subr.mxu0 0.0
        %1704 = vmatpush1.msra.mxu0 0.0
        %1705 = vmatprep.subr.mxu0 0.0
        %1706 = vmatpush1.msra.mxu0 0.0
        %1707 = vmatprep.subr.mxu0 0.0
        %1708 = vmatpush1.msra.mxu0 0.0
        %1709 = vmatprep.subr.mxu0 0.0
        %1710 = vmatpush1.msra.mxu0 %v1499
        %1711 = vmatprep.subr.mxu0 0.0
        %1712 = vmatpush1.msra.mxu0 %v1498
        %1713 = vmatprep.subr.mxu0 0.0
        %1714 = vmatpush1.msra.mxu0 %v1497
        %1715 = vmatprep.subr.mxu0 0.0
        %1716 = vmatpush1.msra.mxu0 %v1496
        %1717 = vmatprep.subr.mxu0 0.0
        %1718 = vmatpush2.msra.mxu0 0.0
        %1719 = vmatprep.subr.mxu0 0.0
        %1720 = vmatpush2.msra.mxu0 0.0
        %1721 = vmatprep.subr.mxu0 0.0
        %1722 = vmatpush2.msra.mxu0 0.0
        %1723 = vmatprep.subr.mxu0 0.0
        %1724 = vmatpush2.msra.mxu0 0.0
        %1725 = vmatprep.subr.mxu0 0.0
        %1726 = vmatpush2.msra.mxu0 0.0
        %1727 = vmatprep.subr.mxu0 0.0
        %1728 = vmatpush2.msra.mxu0 0.0
        %1729 = vmatprep.subr.mxu0 0.0
        %1730 = vmatpush2.msra.mxu0 0.0
        %1731 = vmatprep.subr.mxu0 0.0
        %1732 = vmatpush2.msra.mxu0 0.0
        %1733 = vmatprep.subr.mxu0 0.0
        %1734 = vmatpush2.msra.mxu0 0.0
        %1735 = vmatprep.subr.mxu0 0.0
        %1736 = vmatpush2.msra.mxu0 0.0
        %1737 = vmatprep.subr.mxu0 0.0
        %1738 = vmatpush2.msra.mxu0 0.0
        %1739 = vmatprep.subr.mxu0 0.0
        %1740 = vmatpush2.msra.mxu0 0.0
        %1741 = vmatprep.subr.mxu0 0.0
        %1742 = vmatpush2.msra.mxu0 0.0
        %1743 = vmatprep.subr.mxu0 0.0
        %1744 = vmatpush2.msra.mxu0 0.0
        %1745 = vmatprep.subr.mxu0 0.0
        %1746 = vmatpush2.msra.mxu0 0.0
        %1747 = vmatprep.subr.mxu0 0.0
        %1748 = vmatpush2.msra.mxu0 0.0
        %1749 = vmatprep.mubr.f32.mxu0 0.0
        %1750 = vmatmul.mubr.f32.gmra.mxu0 %v1543
        %v1751 = vpop.f32.mrf.mxu0
        %v1752 = vadd.f32 %v1529, %v1751
        %v1753 = vpop.f32.mrf.mxu0
        %1754 = vdwg.mxu0
        %1755 = vmatprep.subr.mxu0 0.0
        %1756 = vmatpush1.msra.mxu0 0.0
        %1757 = vmatprep.subr.mxu0 0.0
        %1758 = vmatpush1.msra.mxu0 0.0
        %1759 = vmatprep.subr.mxu0 0.0
        %1760 = vmatpush1.msra.mxu0 0.0
        %1761 = vmatprep.subr.mxu0 0.0
        %1762 = vmatpush1.msra.mxu0 0.0
        %1763 = vmatprep.subr.mxu0 0.0
        %1764 = vmatpush1.msra.mxu0 0.0
        %1765 = vmatprep.subr.mxu0 0.0
        %1766 = vmatpush1.msra.mxu0 0.0
        %1767 = vmatprep.subr.mxu0 0.0
        %1768 = vmatpush1.msra.mxu0 0.0
        %1769 = vmatprep.subr.mxu0 0.0
        %1770 = vmatpush1.msra.mxu0 0.0
        %1771 = vmatprep.subr.mxu0 0.0
        %1772 = vmatpush1.msra.mxu0 0.0
        %1773 = vmatprep.subr.mxu0 0.0
        %1774 = vmatpush1.msra.mxu0 0.0
        %1775 = vmatprep.subr.mxu0 0.0
        %1776 = vmatpush1.msra.mxu0 0.0
        %1777 = vmatprep.subr.mxu0 0.0
        %1778 = vmatpush1.msra.mxu0 0.0
        %1779 = vmatprep.subr.mxu0 0.0
        %1780 = vmatpush1.msra.mxu0 %v1503
        %1781 = vmatprep.subr.mxu0 0.0
        %1782 = vmatpush1.msra.mxu0 %v1502
        %1783 = vmatprep.subr.mxu0 0.0
        %1784 = vmatpush1.msra.mxu0 %v1501
        %1785 = vmatprep.subr.mxu0 0.0
        %1786 = vmatpush1.msra.mxu0 %v1500
        %1787 = vmatprep.subr.mxu0 0.0
        %1788 = vmatpush2.msra.mxu0 0.0
        %1789 = vmatprep.subr.mxu0 0.0
        %1790 = vmatpush2.msra.mxu0 0.0
        %1791 = vmatprep.subr.mxu0 0.0
        %1792 = vmatpush2.msra.mxu0 0.0
        %1793 = vmatprep.subr.mxu0 0.0
        %1794 = vmatpush2.msra.mxu0 0.0
        %1795 = vmatprep.subr.mxu0 0.0
        %1796 = vmatpush2.msra.mxu0 0.0
        %1797 = vmatprep.subr.mxu0 0.0
        %1798 = vmatpush2.msra.mxu0 0.0
        %1799 = vmatprep.subr.mxu0 0.0
        %1800 = vmatpush2.msra.mxu0 0.0
        %1801 = vmatprep.subr.mxu0 0.0
        %1802 = vmatpush2.msra.mxu0 0.0
        %1803 = vmatprep.subr.mxu0 0.0
        %1804 = vmatpush2.msra.mxu0 0.0
        %1805 = vmatprep.subr.mxu0 0.0
        %1806 = vmatpush2.msra.mxu0 0.0
        %1807 = vmatprep.subr.mxu0 0.0
        %1808 = vmatpush2.msra.mxu0 0.0
        %1809 = vmatprep.subr.mxu0 0.0
        %1810 = vmatpush2.msra.mxu0 0.0
        %1811 = vmatprep.subr.mxu0 0.0
        %1812 = vmatpush2.msra.mxu0 0.0
        %1813 = vmatprep.subr.mxu0 0.0
        %1814 = vmatpush2.msra.mxu0 0.0
        %1815 = vmatprep.subr.mxu0 0.0
        %1816 = vmatpush2.msra.mxu0 0.0
        %1817 = vmatprep.subr.mxu0 0.0
        %1818 = vmatpush2.msra.mxu0 0.0
        %1819 = vmatprep.mubr.f32.mxu0 0.0
        %1820 = vmatmul.mubr.f32.gmra.mxu0 %v1543
        %v1821 = vpop.f32.mrf.mxu0
        %v1822 = vadd.f32 %v1533, %v1821
        %v1823 = vpop.f32.mrf.mxu0
        %1824 = vdwg.mxu0
        %1825 = vmatprep.subr.mxu0 0.0
        %1826 = vmatpush1.msra.mxu0 0.0
        %1827 = vmatprep.subr.mxu0 0.0
        %1828 = vmatpush1.msra.mxu0 0.0
        %1829 = vmatprep.subr.mxu0 0.0
        %1830 = vmatpush1.msra.mxu0 0.0
        %1831 = vmatprep.subr.mxu0 0.0
        %1832 = vmatpush1.msra.mxu0 0.0
        %1833 = vmatprep.subr.mxu0 0.0
        %1834 = vmatpush1.msra.mxu0 0.0
        %1835 = vmatprep.subr.mxu0 0.0
        %1836 = vmatpush1.msra.mxu0 0.0
        %1837 = vmatprep.subr.mxu0 0.0
        %1838 = vmatpush1.msra.mxu0 0.0
        %1839 = vmatprep.subr.mxu0 0.0
        %1840 = vmatpush1.msra.mxu0 0.0
        %1841 = vmatprep.subr.mxu0 0.0
        %1842 = vmatpush1.msra.mxu0 0.0
        %1843 = vmatprep.subr.mxu0 0.0
        %1844 = vmatpush1.msra.mxu0 0.0
        %1845 = vmatprep.subr.mxu0 0.0
        %1846 = vmatpush1.msra.mxu0 0.0
        %1847 = vmatprep.subr.mxu0 0.0
        %1848 = vmatpush1.msra.mxu0 0.0
        %1849 = vmatprep.subr.mxu0 0.0
        %1850 = vmatpush1.msra.mxu0 %v1507
        %1851 = vmatprep.subr.mxu0 0.0
        %1852 = vmatpush1.msra.mxu0 %v1506
        %1853 = vmatprep.subr.mxu0 0.0
        %1854 = vmatpush1.msra.mxu0 %v1505
        %1855 = vmatprep.subr.mxu0 0.0
        %1856 = vmatpush1.msra.mxu0 %v1504
        %1857 = vmatprep.subr.mxu0 0.0
        %1858 = vmatpush2.msra.mxu0 0.0
        %1859 = vmatprep.subr.mxu0 0.0
        %1860 = vmatpush2.msra.mxu0 0.0
        %1861 = vmatprep.subr.mxu0 0.0
        %1862 = vmatpush2.msra.mxu0 0.0
        %1863 = vmatprep.subr.mxu0 0.0
        %1864 = vmatpush2.msra.mxu0 0.0
        %1865 = vmatprep.subr.mxu0 0.0
        %1866 = vmatpush2.msra.mxu0 0.0
        %1867 = vmatprep.subr.mxu0 0.0
        %1868 = vmatpush2.msra.mxu0 0.0
        %1869 = vmatprep.subr.mxu0 0.0
        %1870 = vmatpush2.msra.mxu0 0.0
        %1871 = vmatprep.subr.mxu0 0.0
        %1872 = vmatpush2.msra.mxu0 0.0
        %1873 = vmatprep.subr.mxu0 0.0
        %1874 = vmatpush2.msra.mxu0 0.0
        %1875 = vmatprep.subr.mxu0 0.0
        %1876 = vmatpush2.msra.mxu0 0.0
        %1877 = vmatprep.subr.mxu0 0.0
        %1878 = vmatpush2.msra.mxu0 0.0
        %1879 = vmatprep.subr.mxu0 0.0
        %1880 = vmatpush2.msra.mxu0 0.0
        %1881 = vmatprep.subr.mxu0 0.0
        %1882 = vmatpush2.msra.mxu0 0.0
        %1883 = vmatprep.subr.mxu0 0.0
        %1884 = vmatpush2.msra.mxu0 0.0
        %1885 = vmatprep.subr.mxu0 0.0
        %1886 = vmatpush2.msra.mxu0 0.0
        %1887 = vmatprep.subr.mxu0 0.0
        %1888 = vmatpush2.msra.mxu0 0.0
        %1889 = vmatprep.mubr.f32.mxu0 0.0
        %1890 = vmatmul.mubr.f32.gmra.mxu0 %v1543
        %v1891 = vpop.f32.mrf.mxu0
        %v1892 = vadd.f32 %v1537, %v1891
        %v1893 = vpop.f32.mrf.mxu0
        %1894 = vdwg.mxu0
        %1895 = vmatprep.subr.mxu0 0.0
        %1896 = vmatpush1.msra.mxu0 0.0
        %1897 = vmatprep.subr.mxu0 0.0
        %1898 = vmatpush1.msra.mxu0 0.0
        %1899 = vmatprep.subr.mxu0 0.0
        %1900 = vmatpush1.msra.mxu0 0.0
        %1901 = vmatprep.subr.mxu0 0.0
        %1902 = vmatpush1.msra.mxu0 0.0
        %1903 = vmatprep.subr.mxu0 0.0
        %1904 = vmatpush1.msra.mxu0 0.0
        %1905 = vmatprep.subr.mxu0 0.0
        %1906 = vmatpush1.msra.mxu0 0.0
        %1907 = vmatprep.subr.mxu0 0.0
        %1908 = vmatpush1.msra.mxu0 0.0
        %1909 = vmatprep.subr.mxu0 0.0
        %1910 = vmatpush1.msra.mxu0 0.0
        %1911 = vmatprep.subr.mxu0 0.0
        %1912 = vmatpush1.msra.mxu0 0.0
        %1913 = vmatprep.subr.mxu0 0.0
        %1914 = vmatpush1.msra.mxu0 0.0
        %1915 = vmatprep.subr.mxu0 0.0
        %1916 = vmatpush1.msra.mxu0 0.0
        %1917 = vmatprep.subr.mxu0 0.0
        %1918 = vmatpush1.msra.mxu0 0.0
        %1919 = vmatprep.subr.mxu0 0.0
        %1920 = vmatpush1.msra.mxu0 %v1511
        %1921 = vmatprep.subr.mxu0 0.0
        %1922 = vmatpush1.msra.mxu0 %v1510
        %1923 = vmatprep.subr.mxu0 0.0
        %1924 = vmatpush1.msra.mxu0 %v1509
        %1925 = vmatprep.subr.mxu0 0.0
        %1926 = vmatpush1.msra.mxu0 %v1508
        %1927 = vmatprep.subr.mxu0 0.0
        %1928 = vmatpush2.msra.mxu0 0.0
        %1929 = vmatprep.subr.mxu0 0.0
        %1930 = vmatpush2.msra.mxu0 0.0
        %1931 = vmatprep.subr.mxu0 0.0
        %1932 = vmatpush2.msra.mxu0 0.0
        %1933 = vmatprep.subr.mxu0 0.0
        %1934 = vmatpush2.msra.mxu0 0.0
        %1935 = vmatprep.subr.mxu0 0.0
        %1936 = vmatpush2.msra.mxu0 0.0
        %1937 = vmatprep.subr.mxu0 0.0
        %1938 = vmatpush2.msra.mxu0 0.0
        %1939 = vmatprep.subr.mxu0 0.0
        %1940 = vmatpush2.msra.mxu0 0.0
        %1941 = vmatprep.subr.mxu0 0.0
        %1942 = vmatpush2.msra.mxu0 0.0
        %1943 = vmatprep.subr.mxu0 0.0
        %1944 = vmatpush2.msra.mxu0 0.0
        %1945 = vmatprep.subr.mxu0 0.0
        %1946 = vmatpush2.msra.mxu0 0.0
        %1947 = vmatprep.subr.mxu0 0.0
        %1948 = vmatpush2.msra.mxu0 0.0
        %1949 = vmatprep.subr.mxu0 0.0
        %1950 = vmatpush2.msra.mxu0 0.0
        %1951 = vmatprep.subr.mxu0 0.0
        %1952 = vmatpush2.msra.mxu0 0.0
        %1953 = vmatprep.subr.mxu0 0.0
        %1954 = vmatpush2.msra.mxu0 0.0
        %1955 = vmatprep.subr.mxu0 0.0
        %1956 = vmatpush2.msra.mxu0 0.0
        %1957 = vmatprep.subr.mxu0 0.0
        %1958 = vmatpush2.msra.mxu0 0.0
        %1959 = vmatprep.mubr.f32.mxu0 0.0
        %1960 = vmatmul.mubr.f32.gmra.mxu0 %v1543
        %v1961 = vpop.f32.mrf.mxu0
        %v1962 = vadd.f32 %v1541, %v1961
        %v1963 = vpop.f32.mrf.mxu0
        %1964 = vdwg.mxu0
        %v1966 = vsel %vm756, %v1612, 0
        %v1969 = vsel %vm756, %v1752, 0
        %1971 = vmatprep.subr.mxu0 0.0
        %1972 = vmatpush1.xpose.msra.mxu0 0.0
        %1973 = vmatprep.subr.mxu0 0.0
        %1974 = vmatpush1.xpose.msra.mxu0 0.0
        %1975 = vmatprep.subr.mxu0 0.0
        %1976 = vmatpush1.xpose.msra.mxu0 0.0
        %1977 = vmatprep.subr.mxu0 0.0
        %1978 = vmatpush1.xpose.msra.mxu0 0.0
        %1979 = vmatprep.subr.mxu0 0.0
        %1980 = vmatpush1.xpose.msra.mxu0 0.0
        %1981 = vmatprep.subr.mxu0 0.0
        %1982 = vmatpush1.xpose.msra.mxu0 0.0
        %1983 = vmatprep.subr.mxu0 0.0
        %1984 = vmatpush1.xpose.msra.mxu0 0.0
        %1985 = vmatprep.subr.mxu0 0.0
        %1986 = vmatpush1.xpose.msra.mxu0 0.0
        %1987 = vmatprep.subr.mxu0 0.0
        %1988 = vmatpush1.xpose.msra.mxu0 0.0
        %1989 = vmatprep.subr.mxu0 0.0
        %1990 = vmatpush1.xpose.msra.mxu0 0.0
        %1991 = vmatprep.subr.mxu0 0.0
        %1992 = vmatpush1.xpose.msra.mxu0 0.0
        %1993 = vmatprep.subr.mxu0 0.0
        %1994 = vmatpush1.xpose.msra.mxu0 0.0
        %1995 = vmatprep.subr.mxu0 0.0
        %1996 = vmatpush1.xpose.msra.mxu0 0.0
        %1997 = vmatprep.subr.mxu0 0.0
        %1998 = vmatpush1.xpose.msra.mxu0 0.0
        %1999 = vmatprep.subr.mxu0 0.0
        %2000 = vmatpush1.xpose.msra.mxu0 0.0
        %2001 = vmatprep.subr.mxu0 0.0
        %2002 = vmatpush1.xpose.msra.mxu0 %v1969
        %2003 = vmatprep.subr.mxu0 0.0
        %2004 = vmatpush2.xpose.msra.mxu0 0.0
        %2005 = vmatprep.subr.mxu0 0.0
        %2006 = vmatpush2.xpose.msra.mxu0 0.0
        %2007 = vmatprep.subr.mxu0 0.0
        %2008 = vmatpush2.xpose.msra.mxu0 0.0
        %2009 = vmatprep.subr.mxu0 0.0
        %2010 = vmatpush2.xpose.msra.mxu0 0.0
        %2011 = vmatprep.subr.mxu0 0.0
        %2012 = vmatpush2.xpose.msra.mxu0 0.0
        %2013 = vmatprep.subr.mxu0 0.0
        %2014 = vmatpush2.xpose.msra.mxu0 0.0
        %2015 = vmatprep.subr.mxu0 0.0
        %2016 = vmatpush2.xpose.msra.mxu0 0.0
        %2017 = vmatprep.subr.mxu0 0.0
        %2018 = vmatpush2.xpose.msra.mxu0 0.0
        %2019 = vmatprep.subr.mxu0 0.0
        %2020 = vmatpush2.xpose.msra.mxu0 0.0
        %2021 = vmatprep.subr.mxu0 0.0
        %2022 = vmatpush2.xpose.msra.mxu0 0.0
        %2023 = vmatprep.subr.mxu0 0.0
        %2024 = vmatpush2.xpose.msra.mxu0 0.0
        %2025 = vmatprep.subr.mxu0 0.0
        %2026 = vmatpush2.xpose.msra.mxu0 0.0
        %2027 = vmatprep.subr.mxu0 0.0
        %2028 = vmatpush2.xpose.msra.mxu0 0.0
        %2029 = vmatprep.subr.mxu0 0.0
        %2030 = vmatpush2.xpose.msra.mxu0 0.0
        %2031 = vmatprep.subr.mxu0 0.0
        %2032 = vmatpush2.xpose.msra.mxu0 0.0
        %2033 = vmatprep.subr.mxu0 0.0
        %2034 = vmatpush2.xpose.msra.mxu0 0.0
        %2035 = vmatprep.mubr.f32.mxu0 0.0
        %2036 = vmatmul.mubr.f32.gmra.mxu0 %v1966
        %v2037 = vpop.f32.mrf.mxu0
        %v2038 = vadd.f32 0.0, %v2037
        %v2039 = vpop.f32.mrf.mxu0
        %2040 = vdwg.mxu0
        %v2042 = vsel %vm756, %v1682, 0
        %v2045 = vsel %vm756, %v1822, 0
        %2047 = vmatprep.subr.mxu0 0.0
        %2048 = vmatpush1.xpose.msra.mxu0 0.0
        %2049 = vmatprep.subr.mxu0 0.0
        %2050 = vmatpush1.xpose.msra.mxu0 0.0
        %2051 = vmatprep.subr.mxu0 0.0
        %2052 = vmatpush1.xpose.msra.mxu0 0.0
        %2053 = vmatprep.subr.mxu0 0.0
        %2054 = vmatpush1.xpose.msra.mxu0 0.0
        %2055 = vmatprep.subr.mxu0 0.0
        %2056 = vmatpush1.xpose.msra.mxu0 0.0
        %2057 = vmatprep.subr.mxu0 0.0
        %2058 = vmatpush1.xpose.msra.mxu0 0.0
        %2059 = vmatprep.subr.mxu0 0.0
        %2060 = vmatpush1.xpose.msra.mxu0 0.0
        %2061 = vmatprep.subr.mxu0 0.0
        %2062 = vmatpush1.xpose.msra.mxu0 0.0
        %2063 = vmatprep.subr.mxu0 0.0
        %2064 = vmatpush1.xpose.msra.mxu0 0.0
        %2065 = vmatprep.subr.mxu0 0.0
        %2066 = vmatpush1.xpose.msra.mxu0 0.0
        %2067 = vmatprep.subr.mxu0 0.0
        %2068 = vmatpush1.xpose.msra.mxu0 0.0
        %2069 = vmatprep.subr.mxu0 0.0
        %2070 = vmatpush1.xpose.msra.mxu0 0.0
        %2071 = vmatprep.subr.mxu0 0.0
        %2072 = vmatpush1.xpose.msra.mxu0 0.0
        %2073 = vmatprep.subr.mxu0 0.0
        %2074 = vmatpush1.xpose.msra.mxu0 0.0
        %2075 = vmatprep.subr.mxu0 0.0
        %2076 = vmatpush1.xpose.msra.mxu0 0.0
        %2077 = vmatprep.subr.mxu0 0.0
        %2078 = vmatpush1.xpose.msra.mxu0 %v2045
        %2079 = vmatprep.subr.mxu0 0.0
        %2080 = vmatpush2.xpose.msra.mxu0 0.0
        %2081 = vmatprep.subr.mxu0 0.0
        %2082 = vmatpush2.xpose.msra.mxu0 0.0
        %2083 = vmatprep.subr.mxu0 0.0
        %2084 = vmatpush2.xpose.msra.mxu0 0.0
        %2085 = vmatprep.subr.mxu0 0.0
        %2086 = vmatpush2.xpose.msra.mxu0 0.0
        %2087 = vmatprep.subr.mxu0 0.0
        %2088 = vmatpush2.xpose.msra.mxu0 0.0
        %2089 = vmatprep.subr.mxu0 0.0
        %2090 = vmatpush2.xpose.msra.mxu0 0.0
        %2091 = vmatprep.subr.mxu0 0.0
        %2092 = vmatpush2.xpose.msra.mxu0 0.0
        %2093 = vmatprep.subr.mxu0 0.0
        %2094 = vmatpush2.xpose.msra.mxu0 0.0
        %2095 = vmatprep.subr.mxu0 0.0
        %2096 = vmatpush2.xpose.msra.mxu0 0.0
        %2097 = vmatprep.subr.mxu0 0.0
        %2098 = vmatpush2.xpose.msra.mxu0 0.0
        %2099 = vmatprep.subr.mxu0 0.0
        %2100 = vmatpush2.xpose.msra.mxu0 0.0
        %2101 = vmatprep.subr.mxu0 0.0
        %2102 = vmatpush2.xpose.msra.mxu0 0.0
        %2103 = vmatprep.subr.mxu0 0.0
        %2104 = vmatpush2.xpose.msra.mxu0 0.0
        %2105 = vmatprep.subr.mxu0 0.0
        %2106 = vmatpush2.xpose.msra.mxu0 0.0
        %2107 = vmatprep.subr.mxu0 0.0
        %2108 = vmatpush2.xpose.msra.mxu0 0.0
        %2109 = vmatprep.subr.mxu0 0.0
        %2110 = vmatpush2.xpose.msra.mxu0 0.0
        %2111 = vmatprep.mubr.f32.mxu0 0.0
        %2112 = vmatmul.mubr.f32.gmra.mxu0 %v2042
        %v2113 = vpop.f32.mrf.mxu0
        %v2114 = vadd.f32 0.0, %v2113
        %v2115 = vpop.f32.mrf.mxu0
        %2116 = vdwg.mxu0
        %v2117 = vsel %vm909, %v2038, -inf
        %2118 = vmax.xlane.f32.xlu0 %v2117
        %v2119 = vpop.xlane.xlu0 %2118
        %v2120 = vsel %vm909, %v2114, -inf
        %2121 = vmax.xlane.f32.xlu0 %v2120
        %v2122 = vpop.xlane.xlu0 %2121
        %v2123 = vsub.f32 %v2038, %v2119
        %v2124 = vsub.f32 %v2114, %v2122
        %v2125 = vmul.f32 %v2123, 1.442695
        %v2126 = vpow.pop %v2125
        %v2127 = vmul.f32 %v2124, 1.442695
        %v2128 = vpow.pop %v2127
        %v2129 = vsel %vm909, %v2126, 0.0
        %2130 = vadd.xlane.f32.xlu0 %v2129
        %v2131 = vpop.xlane.xlu0 %2130
        %v2132 = vsel %vm909, %v2128, 0.0
        %2133 = vadd.xlane.f32.xlu0 %v2132
        %v2134 = vpop.xlane.xlu0 %2133
        %v2135 = vrcp.pop %v2131
        %v2136 = vrcp.pop %v2134
        %v2137 = vmul.f32 %v2126, %v2135
        %v2138 = vmul.f32 %v2128, %v2136
        %v2140 = vsel %vm909, %v2137, 0
        %2142 = vmatprep.subr.mxu0 0.0
        %2143 = vmatpush1.msra.mxu0 0.0
        %2144 = vmatprep.subr.mxu0 0.0
        %2145 = vmatpush1.msra.mxu0 0.0
        %2146 = vmatprep.subr.mxu0 0.0
        %2147 = vmatpush1.msra.mxu0 0.0
        %2148 = vmatprep.subr.mxu0 0.0
        %2149 = vmatpush1.msra.mxu0 0.0
        %2150 = vmatprep.subr.mxu0 0.0
        %2151 = vmatpush1.msra.mxu0 0.0
        %2152 = vmatprep.subr.mxu0 0.0
        %2153 = vmatpush1.msra.mxu0 0.0
        %2154 = vmatprep.subr.mxu0 0.0
        %2155 = vmatpush1.msra.mxu0 0.0
        %2156 = vmatprep.subr.mxu0 0.0
        %2157 = vmatpush1.msra.mxu0 0.0
        %2158 = vmatprep.subr.mxu0 0.0
        %2159 = vmatpush1.msra.mxu0 0.0
        %2160 = vmatprep.subr.mxu0 0.0
        %2161 = vmatpush1.msra.mxu0 0.0
        %2162 = vmatprep.subr.mxu0 0.0
        %2163 = vmatpush1.msra.mxu0 0.0
        %2164 = vmatprep.subr.mxu0 0.0
        %2165 = vmatpush1.msra.mxu0 0.0
        %2166 = vmatprep.subr.mxu0 0.0
        %2167 = vmatpush1.msra.mxu0 0.0
        %2168 = vmatprep.subr.mxu0 0.0
        %2169 = vmatpush1.msra.mxu0 0.0
        %2170 = vmatprep.subr.mxu0 0.0
        %2171 = vmatpush1.msra.mxu0 0.0
        %2172 = vmatprep.subr.mxu0 0.0
        %2173 = vmatpush1.msra.mxu0 %v1892
        %2174 = vmatprep.subr.mxu0 0.0
        %2175 = vmatpush2.msra.mxu0 0.0
        %2176 = vmatprep.subr.mxu0 0.0
        %2177 = vmatpush2.msra.mxu0 0.0
        %2178 = vmatprep.subr.mxu0 0.0
        %2179 = vmatpush2.msra.mxu0 0.0
        %2180 = vmatprep.subr.mxu0 0.0
        %2181 = vmatpush2.msra.mxu0 0.0
        %2182 = vmatprep.subr.mxu0 0.0
        %2183 = vmatpush2.msra.mxu0 0.0
        %2184 = vmatprep.subr.mxu0 0.0
        %2185 = vmatpush2.msra.mxu0 0.0
        %2186 = vmatprep.subr.mxu0 0.0
        %2187 = vmatpush2.msra.mxu0 0.0
        %2188 = vmatprep.subr.mxu0 0.0
        %2189 = vmatpush2.msra.mxu0 0.0
        %2190 = vmatprep.subr.mxu0 0.0
        %2191 = vmatpush2.msra.mxu0 0.0
        %2192 = vmatprep.subr.mxu0 0.0
        %2193 = vmatpush2.msra.mxu0 0.0
        %2194 = vmatprep.subr.mxu0 0.0
        %2195 = vmatpush2.msra.mxu0 0.0
        %2196 = vmatprep.subr.mxu0 0.0
        %2197 = vmatpush2.msra.mxu0 0.0
        %2198 = vmatprep.subr.mxu0 0.0
        %2199 = vmatpush2.msra.mxu0 0.0
        %2200 = vmatprep.subr.mxu0 0.0
        %2201 = vmatpush2.msra.mxu0 0.0
        %2202 = vmatprep.subr.mxu0 0.0
        %2203 = vmatpush2.msra.mxu0 0.0
        %2204 = vmatprep.subr.mxu0 0.0
        %2205 = vmatpush2.msra.mxu0 0.0
        %2206 = vmatprep.mubr.f32.mxu0 0.0
        %2207 = vmatmul.mubr.f32.gmra.mxu0 %v2140
        %v2208 = vpop.f32.mrf.mxu0
        %v2209 = vadd.f32 0.0, %v2208
        %v2210 = vpop.f32.mrf.mxu0
        %2211 = vdwg.mxu0
        %v2213 = vsel %vm909, %v2138, 0
        %2215 = vmatprep.subr.mxu0 0.0
        %2216 = vmatpush1.msra.mxu0 0.0
        %2217 = vmatprep.subr.mxu0 0.0
        %2218 = vmatpush1.msra.mxu0 0.0
        %2219 = vmatprep.subr.mxu0 0.0
        %2220 = vmatpush1.msra.mxu0 0.0
        %2221 = vmatprep.subr.mxu0 0.0
        %2222 = vmatpush1.msra.mxu0 0.0
        %2223 = vmatprep.subr.mxu0 0.0
        %2224 = vmatpush1.msra.mxu0 0.0
        %2225 = vmatprep.subr.mxu0 0.0
        %2226 = vmatpush1.msra.mxu0 0.0
        %2227 = vmatprep.subr.mxu0 0.0
        %2228 = vmatpush1.msra.mxu0 0.0
        %2229 = vmatprep.subr.mxu0 0.0
        %2230 = vmatpush1.msra.mxu0 0.0
        %2231 = vmatprep.subr.mxu0 0.0
        %2232 = vmatpush1.msra.mxu0 0.0
        %2233 = vmatprep.subr.mxu0 0.0
        %2234 = vmatpush1.msra.mxu0 0.0
        %2235 = vmatprep.subr.mxu0 0.0
        %2236 = vmatpush1.msra.mxu0 0.0
        %2237 = vmatprep.subr.mxu0 0.0
        %2238 = vmatpush1.msra.mxu0 0.0
        %2239 = vmatprep.subr.mxu0 0.0
        %2240 = vmatpush1.msra.mxu0 0.0
        %2241 = vmatprep.subr.mxu0 0.0
        %2242 = vmatpush1.msra.mxu0 0.0
        %2243 = vmatprep.subr.mxu0 0.0
        %2244 = vmatpush1.msra.mxu0 0.0
        %2245 = vmatprep.subr.mxu0 0.0
        %2246 = vmatpush1.msra.mxu0 %v1962
        %2247 = vmatprep.subr.mxu0 0.0
        %2248 = vmatpush2.msra.mxu0 0.0
        %2249 = vmatprep.subr.mxu0 0.0
        %2250 = vmatpush2.msra.mxu0 0.0
        %2251 = vmatprep.subr.mxu0 0.0
        %2252 = vmatpush2.msra.mxu0 0.0
        %2253 = vmatprep.subr.mxu0 0.0
        %2254 = vmatpush2.msra.mxu0 0.0
        %2255 = vmatprep.subr.mxu0 0.0
        %2256 = vmatpush2.msra.mxu0 0.0
        %2257 = vmatprep.subr.mxu0 0.0
        %2258 = vmatpush2.msra.mxu0 0.0
        %2259 = vmatprep.subr.mxu0 0.0
        %2260 = vmatpush2.msra.mxu0 0.0
        %2261 = vmatprep.subr.mxu0 0.0
        %2262 = vmatpush2.msra.mxu0 0.0
        %2263 = vmatprep.subr.mxu0 0.0
        %2264 = vmatpush2.msra.mxu0 0.0
        %2265 = vmatprep.subr.mxu0 0.0
        %2266 = vmatpush2.msra.mxu0 0.0
        %2267 = vmatprep.subr.mxu0 0.0
        %2268 = vmatpush2.msra.mxu0 0.0
        %2269 = vmatprep.subr.mxu0 0.0
        %2270 = vmatpush2.msra.mxu0 0.0
        %2271 = vmatprep.subr.mxu0 0.0
        %2272 = vmatpush2.msra.mxu0 0.0
        %2273 = vmatprep.subr.mxu0 0.0
        %2274 = vmatpush2.msra.mxu0 0.0
        %2275 = vmatprep.subr.mxu0 0.0
        %2276 = vmatpush2.msra.mxu0 0.0
        %2277 = vmatprep.subr.mxu0 0.0
        %2278 = vmatpush2.msra.mxu0 0.0
        %2279 = vmatprep.mubr.f32.mxu0 0.0
        %2280 = vmatmul.mubr.f32.gmra.mxu0 %v2213
        %v2281 = vpop.f32.mrf.mxu0
        %v2282 = vadd.f32 0.0, %v2281
        %v2283 = vpop.f32.mrf.mxu0
        %2284 = vdwg.mxu0
        %s2285 = scalar_lea.vmem %s3, 32
        %v2286 = vld [vmem:[%s2285] sm:$0xff]
        %v2287 = vld [vmem:[%s2285 + $0x8] sm:$0xff]
        %v2288 = vld [vmem:[%s2285 + $0x10] sm:$0xff]
        %v2289 = vld [vmem:[%s2285 + $0x18] sm:$0xff]
        %v2291 = vsel %vm756, %v2209, 0
        %2293 = vmatprep.subr.mxu0 0.0
        %2294 = vmatpush1.msra.mxu0 0.0
        %2295 = vmatprep.subr.mxu0 0.0
        %2296 = vmatpush1.msra.mxu0 0.0
        %2297 = vmatprep.subr.mxu0 0.0
        %2298 = vmatpush1.msra.mxu0 0.0
        %2299 = vmatprep.subr.mxu0 0.0
        %2300 = vmatpush1.msra.mxu0 0.0
        %2301 = vmatprep.subr.mxu0 0.0
        %2302 = vmatpush1.msra.mxu0 0.0
        %2303 = vmatprep.subr.mxu0 0.0
        %2304 = vmatpush1.msra.mxu0 0.0
        %2305 = vmatprep.subr.mxu0 0.0
        %2306 = vmatpush1.msra.mxu0 0.0
        %2307 = vmatprep.subr.mxu0 0.0
        %2308 = vmatpush1.msra.mxu0 0.0
        %2309 = vmatprep.subr.mxu0 0.0
        %2310 = vmatpush1.msra.mxu0 0.0
        %2311 = vmatprep.subr.mxu0 0.0
        %2312 = vmatpush1.msra.mxu0 0.0
        %2313 = vmatprep.subr.mxu0 0.0
        %2314 = vmatpush1.msra.mxu0 0.0
        %2315 = vmatprep.subr.mxu0 0.0
        %2316 = vmatpush1.msra.mxu0 0.0
        %2317 = vmatprep.subr.mxu0 0.0
        %2318 = vmatpush1.msra.mxu0 0.0
        %2319 = vmatprep.subr.mxu0 0.0
        %2320 = vmatpush1.msra.mxu0 0.0
        %2321 = vmatprep.subr.mxu0 0.0
        %2322 = vmatpush1.msra.mxu0 %v2287
        %2323 = vmatprep.subr.mxu0 0.0
        %2324 = vmatpush1.msra.mxu0 %v2286
        %2325 = vmatprep.subr.mxu0 0.0
        %2326 = vmatpush2.msra.mxu0 0.0
        %2327 = vmatprep.subr.mxu0 0.0
        %2328 = vmatpush2.msra.mxu0 0.0
        %2329 = vmatprep.subr.mxu0 0.0
        %2330 = vmatpush2.msra.mxu0 0.0
        %2331 = vmatprep.subr.mxu0 0.0
        %2332 = vmatpush2.msra.mxu0 0.0
        %2333 = vmatprep.subr.mxu0 0.0
        %2334 = vmatpush2.msra.mxu0 0.0
        %2335 = vmatprep.subr.mxu0 0.0
        %2336 = vmatpush2.msra.mxu0 0.0
        %2337 = vmatprep.subr.mxu0 0.0
        %2338 = vmatpush2.msra.mxu0 0.0
        %2339 = vmatprep.subr.mxu0 0.0
        %2340 = vmatpush2.msra.mxu0 0.0
        %2341 = vmatprep.subr.mxu0 0.0
        %2342 = vmatpush2.msra.mxu0 0.0
        %2343 = vmatprep.subr.mxu0 0.0
        %2344 = vmatpush2.msra.mxu0 0.0
        %2345 = vmatprep.subr.mxu0 0.0
        %2346 = vmatpush2.msra.mxu0 0.0
        %2347 = vmatprep.subr.mxu0 0.0
        %2348 = vmatpush2.msra.mxu0 0.0
        %2349 = vmatprep.subr.mxu0 0.0
        %2350 = vmatpush2.msra.mxu0 0.0
        %2351 = vmatprep.subr.mxu0 0.0
        %2352 = vmatpush2.msra.mxu0 0.0
        %2353 = vmatprep.subr.mxu0 0.0
        %2354 = vmatpush2.msra.mxu0 0.0
        %2355 = vmatprep.subr.mxu0 0.0
        %2356 = vmatpush2.msra.mxu0 0.0
        %2357 = vmatprep.mubr.f32.mxu0 0.0
        %2358 = vmatmul.mubr.f32.gmra.mxu0 %v2291
        %v2359 = vpop.f32.mrf.mxu0
        %v2360 = vadd.f32 0.0, %v2359
        %v2361 = vpop.f32.mrf.mxu0
        %2362 = vdwg.mxu0
        %v2364 = vsel %vm756, %v2282, 0
        %2366 = vmatprep.subr.mxu0 0.0
        %2367 = vmatpush1.msra.mxu0 0.0
        %2368 = vmatprep.subr.mxu0 0.0
        %2369 = vmatpush1.msra.mxu0 0.0
        %2370 = vmatprep.subr.mxu0 0.0
        %2371 = vmatpush1.msra.mxu0 0.0
        %2372 = vmatprep.subr.mxu0 0.0
        %2373 = vmatpush1.msra.mxu0 0.0
        %2374 = vmatprep.subr.mxu0 0.0
        %2375 = vmatpush1.msra.mxu0 0.0
        %2376 = vmatprep.subr.mxu0 0.0
        %2377 = vmatpush1.msra.mxu0 0.0
        %2378 = vmatprep.subr.mxu0 0.0
        %2379 = vmatpush1.msra.mxu0 0.0
        %2380 = vmatprep.subr.mxu0 0.0
        %2381 = vmatpush1.msra.mxu0 0.0
        %2382 = vmatprep.subr.mxu0 0.0
        %2383 = vmatpush1.msra.mxu0 0.0
        %2384 = vmatprep.subr.mxu0 0.0
        %2385 = vmatpush1.msra.mxu0 0.0
        %2386 = vmatprep.subr.mxu0 0.0
        %2387 = vmatpush1.msra.mxu0 0.0
        %2388 = vmatprep.subr.mxu0 0.0
        %2389 = vmatpush1.msra.mxu0 0.0
        %2390 = vmatprep.subr.mxu0 0.0
        %2391 = vmatpush1.msra.mxu0 0.0
        %2392 = vmatprep.subr.mxu0 0.0
        %2393 = vmatpush1.msra.mxu0 0.0
        %2394 = vmatprep.subr.mxu0 0.0
        %2395 = vmatpush1.msra.mxu0 %v2289
        %2396 = vmatprep.subr.mxu0 0.0
        %2397 = vmatpush1.msra.mxu0 %v2288
        %2398 = vmatprep.subr.mxu0 0.0
        %2399 = vmatpush2.msra.mxu0 0.0
        %2400 = vmatprep.subr.mxu0 0.0
        %2401 = vmatpush2.msra.mxu0 0.0
        %2402 = vmatprep.subr.mxu0 0.0
        %2403 = vmatpush2.msra.mxu0 0.0
        %2404 = vmatprep.subr.mxu0 0.0
        %2405 = vmatpush2.msra.mxu0 0.0
        %2406 = vmatprep.subr.mxu0 0.0
        %2407 = vmatpush2.msra.mxu0 0.0
        %2408 = vmatprep.subr.mxu0 0.0
        %2409 = vmatpush2.msra.mxu0 0.0
        %2410 = vmatprep.subr.mxu0 0.0
        %2411 = vmatpush2.msra.mxu0 0.0
        %2412 = vmatprep.subr.mxu0 0.0
        %2413 = vmatpush2.msra.mxu0 0.0
        %2414 = vmatprep.subr.mxu0 0.0
        %2415 = vmatpush2.msra.mxu0 0.0
        %2416 = vmatprep.subr.mxu0 0.0
        %2417 = vmatpush2.msra.mxu0 0.0
        %2418 = vmatprep.subr.mxu0 0.0
        %2419 = vmatpush2.msra.mxu0 0.0
        %2420 = vmatprep.subr.mxu0 0.0
        %2421 = vmatpush2.msra.mxu0 0.0
        %2422 = vmatprep.subr.mxu0 0.0
        %2423 = vmatpush2.msra.mxu0 0.0
        %2424 = vmatprep.subr.mxu0 0.0
        %2425 = vmatpush2.msra.mxu0 0.0
        %2426 = vmatprep.subr.mxu0 0.0
        %2427 = vmatpush2.msra.mxu0 0.0
        %2428 = vmatprep.subr.mxu0 0.0
        %2429 = vmatpush2.msra.mxu0 0.0
        %2430 = vmatprep.mubr.f32.mxu0 0.0
        %2431 = vmatmul.mubr.f32.gmra.mxu0 %v2364
        %v2432 = vpop.f32.mrf.mxu0
        %v2433 = vadd.f32 0.0, %v2432
        %v2434 = vpop.f32.mrf.mxu0
        %2435 = vdwg.mxu0
        %v2436 = vadd.f32 %v2360, %v2433
        %v2437 = vld [vmem:[%s1 + $0x50] sm:$0x1]
        %v2438 = vlaneseq
        %v2439 = vshrl.u32 %v2438, 7
        %v2440 = vsub.s32 0, %v2439
        %v2441 = vrot.slane %v2437, %v2440
        %v2442 = vadd.f32 %v2436, %v2441
        %v2443 = vadd.f32 %v2442, %v1486
        %v2444 = vld [vmem:[%s1 + $0x51] sm:$0x1]
        %v2445 = vld [vmem:[%s1 + $0x52] sm:$0x1]
        %v2446 = vsel %vm254, %v2443, 0.0
        %2447 = vadd.xlane.f32.xlu0 %v2446
        %v2448 = vpop.xlane.xlu0 %2447
        %v2449 = vmul.f32 %v2448, %v258
        %v2450 = vsub.f32 %v2443, %v2449
        %v2451 = vmul.f32 %v2450, %v2450
        %v2452 = vsel %vm254, %v2451, 0.0
        %2453 = vadd.xlane.f32.xlu0 %v2452
        %v2454 = vpop.xlane.xlu0 %2453
        %v2455 = vmul.f32 %v2454, %v258
        %v2456 = vadd.f32 %v2455, 1e-12
        %v2457 = vrsqrt.pop %v2456
        %v2458 = vmul.f32 %v2450, %v2457
        %v2459 = vlaneseq
        %v2460 = vshrl.u32 %v2459, 7
        %v2461 = vsub.s32 0, %v2460
        %v2462 = vrot.slane %v2444, %v2461
        %v2463 = vmul.f32 %v2458, %v2462
        %v2464 = vlaneseq
        %v2465 = vshrl.u32 %v2464, 7
        %v2466 = vsub.s32 0, %v2465
        %v2467 = vrot.slane %v2445, %v2466
        %v2468 = vadd.f32 %v2463, %v2467
        %s2469 = scalar_lea.vmem %s4, 160
        %v2470 = vld [vmem:[%s2469] sm:$0xff]
        %v2471 = vld [vmem:[%s2469 + $0x8] sm:$0xff]
        %v2472 = vld [vmem:[%s2469 + $0x10] sm:$0xff]
        %v2473 = vld [vmem:[%s2469 + $0x18] sm:$0xff]
        %v2474 = vld [vmem:[%s2469 + $0x20] sm:$0xff]
        %v2475 = vld [vmem:[%s2469 + $0x28] sm:$0xff]
        %v2476 = vld [vmem:[%s2469 + $0x30] sm:$0xff]
        %v2477 = vld [vmem:[%s2469 + $0x38] sm:$0xff]
        %v2478 = vld [vmem:[%s2469 + $0x40] sm:$0xff]
        %v2479 = vld [vmem:[%s2469 + $0x48] sm:$0xff]
        %v2480 = vld [vmem:[%s2469 + $0x50] sm:$0xff]
        %v2481 = vld [vmem:[%s2469 + $0x58] sm:$0xff]
        %v2482 = vld [vmem:[%s2469 + $0x60] sm:$0xff]
        %v2483 = vld [vmem:[%s2469 + $0x68] sm:$0xff]
        %v2484 = vld [vmem:[%s2469 + $0x70] sm:$0xff]
        %v2485 = vld [vmem:[%s2469 + $0x78] sm:$0xff]
        %v2486 = vld [vmem:[%s2469 + $0x80] sm:$0xff]
        %v2487 = vld [vmem:[%s2469 + $0x88] sm:$0xff]
        %v2488 = vld [vmem:[%s2469 + $0x90] sm:$0xff]
        %v2489 = vld [vmem:[%s2469 + $0x98] sm:$0xff]
        %v2490 = vld [vmem:[%s1 + $0x53] sm:$0x1]
        %v2491 = vlaneseq
        %v2492 = vshrl.u32 %v2491, 7
        %v2493 = vsub.s32 0, %v2492
        %v2494 = vrot.slane %v2490, %v2493
        %v2496 = vsel %vm254, %v2468, 0
        %2498 = vmatprep.subr.mxu0 0.0
        %2499 = vmatpush1.msra.mxu0 0.0
        %2500 = vmatprep.subr.mxu0 0.0
        %2501 = vmatpush1.msra.mxu0 0.0
        %2502 = vmatprep.subr.mxu0 0.0
        %2503 = vmatpush1.msra.mxu0 0.0
        %2504 = vmatprep.subr.mxu0 0.0
        %2505 = vmatpush1.msra.mxu0 0.0
        %2506 = vmatprep.subr.mxu0 0.0
        %2507 = vmatpush1.msra.mxu0 0.0
        %2508 = vmatprep.subr.mxu0 0.0
        %2509 = vmatpush1.msra.mxu0 0.0
        %2510 = vmatprep.subr.mxu0 0.0
        %2511 = vmatpush1.msra.mxu0 0.0
        %2512 = vmatprep.subr.mxu0 0.0
        %2513 = vmatpush1.msra.mxu0 0.0
        %2514 = vmatprep.subr.mxu0 0.0
        %2515 = vmatpush1.msra.mxu0 0.0
        %2516 = vmatprep.subr.mxu0 0.0
        %2517 = vmatpush1.msra.mxu0 0.0
        %2518 = vmatprep.subr.mxu0 0.0
        %2519 = vmatpush1.msra.mxu0 0.0
        %2520 = vmatprep.subr.mxu0 0.0
        %2521 = vmatpush1.msra.mxu0 0.0
        %2522 = vmatprep.subr.mxu0 0.0
        %2523 = vmatpush1.msra.mxu0 %v2473
        %2524 = vmatprep.subr.mxu0 0.0
        %2525 = vmatpush1.msra.mxu0 %v2472
        %2526 = vmatprep.subr.mxu0 0.0
        %2527 = vmatpush1.msra.mxu0 %v2471
        %2528 = vmatprep.subr.mxu0 0.0
        %2529 = vmatpush1.msra.mxu0 %v2470
        %2530 = vmatprep.subr.mxu0 0.0
        %2531 = vmatpush2.msra.mxu0 0.0
        %2532 = vmatprep.subr.mxu0 0.0
        %2533 = vmatpush2.msra.mxu0 0.0
        %2534 = vmatprep.subr.mxu0 0.0
        %2535 = vmatpush2.msra.mxu0 0.0
        %2536 = vmatprep.subr.mxu0 0.0
        %2537 = vmatpush2.msra.mxu0 0.0
        %2538 = vmatprep.subr.mxu0 0.0
        %2539 = vmatpush2.msra.mxu0 0.0
        %2540 = vmatprep.subr.mxu0 0.0
        %2541 = vmatpush2.msra.mxu0 0.0
        %2542 = vmatprep.subr.mxu0 0.0
        %2543 = vmatpush2.msra.mxu0 0.0
        %2544 = vmatprep.subr.mxu0 0.0
        %2545 = vmatpush2.msra.mxu0 0.0
        %2546 = vmatprep.subr.mxu0 0.0
        %2547 = vmatpush2.msra.mxu0 0.0
        %2548 = vmatprep.subr.mxu0 0.0
        %2549 = vmatpush2.msra.mxu0 0.0
        %2550 = vmatprep.subr.mxu0 0.0
        %2551 = vmatpush2.msra.mxu0 0.0
        %2552 = vmatprep.subr.mxu0 0.0
        %2553 = vmatpush2.msra.mxu0 0.0
        %2554 = vmatprep.subr.mxu0 0.0
        %2555 = vmatpush2.msra.mxu0 0.0
        %2556 = vmatprep.subr.mxu0 0.0
        %2557 = vmatpush2.msra.mxu0 0.0
        %2558 = vmatprep.subr.mxu0 0.0
        %2559 = vmatpush2.msra.mxu0 0.0
        %2560 = vmatprep.subr.mxu0 0.0
        %2561 = vmatpush2.msra.mxu0 0.0
        %2562 = vmatprep.mubr.f32.mxu0 0.0
        %2563 = vmatmul.mubr.f32.gmra.mxu0 %v2496
        %v2564 = vpop.f32.mrf.mxu0
        %v2565 = vadd.f32 %v2494, %v2564
        %v2566 = vpop.f32.mrf.mxu0
        %2567 = vdwg.mxu0
        %v2568 = vmul.f32 %v2565, 0.5
        %v2569 = vmul.f32 %v2565, 0.70710677
        %vm2570 = vcmp.lt.f32.partialorder %v2569, 0.0
        %v2571 = vsel %vm2570, -1.0, 1.0
        %v2572 = vand.u32 2147483647, %v2569
        %v2573 = vmul.f32 %v2572, 0.3275911
        %v2574 = vadd.f32 %v2573, 1.0
        %v2575 = vrcp.pop %v2574
        %v2576 = vmul.f32 1.0, %v2575
        %v2577 = vmul.f32 %v2576, 1.0614054
        %v2578 = vadd.f32 %v2577, -1.4531521
        %v2579 = vmul.f32 %v2578, %v2576
        %v2580 = vadd.f32 %v2579, 1.4214138
        %v2581 = vmul.f32 %v2580, %v2576
        %v2582 = vadd.f32 %v2581, -0.28449672
        %v2583 = vmul.f32 %v2582, %v2576
        %v2584 = vadd.f32 %v2583, 0.2548296
        %v2585 = vmul.f32 %v2584, %v2576
        %v2586 = vsub.f32 0.0, %v2572
        %v2587 = vmul.f32 %v2586, %v2572
        %v2588 = vmul.f32 %v2587, 1.442695
        %v2589 = vpow.pop %v2588
        %v2590 = vmul.f32 %v2585, %v2589
        %v2591 = vsub.f32 1.0, %v2590
        %v2592 = vmul.f32 %v2571, %v2591
        %v2593 = vadd.f32 %v2592, 1.0
        %v2594 = vmul.f32 %v2568, %v2593
        %v2595 = vld [vmem:[%s1 + $0x54] sm:$0x1]
        %v2596 = vlaneseq
        %v2597 = vshrl.u32 %v2596, 7
        %v2598 = vsub.s32 0, %v2597
        %v2599 = vrot.slane %v2595, %v2598
        %2600 = vmatprep.subr.mxu0 0.0
        %2601 = vmatpush1.msra.mxu0 %v2489
        %2602 = vmatprep.subr.mxu0 0.0
        %2603 = vmatpush1.msra.mxu0 %v2488
        %2604 = vmatprep.subr.mxu0 0.0
        %2605 = vmatpush1.msra.mxu0 %v2487
        %2606 = vmatprep.subr.mxu0 0.0
        %2607 = vmatpush1.msra.mxu0 %v2486
        %2608 = vmatprep.subr.mxu0 0.0
        %2609 = vmatpush1.msra.mxu0 %v2485
        %2610 = vmatprep.subr.mxu0 0.0
        %2611 = vmatpush1.msra.mxu0 %v2484
        %2612 = vmatprep.subr.mxu0 0.0
        %2613 = vmatpush1.msra.mxu0 %v2483
        %2614 = vmatprep.subr.mxu0 0.0
        %2615 = vmatpush1.msra.mxu0 %v2482
        %2616 = vmatprep.subr.mxu0 0.0
        %2617 = vmatpush1.msra.mxu0 %v2481
        %2618 = vmatprep.subr.mxu0 0.0
        %2619 = vmatpush1.msra.mxu0 %v2480
        %2620 = vmatprep.subr.mxu0 0.0
        %2621 = vmatpush1.msra.mxu0 %v2479
        %2622 = vmatprep.subr.mxu0 0.0
        %2623 = vmatpush1.msra.mxu0 %v2478
        %2624 = vmatprep.subr.mxu0 0.0
        %2625 = vmatpush1.msra.mxu0 %v2477
        %2626 = vmatprep.subr.mxu0 0.0
        %2627 = vmatpush1.msra.mxu0 %v2476
        %2628 = vmatprep.subr.mxu0 0.0
        %2629 = vmatpush1.msra.mxu0 %v2475
        %2630 = vmatprep.subr.mxu0 0.0
        %2631 = vmatpush1.msra.mxu0 %v2474
        %2632 = vmatprep.subr.mxu0 0.0
        %2633 = vmatpush2.msra.mxu0 0.0
        %2634 = vmatprep.subr.mxu0 0.0
        %2635 = vmatpush2.msra.mxu0 0.0
        %2636 = vmatprep.subr.mxu0 0.0
        %2637 = vmatpush2.msra.mxu0 0.0
        %2638 = vmatprep.subr.mxu0 0.0
        %2639 = vmatpush2.msra.mxu0 0.0
        %2640 = vmatprep.subr.mxu0 0.0
        %2641 = vmatpush2.msra.mxu0 0.0
        %2642 = vmatprep.subr.mxu0 0.0
        %2643 = vmatpush2.msra.mxu0 0.0
        %2644 = vmatprep.subr.mxu0 0.0
        %2645 = vmatpush2.msra.mxu0 0.0
        %2646 = vmatprep.subr.mxu0 0.0
        %2647 = vmatpush2.msra.mxu0 0.0
        %2648 = vmatprep.subr.mxu0 0.0
        %2649 = vmatpush2.msra.mxu0 0.0
        %2650 = vmatprep.subr.mxu0 0.0
        %2651 = vmatpush2.msra.mxu0 0.0
        %2652 = vmatprep.subr.mxu0 0.0
        %2653 = vmatpush2.msra.mxu0 0.0
        %2654 = vmatprep.subr.mxu0 0.0
        %2655 = vmatpush2.msra.mxu0 0.0
        %2656 = vmatprep.subr.mxu0 0.0
        %2657 = vmatpush2.msra.mxu0 0.0
        %2658 = vmatprep.subr.mxu0 0.0
        %2659 = vmatpush2.msra.mxu0 0.0
        %2660 = vmatprep.subr.mxu0 0.0
        %2661 = vmatpush2.msra.mxu0 0.0
        %2662 = vmatprep.subr.mxu0 0.0
        %2663 = vmatpush2.msra.mxu0 0.0
        %2664 = vmatprep.mubr.f32.mxu0 0.0
        %2665 = vmatmul.mubr.f32.gmra.mxu0 %v2594
        %v2666 = vpop.f32.mrf.mxu0
        %v2667 = vadd.f32 %v2599, %v2666
        %v2668 = vpop.f32.mrf.mxu0
        %2669 = vdwg.mxu0
        %v2670 = vadd.f32 %v2667, %v2468
        %v2671 = vld [vmem:[%s1 + $0x55] sm:$0x1]
        %v2672 = vld [vmem:[%s1 + $0x56] sm:$0x1]
        %v2673 = vsel %vm254, %v2670, 0.0
        %2674 = vadd.xlane.f32.xlu0 %v2673
        %v2675 = vpop.xlane.xlu0 %2674
        %v2676 = vmul.f32 %v2675, %v258
        %v2677 = vsub.f32 %v2670, %v2676
        %v2678 = vmul.f32 %v2677, %v2677
        %v2679 = vsel %vm254, %v2678, 0.0
        %2680 = vadd.xlane.f32.xlu0 %v2679
        %v2681 = vpop.xlane.xlu0 %2680
        %v2682 = vmul.f32 %v2681, %v258
        %v2683 = vadd.f32 %v2682, 1e-12
        %v2684 = vrsqrt.pop %v2683
        %v2685 = vmul.f32 %v2677, %v2684
        %v2686 = vlaneseq
        %v2687 = vshrl.u32 %v2686, 7
        %v2688 = vsub.s32 0, %v2687
        %v2689 = vrot.slane %v2671, %v2688
        %v2690 = vmul.f32 %v2685, %v2689
        %v2691 = vlaneseq
        %v2692 = vshrl.u32 %v2691, 7
        %v2693 = vsub.s32 0, %v2692
        %v2694 = vrot.slane %v2672, %v2693
        %v2695 = vadd.f32 %v2690, %v2694
        %2696 = vst.msk [vmem:[%s182] sm:$0xff] %vm254, %v2695
        %s2697 = sand.u32 %s117, 1
        %s2698 = scalar_lea.sflag [#allocation5], %s2697
        %s2699 = sand.u32 %s117, 1
        %s2700 = smul.addr %s2699, 8
        %s2701 = scalar_lea.vmem [#allocation4], %s2700
        // Predicated region
        $region37: #{tpu_custom_call.1} parent=35 // pred_check
          %p2702 = pneg %p127
        $region38: #{tpu_custom_call.1} parent=35 // pred_check_branch
          %2704 = sbr.rel (%p2702) target = $region40
        $region39: #{tpu_custom_call.1} parent=35 // pred_region
          %s2706 = ssub.s32 128, 128
          %2707 = vsyncadd %s2698, %s2706
          %s2708 = smul.addr %s25, 128
          %s2709 = scalar_lea.hbm %s5, %s2708
          %s2711 = sshll.u32 %s2701, 4
          %s2712 = int_to_ptr.vmem [resolvable:$true] %s2711
          %2714 = dma.vmem_to_hbm [thread:$0]  %s2712, 128, %s2709, %s2698
        $region40: #{tpu_custom_call.1} parent=35 // pred_fallthru
          _
      $region36: #{tpu_custom_call.1} parent=5 // pred_fallthru
        _
      %p2715 = scmp.le.s32.totalorder 2, %s20
      // Predicated region
      $region41: #{tpu_custom_call.1} parent=5 // pred_check
        %p2716 = pneg %p2715
      $region42: #{tpu_custom_call.1} parent=5 // pred_check_branch
        %2718 = sbr.rel (%p2716) target = $region44
      $region43: #{tpu_custom_call.1} parent=5 // pred_region
        %s2719 = ssub.s32 %s20, 2
        // Predicated region
        $region45: #{tpu_custom_call.1} parent=43 // pred_check
          %p2720 = pneg %p133
        $region46: #{tpu_custom_call.1} parent=43 // pred_check_branch
          %2722 = sbr.rel (%p2720) target = $region48
        $region47: #{tpu_custom_call.1} parent=43 // pred_region
          %s2723 = sand.u32 %s118, 1
          %s2724 = scalar_lea.sflag [#allocation5], %s2723
          %s2725 = sand.u32 %s118, 1
          %s2726 = smul.addr %s2725, 8
          %s2727 = scalar_lea.vmem [#allocation4], %s2726
          %2728 = dma.done %s2724, 128
        $region48: #{tpu_custom_call.1} parent=43 // pred_fallthru
          _
      $region44: #{tpu_custom_call.1} parent=5 // pred_fallthru
        _
    $region6: #{tpu_custom_call.1} parent=1 // loop_footer
      %s24 = sadd.s32 1, %s20
    $region7: #{tpu_custom_call.1} parent=1 // loop_footer_branch
      %19 = sbr.rel target = $region3
    $region8: #{tpu_custom_call.1} parent=1 // loop_exit
      _
    %2729 = vsyncpa [#allocation5], 1
    %s2730 = scalar_lea.sflag [#allocation5], 1
    %2731 = vsyncpa %s2730, 1

</llo_original>
